<compile_context>
chip_gen: v7x
topology: tpu7x:2x2x1
jax: 0.10.0
libtpu: 0.0.40
codegen_flags: <defaults>
</compile_context>

<pallas_src>
import math

import jax
import jax.numpy as jnp
from jax.experimental import pallas as pl
from jax.experimental.pallas import tpu as pltpu

# ---- model hyperparameters (PyTorch defaults of the module) -----------------
D_MODEL = 64
NHEAD = 4
HEAD_DIM = D_MODEL // NHEAD
NUM_LAYERS = 2
DIM_FF = 2048          # nn.TransformerEncoderLayer default dim_feedforward
LN_EPS = 1e-5          # nn.LayerNorm default eps


def _layer_norm(x, w, b, eps=LN_EPS):
    mu = jnp.mean(x, axis=-1, keepdims=True)
    var = jnp.mean((x - mu) ** 2, axis=-1, keepdims=True)
    return (x - mu) * jax.lax.rsqrt(var + eps) * w + b


def transformer_kernel(x_ref, emb_w_ref, emb_b_ref,
                       in_w_ref, in_b_ref, out_w_ref, out_b_ref,
                       ln1_w_ref, ln1_b_ref, l1_w_ref, l1_b_ref,
                       l2_w_ref, l2_b_ref, ln2_w_ref, ln2_b_ref,
                       fc_w_ref, fc_b_ref, o_ref, h_ref):
    l = pl.program_id(1)
    n_layers = pl.num_programs(1)
    bt, S, _ = x_ref.shape
    N = bt * S
    scale = 1.0 / math.sqrt(HEAD_DIM)

    # ---- first layer step: embedding Linear(1, d) == VPU broadcast multiply ----
    @pl.when(l == 0)
    def _():
        x = x_ref[...]                                             # (bt, S, 1) f32
        h0 = x * emb_w_ref[...] + emb_b_ref[...]                   # (bt, S, d) f32
        h_ref[...] = h0.reshape(N, D_MODEL)

    h = h_ref[...]                                                 # (N, d) f32
    h_bf = h.astype(jnp.bfloat16)

    in_w = in_w_ref[...]        # (1, 3, H, d, hd) bf16
    in_b = in_b_ref[...]        # (1, 3, H, 1, hd) f32
    out_w = out_w_ref[...]      # (1, H, hd, d)    bf16

    # --- multi-head self-attention: per-head small dots, no lane slicing ---
    attn = jnp.zeros((N, D_MODEL), jnp.float32)
    for hh in range(NHEAD):                                        # static, 4 heads
        q = jnp.dot(h_bf, in_w[0, 0, hh],
                    preferred_element_type=jnp.float32) + in_b[0, 0, hh]
        k = jnp.dot(h_bf, in_w[0, 1, hh],
                    preferred_element_type=jnp.float32) + in_b[0, 1, hh]
        v = jnp.dot(h_bf, in_w[0, 2, hh],
                    preferred_element_type=jnp.float32) + in_b[0, 2, hh]
        q3 = q.reshape(bt, S, HEAD_DIM).astype(jnp.bfloat16)       # leading-dim split
        k3 = k.reshape(bt, S, HEAD_DIM).astype(jnp.bfloat16)
        v3 = v.reshape(bt, S, HEAD_DIM).astype(jnp.bfloat16)

        s = jnp.einsum('bqd,bkd->bqk', q3, k3,
                       preferred_element_type=jnp.float32)         # (bt, S, S) f32
        s = s * scale
        s = s - jnp.max(s, axis=-1, keepdims=True)
        p = jnp.exp(s)
        p = p * pl.reciprocal(jnp.sum(p, axis=-1, keepdims=True), approx=True)
        o = jnp.einsum('bqk,bkd->bqd', p.astype(jnp.bfloat16), v3,
                       preferred_element_type=jnp.float32)         # (bt, S, hd) f32
        # accumulate through out_proj per head (no lane concat of head outputs)
        attn = attn + jnp.dot(o.reshape(N, HEAD_DIM).astype(jnp.bfloat16),
                              out_w[0, hh],
                              preferred_element_type=jnp.float32)  # (N, d) f32
    attn = attn + out_b_ref[0]

    # residual + LayerNorm1 (post-norm, norm_first=False), f32
    h = _layer_norm(h + attn, ln1_w_ref[0], ln1_b_ref[0])

    # --- feed-forward (ReLU); bf16 only at the MXU operand boundary ---
    ff = jnp.dot(h.astype(jnp.bfloat16), l1_w_ref[0],
                 preferred_element_type=jnp.float32) + l1_b_ref[0]   # (N, dff) f32
    ff = jnp.maximum(ff, 0.0)
    ff = jnp.dot(ff.astype(jnp.bfloat16), l2_w_ref[0],
                 preferred_element_type=jnp.float32) + l2_b_ref[0]   # (N, d) f32

    # residual + LayerNorm2, f32; carry h to the next layer step
    h = _layer_norm(h + ff, ln2_w_ref[0], ln2_b_ref[0])
    h_ref[...] = h

    # ---- classifier head on the LAST token of every sequence (VPU reduce) ----
    @pl.when(l == n_layers - 1)
    def _():
        last = h.reshape(bt, S, D_MODEL)[:, S - 1, :]                # (bt, d) f32
        logits = jnp.sum(last * fc_w_ref[...], axis=-1, keepdims=True) + fc_b_ref[...]
        o_ref[...] = logits                                          # (bt, 1) f32


def prepare_params(params):
    """One-time (outside the kernel) conversion of PyTorch-layout parameters:
    matmul weights transposed to (in, out) layout, split per head for the
    attention projections, and cast to bf16 for MXU operands; biases and
    LayerNorm params kept f32, shaped for direct broadcasting."""
    (emb_w, emb_b, in_w, in_b, out_w, out_b, ln1_w, ln1_b,
     l1_w, l1_b, l2_w, l2_b, ln2_w, ln2_b, fc_w, fc_b) = params
    L, d, dff, H, hd = NUM_LAYERS, D_MODEL, DIM_FF, NHEAD, HEAD_DIM
    bf16, f32 = jnp.bfloat16, jnp.float32

    # in_proj_weight (L, 3d, d) -> per (qkv, head) transposed blocks (L, 3, H, d, hd)
    in_w_h = jnp.transpose(in_w.reshape(L, 3, H, hd, d), (0, 1, 2, 4, 3)).astype(bf16)
    in_b_h = in_b.reshape(L, 3, H, 1, hd).astype(f32)
    # out_proj.weight (L, d, d): y = a @ W.T ; per-head row blocks of W.T -> (L, H, hd, d)
    out_w_h = jnp.transpose(out_w, (0, 2, 1)).reshape(L, H, hd, d).astype(bf16)

    return (
        emb_w.reshape(1, 1, d).astype(f32),              # row of Linear(1, d).weight
        emb_b.reshape(1, 1, d).astype(f32),
        in_w_h,                                          # (L, 3, H, d, hd) bf16
        in_b_h,                                          # (L, 3, H, 1, hd) f32
        out_w_h,                                         # (L, H, hd, d)    bf16
        out_b.reshape(L, 1, d).astype(f32),
        ln1_w.reshape(L, 1, d).astype(f32),
        ln1_b.reshape(L, 1, d).astype(f32),
        jnp.transpose(l1_w, (0, 2, 1)).astype(bf16),     # (L, d, dff) bf16
        l1_b.reshape(L, 1, dff).astype(f32),
        jnp.transpose(l2_w, (0, 2, 1)).astype(bf16),     # (L, dff, d) bf16
        l2_b.reshape(L, 1, d).astype(f32),
        ln2_w.reshape(L, 1, d).astype(f32),
        ln2_b.reshape(L, 1, d).astype(f32),
        fc_w.reshape(1, d).astype(f32),                  # fc.weight row
        fc_b.reshape(1, 1).astype(f32),
    )


def _default_batch_tile(B, S):
    """~256 activation rows per grid step fills the MXU M dim on v6e/v7x
    (2x v5e's 128 rows); keep multiple batch steps for v7x's two TCs when B
    allows.  bt must divide B and (for the (bt, 1) output block) be either B
    or a multiple of 8."""
    target = max(1, 256 // S)
    if B <= target:
        return B
    start = min(B, max(8, (target // 8) * 8))
    for bt in range(start, 7, -8):
        if B % bt == 0:
            return bt
    return B


def transformer_binary_classifier(x, kernel_params, *, batch_tile=None):
    """x: (B, S, 1) f32 -> logits (B,) (matches fc(x[:, -1, :]).squeeze(1))."""
    B, S, _ = x.shape
    bt = _default_batch_tile(B, S) if batch_tile is None else batch_tile
    assert B % bt == 0, "batch must be divisible by the batch tile"

    (emb_w, emb_b, in_w, in_b, out_w, out_b, ln1_w, ln1_b,
     l1_w, l1_b, l2_w, l2_b, ln2_w, ln2_b, fc_w, fc_b) = kernel_params

    def const(p):       # grid-invariant parameter (same block for every (i, l))
        return pl.BlockSpec(p.shape, lambda i, l, nd=p.ndim: (0,) * nd)

    def per_layer(p):   # layer-indexed parameter: block (1, ...), index (l, 0, ...)
        return pl.BlockSpec((1,) + p.shape[1:],
                            lambda i, l, nd=p.ndim: (l,) + (0,) * (nd - 1))

    in_specs = [
        pl.BlockSpec((bt, S, 1), lambda i, l: (i, 0, 0)),   # x (grid-invariant in l)
        const(emb_w), const(emb_b),
        per_layer(in_w), per_layer(in_b),
        per_layer(out_w), per_layer(out_b),
        per_layer(ln1_w), per_layer(ln1_b),
        per_layer(l1_w), per_layer(l1_b),
        per_layer(l2_w), per_layer(l2_b),
        per_layer(ln2_w), per_layer(ln2_b),
        const(fc_w), const(fc_b),
    ]
    out_spec = pl.BlockSpec((bt, 1), lambda i, l: (i, 0))

    out = pl.pallas_call(
        transformer_kernel,
        out_shape=jax.ShapeDtypeStruct((B, 1), jnp.float32),
        grid=(B // bt, NUM_LAYERS),
        in_specs=in_specs,
        out_specs=out_spec,
        scratch_shapes=[pltpu.VMEM((bt * S, D_MODEL), jnp.float32)],  # h, carried across l
        compiler_params=pltpu.CompilerParams(
            dimension_semantics=("parallel", "arbitrary"),
            vmem_limit_bytes=32 * 1024 * 1024),
    )(x, *kernel_params)
    return out[:, 0]


def init_params(key):
    """Deterministic synthetic parameters (PyTorch layouts of the module)."""
    ks = list(jax.random.split(key, 16))

    def w(k, shape, scale=0.05):
        return (scale * jax.random.normal(k, shape)).astype(jnp.float32)

    L, d, dff = NUM_LAYERS, D_MODEL, DIM_FF
    emb_w = w(ks[0], (d, 1))                       # nn.Linear(1, d).weight
    emb_b = w(ks[1], (1, d))                       # nn.Linear(1, d).bias
    in_w = w(ks[2], (L, 3 * d, d))                 # self_attn.in_proj_weight
    in_b = w(ks[3], (L, 3 * d))                    # self_attn.in_proj_bias
    out_w = w(ks[4], (L, d, d))                    # self_attn.out_proj.weight
    out_b = w(ks[5], (L, d))                       # self_attn.out_proj.bias
    ln1_w = jnp.ones((L, d), jnp.float32)          # norm1.weight
    ln1_b = jnp.zeros((L, d), jnp.float32)         # norm1.bias
    l1_w = w(ks[6], (L, dff, d))                   # linear1.weight
    l1_b = w(ks[7], (L, dff))                      # linear1.bias
    l2_w = w(ks[8], (L, d, dff))                   # linear2.weight
    l2_b = w(ks[9], (L, d))                        # linear2.bias
    ln2_w = jnp.ones((L, d), jnp.float32)          # norm2.weight
    ln2_b = jnp.zeros((L, d), jnp.float32)         # norm2.bias
    fc_w = w(ks[10], (1, d))                       # fc.weight
    fc_b = w(ks[11], (1, 1))                       # fc.bias

    return (emb_w, emb_b, in_w, in_b, out_w, out_b, ln1_w, ln1_b,
            l1_w, l1_b, l2_w, l2_b, ln2_w, ln2_b, fc_w, fc_b)


if __name__ == "__main__":
    key = jax.random.PRNGKey(0)
    k_x, k_p = jax.random.split(key)

    B, S = 2, 8
    x = jax.random.normal(k_x, (B, S, 1), dtype=jnp.float32)
    params = init_params(k_p)
    kparams = prepare_params(params)    # one-time layout/dtype prep, outside the kernel

    logits = transformer_binary_classifier(x, kparams)
    logits = jax.block_until_ready(logits)

    assert logits.shape == (B,), logits.shape
    assert jnp.all(jnp.isfinite(logits))
    print("KERNEL_OK")
</pallas_src>

<mosaic_0001>
module attributes {stable_mosaic.version = 11 : i64} {
  func.func @transformer_kernel(%arg0: i32, %arg1: i32, %arg2: memref<2x8x1xf32, #tpu.memory_space<vmem>>, %arg3: memref<1x1x64xf32, #tpu.memory_space<vmem>>, %arg4: memref<1x1x64xf32, #tpu.memory_space<vmem>>, %arg5: memref<1x3x4x64x16xbf16, #tpu.memory_space<vmem>>, %arg6: memref<1x3x4x1x16xf32, #tpu.memory_space<vmem>>, %arg7: memref<1x4x16x64xbf16, #tpu.memory_space<vmem>>, %arg8: memref<1x1x64xf32, #tpu.memory_space<vmem>>, %arg9: memref<1x1x64xf32, #tpu.memory_space<vmem>>, %arg10: memref<1x1x64xf32, #tpu.memory_space<vmem>>, %arg11: memref<1x64x2048xbf16, #tpu.memory_space<vmem>>, %arg12: memref<1x1x2048xf32, #tpu.memory_space<vmem>>, %arg13: memref<1x2048x64xbf16, #tpu.memory_space<vmem>>, %arg14: memref<1x1x64xf32, #tpu.memory_space<vmem>>, %arg15: memref<1x1x64xf32, #tpu.memory_space<vmem>>, %arg16: memref<1x1x64xf32, #tpu.memory_space<vmem>>, %arg17: memref<1x64xf32, #tpu.memory_space<vmem>>, %arg18: memref<1x1xf32, #tpu.memory_space<vmem>>, %arg19: memref<2x1xf32, #tpu.memory_space<vmem>>, %arg20: memref<16x64xf32, #tpu.memory_space<vmem>>) attributes {dimension_semantics = [#tpu.dimension_semantics<parallel>, #tpu.dimension_semantics<arbitrary>], iteration_bounds = array<i64: 1, 2>, scalar_prefetch = 0 : i64, scratch_operands = 1 : i64, tpu.core_type = #tpu.core_type<tc>, window_params = [{transform_indices = @transform_0, window_bounds = array<i64: 2, 8, 1>}, {pipeline_mode = #tpu.pipeline_mode<synchronous>, transform_indices = @transform_1, window_bounds = array<i64: 1, 1, 64>}, {pipeline_mode = #tpu.pipeline_mode<synchronous>, transform_indices = @transform_2, window_bounds = array<i64: 1, 1, 64>}, {transform_indices = @transform_3, window_bounds = array<i64: 1, 3, 4, 64, 16>}, {transform_indices = @transform_4, window_bounds = array<i64: 1, 3, 4, 1, 16>}, {transform_indices = @transform_5, window_bounds = array<i64: 1, 4, 16, 64>}, {transform_indices = @transform_6, window_bounds = array<i64: 1, 1, 64>}, {transform_indices = @transform_7, window_bounds = array<i64: 1, 1, 64>}, {transform_indices = @transform_8, window_bounds = array<i64: 1, 1, 64>}, {transform_indices = @transform_9, window_bounds = array<i64: 1, 64, 2048>}, {transform_indices = @transform_10, window_bounds = array<i64: 1, 1, 2048>}, {transform_indices = @transform_11, window_bounds = array<i64: 1, 2048, 64>}, {transform_indices = @transform_12, window_bounds = array<i64: 1, 1, 64>}, {transform_indices = @transform_13, window_bounds = array<i64: 1, 1, 64>}, {transform_indices = @transform_14, window_bounds = array<i64: 1, 1, 64>}, {pipeline_mode = #tpu.pipeline_mode<synchronous>, transform_indices = @transform_15, window_bounds = array<i64: 1, 64>}, {pipeline_mode = #tpu.pipeline_mode<synchronous>, transform_indices = @transform_16, window_bounds = array<i64: 1, 1>}, {transform_indices = @transform_17, window_bounds = array<i64: 2, 1>}]} {
    %c0_i32 = arith.constant 0 : i32
    %0 = arith.cmpi eq, %arg1, %c0_i32 : i32
    %1 = arith.extui %0 : i1 to i32
    %c0_i32_0 = arith.constant 0 : i32
    %2 = arith.cmpi ne, %1, %c0_i32_0 : i32
    scf.if %2 {
      %c0_95 = arith.constant 0 : index
      %c0_96 = arith.constant 0 : index
      %c0_97 = arith.constant 0 : index
      %281 = vector.load %arg2[%c0_95, %c0_96, %c0_97] : memref<2x8x1xf32, #tpu.memory_space<vmem>>, vector<2x8x1xf32>
      %c0_98 = arith.constant 0 : index
      %c0_99 = arith.constant 0 : index
      %c0_100 = arith.constant 0 : index
      %282 = vector.load %arg3[%c0_98, %c0_99, %c0_100] : memref<1x1x64xf32, #tpu.memory_space<vmem>>, vector<1x1x64xf32>
      %283 = vector.broadcast %281 : vector<2x8x1xf32> to vector<2x8x64xf32>
      %284 = vector.broadcast %282 : vector<1x1x64xf32> to vector<2x8x64xf32>
      %285 = arith.mulf %283, %284 : vector<2x8x64xf32>
      %c0_101 = arith.constant 0 : index
      %c0_102 = arith.constant 0 : index
      %c0_103 = arith.constant 0 : index
      %286 = vector.load %arg4[%c0_101, %c0_102, %c0_103] : memref<1x1x64xf32, #tpu.memory_space<vmem>>, vector<1x1x64xf32>
      %287 = vector.broadcast %286 : vector<1x1x64xf32> to vector<2x8x64xf32>
      %288 = arith.addf %285, %287 : vector<2x8x64xf32>
      %289 = vector.shape_cast %288 : vector<2x8x64xf32> to vector<16x64xf32>
      %c0_104 = arith.constant 0 : index
      %c0_105 = arith.constant 0 : index
      %290 = vector.load %arg20[%c0_104, %c0_105] : memref<16x64xf32, #tpu.memory_space<vmem>>, vector<16x64xf32>
      tpu.vector_store %arg20[%c0_104, %c0_105], %289 {strides = array<i32>} : memref<16x64xf32, #tpu.memory_space<vmem>>, vector<16x64xf32>,
    } else {
    }
    %c0 = arith.constant 0 : index
    %c0_1 = arith.constant 0 : index
    %3 = vector.load %arg20[%c0, %c0_1] : memref<16x64xf32, #tpu.memory_space<vmem>>, vector<16x64xf32>
    %4 = arith.truncf %3 : vector<16x64xf32> to vector<16x64xbf16>
    %c0_2 = arith.constant 0 : index
    %c0_3 = arith.constant 0 : index
    %c0_4 = arith.constant 0 : index
    %c0_5 = arith.constant 0 : index
    %c0_6 = arith.constant 0 : index
    %5 = vector.load %arg5[%c0_2, %c0_3, %c0_4, %c0_5, %c0_6] : memref<1x3x4x64x16xbf16, #tpu.memory_space<vmem>>, vector<1x3x4x64x16xbf16>
    %c0_7 = arith.constant 0 : index
    %c0_8 = arith.constant 0 : index
    %c0_9 = arith.constant 0 : index
    %c0_10 = arith.constant 0 : index
    %c0_11 = arith.constant 0 : index
    %6 = vector.load %arg6[%c0_7, %c0_8, %c0_9, %c0_10, %c0_11] : memref<1x3x4x1x16xf32, #tpu.memory_space<vmem>>, vector<1x3x4x1x16xf32>
    %c0_12 = arith.constant 0 : index
    %c0_13 = arith.constant 0 : index
    %c0_14 = arith.constant 0 : index
    %c0_15 = arith.constant 0 : index
    %7 = vector.load %arg7[%c0_12, %c0_13, %c0_14, %c0_15] : memref<1x4x16x64xbf16, #tpu.memory_space<vmem>>, vector<1x4x16x64xbf16>
    %cst = arith.constant 0.000000e+00 : f32
    %8 = vector.broadcast %cst : f32 to vector<16x64xf32>
    %9 = vector.extract_strided_slice %5 {offsets = [0, 0, 0, 0, 0], sizes = [1, 1, 1, 64, 16], strides = [1, 1, 1, 1, 1]} : vector<1x3x4x64x16xbf16> to vector<1x1x1x64x16xbf16>
    %10 = vector.shape_cast %9 : vector<1x1x1x64x16xbf16> to vector<64x16xbf16>
    %cst_16 = arith.constant dense<0.000000e+00> : vector<16x16xf32>
    %11 = tpu.matmul %4, %10, %cst_16 {dimension_numbers = #tpu.dot_dimension_numbers<[1], [0], [0], [1], [0, 0, 1, 1], [], []>} : vector<16x64xbf16>, vector<64x16xbf16>, vector<16x16xf32> -> vector<16x16xf32>
    %12 = vector.extract_strided_slice %6 {offsets = [0, 0, 0, 0, 0], sizes = [1, 1, 1, 1, 16], strides = [1, 1, 1, 1, 1]} : vector<1x3x4x1x16xf32> to vector<1x1x1x1x16xf32>
    %13 = vector.shape_cast %12 : vector<1x1x1x1x16xf32> to vector<1x16xf32>
    %14 = vector.broadcast %13 : vector<1x16xf32> to vector<16x16xf32>
    %15 = arith.addf %11, %14 : vector<16x16xf32>
    %16 = vector.extract_strided_slice %5 {offsets = [0, 1, 0, 0, 0], sizes = [1, 1, 1, 64, 16], strides = [1, 1, 1, 1, 1]} : vector<1x3x4x64x16xbf16> to vector<1x1x1x64x16xbf16>
    %17 = vector.shape_cast %16 : vector<1x1x1x64x16xbf16> to vector<64x16xbf16>
    %cst_17 = arith.constant dense<0.000000e+00> : vector<16x16xf32>
    %18 = tpu.matmul %4, %17, %cst_17 {dimension_numbers = #tpu.dot_dimension_numbers<[1], [0], [0], [1], [0, 0, 1, 1], [], []>} : vector<16x64xbf16>, vector<64x16xbf16>, vector<16x16xf32> -> vector<16x16xf32>
    %19 = vector.extract_strided_slice %6 {offsets = [0, 1, 0, 0, 0], sizes = [1, 1, 1, 1, 16], strides = [1, 1, 1, 1, 1]} : vector<1x3x4x1x16xf32> to vector<1x1x1x1x16xf32>
    %20 = vector.shape_cast %19 : vector<1x1x1x1x16xf32> to vector<1x16xf32>
    %21 = vector.broadcast %20 : vector<1x16xf32> to vector<16x16xf32>
    %22 = arith.addf %18, %21 : vector<16x16xf32>
    %23 = vector.extract_strided_slice %5 {offsets = [0, 2, 0, 0, 0], sizes = [1, 1, 1, 64, 16], strides = [1, 1, 1, 1, 1]} : vector<1x3x4x64x16xbf16> to vector<1x1x1x64x16xbf16>
    %24 = vector.shape_cast %23 : vector<1x1x1x64x16xbf16> to vector<64x16xbf16>
    %cst_18 = arith.constant dense<0.000000e+00> : vector<16x16xf32>
    %25 = tpu.matmul %4, %24, %cst_18 {dimension_numbers = #tpu.dot_dimension_numbers<[1], [0], [0], [1], [0, 0, 1, 1], [], []>} : vector<16x64xbf16>, vector<64x16xbf16>, vector<16x16xf32> -> vector<16x16xf32>
    %26 = vector.extract_strided_slice %6 {offsets = [0, 2, 0, 0, 0], sizes = [1, 1, 1, 1, 16], strides = [1, 1, 1, 1, 1]} : vector<1x3x4x1x16xf32> to vector<1x1x1x1x16xf32>
    %27 = vector.shape_cast %26 : vector<1x1x1x1x16xf32> to vector<1x16xf32>
    %28 = vector.broadcast %27 : vector<1x16xf32> to vector<16x16xf32>
    %29 = arith.addf %25, %28 : vector<16x16xf32>
    %30 = vector.shape_cast %15 : vector<16x16xf32> to vector<2x8x16xf32>
    %31 = arith.truncf %30 : vector<2x8x16xf32> to vector<2x8x16xbf16>
    %32 = vector.shape_cast %22 : vector<16x16xf32> to vector<2x8x16xf32>
    %33 = arith.truncf %32 : vector<2x8x16xf32> to vector<2x8x16xbf16>
    %34 = vector.shape_cast %29 : vector<16x16xf32> to vector<2x8x16xf32>
    %35 = arith.truncf %34 : vector<2x8x16xf32> to vector<2x8x16xbf16>
    "tpu.trace_start"() <{level = 10 : i32, message = "bqd,bkd->bqk"}> : () -> ()
    %cst_19 = arith.constant dense<0.000000e+00> : vector<2x8x8xf32>
    %36 = tpu.matmul %31, %33, %cst_19 {dimension_numbers = #tpu.dot_dimension_numbers<[2], [2], [1], [1], [0, 0, 0, 1, 1, 1], [0], [0]>} : vector<2x8x16xbf16>, vector<2x8x16xbf16>, vector<2x8x8xf32> -> vector<2x8x8xf32>
    "tpu.trace_stop"() : () -> ()
    %cst_20 = arith.constant 2.500000e-01 : f32
    %37 = vector.broadcast %cst_20 : f32 to vector<2x8x8xf32>
    %38 = arith.mulf %36, %37 : vector<2x8x8xf32>
    %cst_21 = arith.constant dense<0xFF800000> : vector<2x8xf32>
    %39 = vector.multi_reduction <maximumf>, %38, %cst_21 [2] : vector<2x8x8xf32> to vector<2x8xf32>
    %40 = vector.shape_cast %39 : vector<2x8xf32> to vector<2x8x1xf32>
    %41 = vector.broadcast %40 : vector<2x8x1xf32> to vector<2x8x8xf32>
    %42 = arith.subf %38, %41 : vector<2x8x8xf32>
    %43 = math.exp %42 : vector<2x8x8xf32>
    %cst_22 = arith.constant dense<0.000000e+00> : vector<2x8xf32>
    %44 = vector.multi_reduction <add>, %43, %cst_22 [2] : vector<2x8x8xf32> to vector<2x8xf32>
    %45 = vector.shape_cast %44 : vector<2x8xf32> to vector<2x8x1xf32>
    %46 = tpu.reciprocal %45 {approx = true} : vector<2x8x1xf32> -> vector<2x8x1xf32>
    %47 = vector.broadcast %46 : vector<2x8x1xf32> to vector<2x8x8xf32>
    %48 = arith.mulf %43, %47 : vector<2x8x8xf32>
    %49 = arith.truncf %48 : vector<2x8x8xf32> to vector<2x8x8xbf16>
    "tpu.trace_start"() <{level = 10 : i32, message = "bqk,bkd->bqd"}> : () -> ()
    %cst_23 = arith.constant dense<0.000000e+00> : vector<2x8x16xf32>
    %50 = tpu.matmul %49, %35, %cst_23 {dimension_numbers = #tpu.dot_dimension_numbers<[2], [1], [1], [2], [0, 0, 0, 1, 1, 2], [0], [0]>} : vector<2x8x8xbf16>, vector<2x8x16xbf16>, vector<2x8x16xf32> -> vector<2x8x16xf32>
    "tpu.trace_stop"() : () -> ()
    %51 = vector.shape_cast %50 : vector<2x8x16xf32> to vector<16x16xf32>
    %52 = arith.truncf %51 : vector<16x16xf32> to vector<16x16xbf16>
    %53 = vector.extract_strided_slice %7 {offsets = [0, 0, 0, 0], sizes = [1, 1, 16, 64], strides = [1, 1, 1, 1]} : vector<1x4x16x64xbf16> to vector<1x1x16x64xbf16>
    %54 = vector.shape_cast %53 : vector<1x1x16x64xbf16> to vector<16x64xbf16>
    %cst_24 = arith.constant dense<0.000000e+00> : vector<16x64xf32>
    %55 = tpu.matmul %52, %54, %cst_24 {dimension_numbers = #tpu.dot_dimension_numbers<[1], [0], [0], [1], [0, 0, 1, 1], [], []>} : vector<16x16xbf16>, vector<16x64xbf16>, vector<16x64xf32> -> vector<16x64xf32>
    %56 = arith.addf %8, %55 : vector<16x64xf32>
    %57 = vector.extract_strided_slice %5 {offsets = [0, 0, 1, 0, 0], sizes = [1, 1, 1, 64, 16], strides = [1, 1, 1, 1, 1]} : vector<1x3x4x64x16xbf16> to vector<1x1x1x64x16xbf16>
    %58 = vector.shape_cast %57 : vector<1x1x1x64x16xbf16> to vector<64x16xbf16>
    %cst_25 = arith.constant dense<0.000000e+00> : vector<16x16xf32>
    %59 = tpu.matmul %4, %58, %cst_25 {dimension_numbers = #tpu.dot_dimension_numbers<[1], [0], [0], [1], [0, 0, 1, 1], [], []>} : vector<16x64xbf16>, vector<64x16xbf16>, vector<16x16xf32> -> vector<16x16xf32>
    %60 = vector.extract_strided_slice %6 {offsets = [0, 0, 1, 0, 0], sizes = [1, 1, 1, 1, 16], strides = [1, 1, 1, 1, 1]} : vector<1x3x4x1x16xf32> to vector<1x1x1x1x16xf32>
    %61 = vector.shape_cast %60 : vector<1x1x1x1x16xf32> to vector<1x16xf32>
    %62 = vector.broadcast %61 : vector<1x16xf32> to vector<16x16xf32>
    %63 = arith.addf %59, %62 : vector<16x16xf32>
    %64 = vector.extract_strided_slice %5 {offsets = [0, 1, 1, 0, 0], sizes = [1, 1, 1, 64, 16], strides = [1, 1, 1, 1, 1]} : vector<1x3x4x64x16xbf16> to vector<1x1x1x64x16xbf16>
    %65 = vector.shape_cast %64 : vector<1x1x1x64x16xbf16> to vector<64x16xbf16>
    %cst_26 = arith.constant dense<0.000000e+00> : vector<16x16xf32>
    %66 = tpu.matmul %4, %65, %cst_26 {dimension_numbers = #tpu.dot_dimension_numbers<[1], [0], [0], [1], [0, 0, 1, 1], [], []>} : vector<16x64xbf16>, vector<64x16xbf16>, vector<16x16xf32> -> vector<16x16xf32>
    %67 = vector.extract_strided_slice %6 {offsets = [0, 1, 1, 0, 0], sizes = [1, 1, 1, 1, 16], strides = [1, 1, 1, 1, 1]} : vector<1x3x4x1x16xf32> to vector<1x1x1x1x16xf32>
    %68 = vector.shape_cast %67 : vector<1x1x1x1x16xf32> to vector<1x16xf32>
    %69 = vector.broadcast %68 : vector<1x16xf32> to vector<16x16xf32>
    %70 = arith.addf %66, %69 : vector<16x16xf32>
    %71 = vector.extract_strided_slice %5 {offsets = [0, 2, 1, 0, 0], sizes = [1, 1, 1, 64, 16], strides = [1, 1, 1, 1, 1]} : vector<1x3x4x64x16xbf16> to vector<1x1x1x64x16xbf16>
    %72 = vector.shape_cast %71 : vector<1x1x1x64x16xbf16> to vector<64x16xbf16>
    %cst_27 = arith.constant dense<0.000000e+00> : vector<16x16xf32>
    %73 = tpu.matmul %4, %72, %cst_27 {dimension_numbers = #tpu.dot_dimension_numbers<[1], [0], [0], [1], [0, 0, 1, 1], [], []>} : vector<16x64xbf16>, vector<64x16xbf16>, vector<16x16xf32> -> vector<16x16xf32>
    %74 = vector.extract_strided_slice %6 {offsets = [0, 2, 1, 0, 0], sizes = [1, 1, 1, 1, 16], strides = [1, 1, 1, 1, 1]} : vector<1x3x4x1x16xf32> to vector<1x1x1x1x16xf32>
    %75 = vector.shape_cast %74 : vector<1x1x1x1x16xf32> to vector<1x16xf32>
    %76 = vector.broadcast %75 : vector<1x16xf32> to vector<16x16xf32>
    %77 = arith.addf %73, %76 : vector<16x16xf32>
    %78 = vector.shape_cast %63 : vector<16x16xf32> to vector<2x8x16xf32>
    %79 = arith.truncf %78 : vector<2x8x16xf32> to vector<2x8x16xbf16>
    %80 = vector.shape_cast %70 : vector<16x16xf32> to vector<2x8x16xf32>
    %81 = arith.truncf %80 : vector<2x8x16xf32> to vector<2x8x16xbf16>
    %82 = vector.shape_cast %77 : vector<16x16xf32> to vector<2x8x16xf32>
    %83 = arith.truncf %82 : vector<2x8x16xf32> to vector<2x8x16xbf16>
    "tpu.trace_start"() <{level = 10 : i32, message = "bqd,bkd->bqk"}> : () -> ()
    %cst_28 = arith.constant dense<0.000000e+00> : vector<2x8x8xf32>
    %84 = tpu.matmul %79, %81, %cst_28 {dimension_numbers = #tpu.dot_dimension_numbers<[2], [2], [1], [1], [0, 0, 0, 1, 1, 1], [0], [0]>} : vector<2x8x16xbf16>, vector<2x8x16xbf16>, vector<2x8x8xf32> -> vector<2x8x8xf32>
    "tpu.trace_stop"() : () -> ()
    %cst_29 = arith.constant 2.500000e-01 : f32
    %85 = vector.broadcast %cst_29 : f32 to vector<2x8x8xf32>
    %86 = arith.mulf %84, %85 : vector<2x8x8xf32>
    %cst_30 = arith.constant dense<0xFF800000> : vector<2x8xf32>
    %87 = vector.multi_reduction <maximumf>, %86, %cst_30 [2] : vector<2x8x8xf32> to vector<2x8xf32>
    %88 = vector.shape_cast %87 : vector<2x8xf32> to vector<2x8x1xf32>
    %89 = vector.broadcast %88 : vector<2x8x1xf32> to vector<2x8x8xf32>
    %90 = arith.subf %86, %89 : vector<2x8x8xf32>
    %91 = math.exp %90 : vector<2x8x8xf32>
    %cst_31 = arith.constant dense<0.000000e+00> : vector<2x8xf32>
    %92 = vector.multi_reduction <add>, %91, %cst_31 [2] : vector<2x8x8xf32> to vector<2x8xf32>
    %93 = vector.shape_cast %92 : vector<2x8xf32> to vector<2x8x1xf32>
    %94 = tpu.reciprocal %93 {approx = true} : vector<2x8x1xf32> -> vector<2x8x1xf32>
    %95 = vector.broadcast %94 : vector<2x8x1xf32> to vector<2x8x8xf32>
    %96 = arith.mulf %91, %95 : vector<2x8x8xf32>
    %97 = arith.truncf %96 : vector<2x8x8xf32> to vector<2x8x8xbf16>
    "tpu.trace_start"() <{level = 10 : i32, message = "bqk,bkd->bqd"}> : () -> ()
    %cst_32 = arith.constant dense<0.000000e+00> : vector<2x8x16xf32>
    %98 = tpu.matmul %97, %83, %cst_32 {dimension_numbers = #tpu.dot_dimension_numbers<[2], [1], [1], [2], [0, 0, 0, 1, 1, 2], [0], [0]>} : vector<2x8x8xbf16>, vector<2x8x16xbf16>, vector<2x8x16xf32> -> vector<2x8x16xf32>
    "tpu.trace_stop"() : () -> ()
    %99 = vector.shape_cast %98 : vector<2x8x16xf32> to vector<16x16xf32>
    %100 = arith.truncf %99 : vector<16x16xf32> to vector<16x16xbf16>
    %101 = vector.extract_strided_slice %7 {offsets = [0, 1, 0, 0], sizes = [1, 1, 16, 64], strides = [1, 1, 1, 1]} : vector<1x4x16x64xbf16> to vector<1x1x16x64xbf16>
    %102 = vector.shape_cast %101 : vector<1x1x16x64xbf16> to vector<16x64xbf16>
    %cst_33 = arith.constant dense<0.000000e+00> : vector<16x64xf32>
    %103 = tpu.matmul %100, %102, %cst_33 {dimension_numbers = #tpu.dot_dimension_numbers<[1], [0], [0], [1], [0, 0, 1, 1], [], []>} : vector<16x16xbf16>, vector<16x64xbf16>, vector<16x64xf32> -> vector<16x64xf32>
    %104 = arith.addf %56, %103 : vector<16x64xf32>
    %105 = vector.extract_strided_slice %5 {offsets = [0, 0, 2, 0, 0], sizes = [1, 1, 1, 64, 16], strides = [1, 1, 1, 1, 1]} : vector<1x3x4x64x16xbf16> to vector<1x1x1x64x16xbf16>
    %106 = vector.shape_cast %105 : vector<1x1x1x64x16xbf16> to vector<64x16xbf16>
    %cst_34 = arith.constant dense<0.000000e+00> : vector<16x16xf32>
    %107 = tpu.matmul %4, %106, %cst_34 {dimension_numbers = #tpu.dot_dimension_numbers<[1], [0], [0], [1], [0, 0, 1, 1], [], []>} : vector<16x64xbf16>, vector<64x16xbf16>, vector<16x16xf32> -> vector<16x16xf32>
    %108 = vector.extract_strided_slice %6 {offsets = [0, 0, 2, 0, 0], sizes = [1, 1, 1, 1, 16], strides = [1, 1, 1, 1, 1]} : vector<1x3x4x1x16xf32> to vector<1x1x1x1x16xf32>
    %109 = vector.shape_cast %108 : vector<1x1x1x1x16xf32> to vector<1x16xf32>
    %110 = vector.broadcast %109 : vector<1x16xf32> to vector<16x16xf32>
    %111 = arith.addf %107, %110 : vector<16x16xf32>
    %112 = vector.extract_strided_slice %5 {offsets = [0, 1, 2, 0, 0], sizes = [1, 1, 1, 64, 16], strides = [1, 1, 1, 1, 1]} : vector<1x3x4x64x16xbf16> to vector<1x1x1x64x16xbf16>
    %113 = vector.shape_cast %112 : vector<1x1x1x64x16xbf16> to vector<64x16xbf16>
    %cst_35 = arith.constant dense<0.000000e+00> : vector<16x16xf32>
    %114 = tpu.matmul %4, %113, %cst_35 {dimension_numbers = #tpu.dot_dimension_numbers<[1], [0], [0], [1], [0, 0, 1, 1], [], []>} : vector<16x64xbf16>, vector<64x16xbf16>, vector<16x16xf32> -> vector<16x16xf32>
    %115 = vector.extract_strided_slice %6 {offsets = [0, 1, 2, 0, 0], sizes = [1, 1, 1, 1, 16], strides = [1, 1, 1, 1, 1]} : vector<1x3x4x1x16xf32> to vector<1x1x1x1x16xf32>
    %116 = vector.shape_cast %115 : vector<1x1x1x1x16xf32> to vector<1x16xf32>
    %117 = vector.broadcast %116 : vector<1x16xf32> to vector<16x16xf32>
    %118 = arith.addf %114, %117 : vector<16x16xf32>
    %119 = vector.extract_strided_slice %5 {offsets = [0, 2, 2, 0, 0], sizes = [1, 1, 1, 64, 16], strides = [1, 1, 1, 1, 1]} : vector<1x3x4x64x16xbf16> to vector<1x1x1x64x16xbf16>
    %120 = vector.shape_cast %119 : vector<1x1x1x64x16xbf16> to vector<64x16xbf16>
    %cst_36 = arith.constant dense<0.000000e+00> : vector<16x16xf32>
    %121 = tpu.matmul %4, %120, %cst_36 {dimension_numbers = #tpu.dot_dimension_numbers<[1], [0], [0], [1], [0, 0, 1, 1], [], []>} : vector<16x64xbf16>, vector<64x16xbf16>, vector<16x16xf32> -> vector<16x16xf32>
    %122 = vector.extract_strided_slice %6 {offsets = [0, 2, 2, 0, 0], sizes = [1, 1, 1, 1, 16], strides = [1, 1, 1, 1, 1]} : vector<1x3x4x1x16xf32> to vector<1x1x1x1x16xf32>
    %123 = vector.shape_cast %122 : vector<1x1x1x1x16xf32> to vector<1x16xf32>
    %124 = vector.broadcast %123 : vector<1x16xf32> to vector<16x16xf32>
    %125 = arith.addf %121, %124 : vector<16x16xf32>
    %126 = vector.shape_cast %111 : vector<16x16xf32> to vector<2x8x16xf32>
    %127 = arith.truncf %126 : vector<2x8x16xf32> to vector<2x8x16xbf16>
    %128 = vector.shape_cast %118 : vector<16x16xf32> to vector<2x8x16xf32>
    %129 = arith.truncf %128 : vector<2x8x16xf32> to vector<2x8x16xbf16>
    %130 = vector.shape_cast %125 : vector<16x16xf32> to vector<2x8x16xf32>
    %131 = arith.truncf %130 : vector<2x8x16xf32> to vector<2x8x16xbf16>
    "tpu.trace_start"() <{level = 10 : i32, message = "bqd,bkd->bqk"}> : () -> ()
    %cst_37 = arith.constant dense<0.000000e+00> : vector<2x8x8xf32>
    %132 = tpu.matmul %127, %129, %cst_37 {dimension_numbers = #tpu.dot_dimension_numbers<[2], [2], [1], [1], [0, 0, 0, 1, 1, 1], [0], [0]>} : vector<2x8x16xbf16>, vector<2x8x16xbf16>, vector<2x8x8xf32> -> vector<2x8x8xf32>
    "tpu.trace_stop"() : () -> ()
    %cst_38 = arith.constant 2.500000e-01 : f32
    %133 = vector.broadcast %cst_38 : f32 to vector<2x8x8xf32>
    %134 = arith.mulf %132, %133 : vector<2x8x8xf32>
    %cst_39 = arith.constant dense<0xFF800000> : vector<2x8xf32>
    %135 = vector.multi_reduction <maximumf>, %134, %cst_39 [2] : vector<2x8x8xf32> to vector<2x8xf32>
    %136 = vector.shape_cast %135 : vector<2x8xf32> to vector<2x8x1xf32>
    %137 = vector.broadcast %136 : vector<2x8x1xf32> to vector<2x8x8xf32>
    %138 = arith.subf %134, %137 : vector<2x8x8xf32>
    %139 = math.exp %138 : vector<2x8x8xf32>
    %cst_40 = arith.constant dense<0.000000e+00> : vector<2x8xf32>
    %140 = vector.multi_reduction <add>, %139, %cst_40 [2] : vector<2x8x8xf32> to vector<2x8xf32>
    %141 = vector.shape_cast %140 : vector<2x8xf32> to vector<2x8x1xf32>
    %142 = tpu.reciprocal %141 {approx = true} : vector<2x8x1xf32> -> vector<2x8x1xf32>
    %143 = vector.broadcast %142 : vector<2x8x1xf32> to vector<2x8x8xf32>
    %144 = arith.mulf %139, %143 : vector<2x8x8xf32>
    %145 = arith.truncf %144 : vector<2x8x8xf32> to vector<2x8x8xbf16>
    "tpu.trace_start"() <{level = 10 : i32, message = "bqk,bkd->bqd"}> : () -> ()
    %cst_41 = arith.constant dense<0.000000e+00> : vector<2x8x16xf32>
    %146 = tpu.matmul %145, %131, %cst_41 {dimension_numbers = #tpu.dot_dimension_numbers<[2], [1], [1], [2], [0, 0, 0, 1, 1, 2], [0], [0]>} : vector<2x8x8xbf16>, vector<2x8x16xbf16>, vector<2x8x16xf32> -> vector<2x8x16xf32>
    "tpu.trace_stop"() : () -> ()
    %147 = vector.shape_cast %146 : vector<2x8x16xf32> to vector<16x16xf32>
    %148 = arith.truncf %147 : vector<16x16xf32> to vector<16x16xbf16>
    %149 = vector.extract_strided_slice %7 {offsets = [0, 2, 0, 0], sizes = [1, 1, 16, 64], strides = [1, 1, 1, 1]} : vector<1x4x16x64xbf16> to vector<1x1x16x64xbf16>
    %150 = vector.shape_cast %149 : vector<1x1x16x64xbf16> to vector<16x64xbf16>
    %cst_42 = arith.constant dense<0.000000e+00> : vector<16x64xf32>
    %151 = tpu.matmul %148, %150, %cst_42 {dimension_numbers = #tpu.dot_dimension_numbers<[1], [0], [0], [1], [0, 0, 1, 1], [], []>} : vector<16x16xbf16>, vector<16x64xbf16>, vector<16x64xf32> -> vector<16x64xf32>
    %152 = arith.addf %104, %151 : vector<16x64xf32>
    %153 = vector.extract_strided_slice %5 {offsets = [0, 0, 3, 0, 0], sizes = [1, 1, 1, 64, 16], strides = [1, 1, 1, 1, 1]} : vector<1x3x4x64x16xbf16> to vector<1x1x1x64x16xbf16>
    %154 = vector.shape_cast %153 : vector<1x1x1x64x16xbf16> to vector<64x16xbf16>
    %cst_43 = arith.constant dense<0.000000e+00> : vector<16x16xf32>
    %155 = tpu.matmul %4, %154, %cst_43 {dimension_numbers = #tpu.dot_dimension_numbers<[1], [0], [0], [1], [0, 0, 1, 1], [], []>} : vector<16x64xbf16>, vector<64x16xbf16>, vector<16x16xf32> -> vector<16x16xf32>
    %156 = vector.extract_strided_slice %6 {offsets = [0, 0, 3, 0, 0], sizes = [1, 1, 1, 1, 16], strides = [1, 1, 1, 1, 1]} : vector<1x3x4x1x16xf32> to vector<1x1x1x1x16xf32>
    %157 = vector.shape_cast %156 : vector<1x1x1x1x16xf32> to vector<1x16xf32>
    %158 = vector.broadcast %157 : vector<1x16xf32> to vector<16x16xf32>
    %159 = arith.addf %155, %158 : vector<16x16xf32>
    %160 = vector.extract_strided_slice %5 {offsets = [0, 1, 3, 0, 0], sizes = [1, 1, 1, 64, 16], strides = [1, 1, 1, 1, 1]} : vector<1x3x4x64x16xbf16> to vector<1x1x1x64x16xbf16>
    %161 = vector.shape_cast %160 : vector<1x1x1x64x16xbf16> to vector<64x16xbf16>
    %cst_44 = arith.constant dense<0.000000e+00> : vector<16x16xf32>
    %162 = tpu.matmul %4, %161, %cst_44 {dimension_numbers = #tpu.dot_dimension_numbers<[1], [0], [0], [1], [0, 0, 1, 1], [], []>} : vector<16x64xbf16>, vector<64x16xbf16>, vector<16x16xf32> -> vector<16x16xf32>
    %163 = vector.extract_strided_slice %6 {offsets = [0, 1, 3, 0, 0], sizes = [1, 1, 1, 1, 16], strides = [1, 1, 1, 1, 1]} : vector<1x3x4x1x16xf32> to vector<1x1x1x1x16xf32>
    %164 = vector.shape_cast %163 : vector<1x1x1x1x16xf32> to vector<1x16xf32>
    %165 = vector.broadcast %164 : vector<1x16xf32> to vector<16x16xf32>
    %166 = arith.addf %162, %165 : vector<16x16xf32>
    %167 = vector.extract_strided_slice %5 {offsets = [0, 2, 3, 0, 0], sizes = [1, 1, 1, 64, 16], strides = [1, 1, 1, 1, 1]} : vector<1x3x4x64x16xbf16> to vector<1x1x1x64x16xbf16>
    %168 = vector.shape_cast %167 : vector<1x1x1x64x16xbf16> to vector<64x16xbf16>
    %cst_45 = arith.constant dense<0.000000e+00> : vector<16x16xf32>
    %169 = tpu.matmul %4, %168, %cst_45 {dimension_numbers = #tpu.dot_dimension_numbers<[1], [0], [0], [1], [0, 0, 1, 1], [], []>} : vector<16x64xbf16>, vector<64x16xbf16>, vector<16x16xf32> -> vector<16x16xf32>
    %170 = vector.extract_strided_slice %6 {offsets = [0, 2, 3, 0, 0], sizes = [1, 1, 1, 1, 16], strides = [1, 1, 1, 1, 1]} : vector<1x3x4x1x16xf32> to vector<1x1x1x1x16xf32>
    %171 = vector.shape_cast %170 : vector<1x1x1x1x16xf32> to vector<1x16xf32>
    %172 = vector.broadcast %171 : vector<1x16xf32> to vector<16x16xf32>
    %173 = arith.addf %169, %172 : vector<16x16xf32>
    %174 = vector.shape_cast %159 : vector<16x16xf32> to vector<2x8x16xf32>
    %175 = arith.truncf %174 : vector<2x8x16xf32> to vector<2x8x16xbf16>
    %176 = vector.shape_cast %166 : vector<16x16xf32> to vector<2x8x16xf32>
    %177 = arith.truncf %176 : vector<2x8x16xf32> to vector<2x8x16xbf16>
    %178 = vector.shape_cast %173 : vector<16x16xf32> to vector<2x8x16xf32>
    %179 = arith.truncf %178 : vector<2x8x16xf32> to vector<2x8x16xbf16>
    "tpu.trace_start"() <{level = 10 : i32, message = "bqd,bkd->bqk"}> : () -> ()
    %cst_46 = arith.constant dense<0.000000e+00> : vector<2x8x8xf32>
    %180 = tpu.matmul %175, %177, %cst_46 {dimension_numbers = #tpu.dot_dimension_numbers<[2], [2], [1], [1], [0, 0, 0, 1, 1, 1], [0], [0]>} : vector<2x8x16xbf16>, vector<2x8x16xbf16>, vector<2x8x8xf32> -> vector<2x8x8xf32>
    "tpu.trace_stop"() : () -> ()
    %cst_47 = arith.constant 2.500000e-01 : f32
    %181 = vector.broadcast %cst_47 : f32 to vector<2x8x8xf32>
    %182 = arith.mulf %180, %181 : vector<2x8x8xf32>
    %cst_48 = arith.constant dense<0xFF800000> : vector<2x8xf32>
    %183 = vector.multi_reduction <maximumf>, %182, %cst_48 [2] : vector<2x8x8xf32> to vector<2x8xf32>
    %184 = vector.shape_cast %183 : vector<2x8xf32> to vector<2x8x1xf32>
    %185 = vector.broadcast %184 : vector<2x8x1xf32> to vector<2x8x8xf32>
    %186 = arith.subf %182, %185 : vector<2x8x8xf32>
    %187 = math.exp %186 : vector<2x8x8xf32>
    %cst_49 = arith.constant dense<0.000000e+00> : vector<2x8xf32>
    %188 = vector.multi_reduction <add>, %187, %cst_49 [2] : vector<2x8x8xf32> to vector<2x8xf32>
    %189 = vector.shape_cast %188 : vector<2x8xf32> to vector<2x8x1xf32>
    %190 = tpu.reciprocal %189 {approx = true} : vector<2x8x1xf32> -> vector<2x8x1xf32>
    %191 = vector.broadcast %190 : vector<2x8x1xf32> to vector<2x8x8xf32>
    %192 = arith.mulf %187, %191 : vector<2x8x8xf32>
    %193 = arith.truncf %192 : vector<2x8x8xf32> to vector<2x8x8xbf16>
    "tpu.trace_start"() <{level = 10 : i32, message = "bqk,bkd->bqd"}> : () -> ()
    %cst_50 = arith.constant dense<0.000000e+00> : vector<2x8x16xf32>
    %194 = tpu.matmul %193, %179, %cst_50 {dimension_numbers = #tpu.dot_dimension_numbers<[2], [1], [1], [2], [0, 0, 0, 1, 1, 2], [0], [0]>} : vector<2x8x8xbf16>, vector<2x8x16xbf16>, vector<2x8x16xf32> -> vector<2x8x16xf32>
    "tpu.trace_stop"() : () -> ()
    %195 = vector.shape_cast %194 : vector<2x8x16xf32> to vector<16x16xf32>
    %196 = arith.truncf %195 : vector<16x16xf32> to vector<16x16xbf16>
    %197 = vector.extract_strided_slice %7 {offsets = [0, 3, 0, 0], sizes = [1, 1, 16, 64], strides = [1, 1, 1, 1]} : vector<1x4x16x64xbf16> to vector<1x1x16x64xbf16>
    %198 = vector.shape_cast %197 : vector<1x1x16x64xbf16> to vector<16x64xbf16>
    %cst_51 = arith.constant dense<0.000000e+00> : vector<16x64xf32>
    %199 = tpu.matmul %196, %198, %cst_51 {dimension_numbers = #tpu.dot_dimension_numbers<[1], [0], [0], [1], [0, 0, 1, 1], [], []>} : vector<16x16xbf16>, vector<16x64xbf16>, vector<16x64xf32> -> vector<16x64xf32>
    %200 = arith.addf %152, %199 : vector<16x64xf32>
    %c0_52 = arith.constant 0 : index
    %c0_53 = arith.constant 0 : index
    %c0_54 = arith.constant 0 : index
    %201 = vector.load %arg8[%c0_52, %c0_53, %c0_54] : memref<1x1x64xf32, #tpu.memory_space<vmem>>, vector<1x1x64xf32>
    %202 = vector.shape_cast %201 : vector<1x1x64xf32> to vector<1x64xf32>
    %203 = vector.broadcast %202 : vector<1x64xf32> to vector<16x64xf32>
    %204 = arith.addf %200, %203 : vector<16x64xf32>
    %205 = arith.addf %3, %204 : vector<16x64xf32>
    %c0_55 = arith.constant 0 : index
    %c0_56 = arith.constant 0 : index
    %c0_57 = arith.constant 0 : index
    %206 = vector.load %arg9[%c0_55, %c0_56, %c0_57] : memref<1x1x64xf32, #tpu.memory_space<vmem>>, vector<1x1x64xf32>
    %207 = vector.shape_cast %206 : vector<1x1x64xf32> to vector<1x64xf32>
    %c0_58 = arith.constant 0 : index
    %c0_59 = arith.constant 0 : index
    %c0_60 = arith.constant 0 : index
    %208 = vector.load %arg10[%c0_58, %c0_59, %c0_60] : memref<1x1x64xf32, #tpu.memory_space<vmem>>, vector<1x1x64xf32>
    %209 = vector.shape_cast %208 : vector<1x1x64xf32> to vector<1x64xf32>
    %cst_61 = arith.constant dense<0.000000e+00> : vector<16xf32>
    %210 = vector.multi_reduction <add>, %205, %cst_61 [1] : vector<16x64xf32> to vector<16xf32>
    %211 = vector.shape_cast %210 : vector<16xf32> to vector<16x1xf32>
    %cst_62 = arith.constant 6.400000e+01 : f32
    %212 = vector.broadcast %cst_62 : f32 to vector<16x1xf32>
    %213 = arith.divf %211, %212 : vector<16x1xf32>
    %214 = vector.broadcast %213 : vector<16x1xf32> to vector<16x64xf32>
    %215 = arith.subf %205, %214 : vector<16x64xf32>
    %216 = arith.mulf %215, %215 : vector<16x64xf32>
    %cst_63 = arith.constant dense<0.000000e+00> : vector<16xf32>
    %217 = vector.multi_reduction <add>, %216, %cst_63 [1] : vector<16x64xf32> to vector<16xf32>
    %218 = vector.shape_cast %217 : vector<16xf32> to vector<16x1xf32>
    %cst_64 = arith.constant 6.400000e+01 : f32
    %219 = vector.broadcast %cst_64 : f32 to vector<16x1xf32>
    %220 = arith.divf %218, %219 : vector<16x1xf32>
    %221 = vector.broadcast %213 : vector<16x1xf32> to vector<16x64xf32>
    %222 = arith.subf %205, %221 : vector<16x64xf32>
    %cst_65 = arith.constant 9.99999974E-6 : f32
    %223 = vector.broadcast %cst_65 : f32 to vector<16x1xf32>
    %224 = arith.addf %220, %223 : vector<16x1xf32>
    %225 = math.rsqrt %224 : vector<16x1xf32>
    %226 = vector.broadcast %225 : vector<16x1xf32> to vector<16x64xf32>
    %227 = arith.mulf %222, %226 : vector<16x64xf32>
    %228 = vector.broadcast %207 : vector<1x64xf32> to vector<16x64xf32>
    %229 = arith.mulf %227, %228 : vector<16x64xf32>
    %230 = vector.broadcast %209 : vector<1x64xf32> to vector<16x64xf32>
    %231 = arith.addf %229, %230 : vector<16x64xf32>
    %232 = arith.truncf %231 : vector<16x64xf32> to vector<16x64xbf16>
    %c0_66 = arith.constant 0 : index
    %c0_67 = arith.constant 0 : index
    %c0_68 = arith.constant 0 : index
    %233 = vector.load %arg11[%c0_66, %c0_67, %c0_68] : memref<1x64x2048xbf16, #tpu.memory_space<vmem>>, vector<1x64x2048xbf16>
    %234 = vector.shape_cast %233 : vector<1x64x2048xbf16> to vector<64x2048xbf16>
    %cst_69 = arith.constant dense<0.000000e+00> : vector<16x2048xf32>
    %235 = tpu.matmul %232, %234, %cst_69 {dimension_numbers = #tpu.dot_dimension_numbers<[1], [0], [0], [1], [0, 0, 1, 1], [], []>} : vector<16x64xbf16>, vector<64x2048xbf16>, vector<16x2048xf32> -> vector<16x2048xf32>
    %c0_70 = arith.constant 0 : index
    %c0_71 = arith.constant 0 : index
    %c0_72 = arith.constant 0 : index
    %236 = vector.load %arg12[%c0_70, %c0_71, %c0_72] : memref<1x1x2048xf32, #tpu.memory_space<vmem>>, vector<1x1x2048xf32>
    %237 = vector.shape_cast %236 : vector<1x1x2048xf32> to vector<1x2048xf32>
    %238 = vector.broadcast %237 : vector<1x2048xf32> to vector<16x2048xf32>
    %239 = arith.addf %235, %238 : vector<16x2048xf32>
    %cst_73 = arith.constant 0.000000e+00 : f32
    %240 = vector.broadcast %cst_73 : f32 to vector<16x2048xf32>
    %241 = arith.maximumf %239, %240 : vector<16x2048xf32>
    %242 = arith.truncf %241 : vector<16x2048xf32> to vector<16x2048xbf16>
    %c0_74 = arith.constant 0 : index
    %c0_75 = arith.constant 0 : index
    %c0_76 = arith.constant 0 : index
    %243 = vector.load %arg13[%c0_74, %c0_75, %c0_76] : memref<1x2048x64xbf16, #tpu.memory_space<vmem>>, vector<1x2048x64xbf16>
    %244 = vector.shape_cast %243 : vector<1x2048x64xbf16> to vector<2048x64xbf16>
    %cst_77 = arith.constant dense<0.000000e+00> : vector<16x64xf32>
    %245 = tpu.matmul %242, %244, %cst_77 {dimension_numbers = #tpu.dot_dimension_numbers<[1], [0], [0], [1], [0, 0, 1, 1], [], []>} : vector<16x2048xbf16>, vector<2048x64xbf16>, vector<16x64xf32> -> vector<16x64xf32>
    %c0_78 = arith.constant 0 : index
    %c0_79 = arith.constant 0 : index
    %c0_80 = arith.constant 0 : index
    %246 = vector.load %arg14[%c0_78, %c0_79, %c0_80] : memref<1x1x64xf32, #tpu.memory_space<vmem>>, vector<1x1x64xf32>
    %247 = vector.shape_cast %246 : vector<1x1x64xf32> to vector<1x64xf32>
    %248 = vector.broadcast %247 : vector<1x64xf32> to vector<16x64xf32>
    %249 = arith.addf %245, %248 : vector<16x64xf32>
    %250 = arith.addf %231, %249 : vector<16x64xf32>
    %c0_81 = arith.constant 0 : index
    %c0_82 = arith.constant 0 : index
    %c0_83 = arith.constant 0 : index
    %251 = vector.load %arg15[%c0_81, %c0_82, %c0_83] : memref<1x1x64xf32, #tpu.memory_space<vmem>>, vector<1x1x64xf32>
    %252 = vector.shape_cast %251 : vector<1x1x64xf32> to vector<1x64xf32>
    %c0_84 = arith.constant 0 : index
    %c0_85 = arith.constant 0 : index
    %c0_86 = arith.constant 0 : index
    %253 = vector.load %arg16[%c0_84, %c0_85, %c0_86] : memref<1x1x64xf32, #tpu.memory_space<vmem>>, vector<1x1x64xf32>
    %254 = vector.shape_cast %253 : vector<1x1x64xf32> to vector<1x64xf32>
    %cst_87 = arith.constant dense<0.000000e+00> : vector<16xf32>
    %255 = vector.multi_reduction <add>, %250, %cst_87 [1] : vector<16x64xf32> to vector<16xf32>
    %256 = vector.shape_cast %255 : vector<16xf32> to vector<16x1xf32>
    %cst_88 = arith.constant 6.400000e+01 : f32
    %257 = vector.broadcast %cst_88 : f32 to vector<16x1xf32>
    %258 = arith.divf %256, %257 : vector<16x1xf32>
    %259 = vector.broadcast %258 : vector<16x1xf32> to vector<16x64xf32>
    %260 = arith.subf %250, %259 : vector<16x64xf32>
    %261 = arith.mulf %260, %260 : vector<16x64xf32>
    %cst_89 = arith.constant dense<0.000000e+00> : vector<16xf32>
    %262 = vector.multi_reduction <add>, %261, %cst_89 [1] : vector<16x64xf32> to vector<16xf32>
    %263 = vector.shape_cast %262 : vector<16xf32> to vector<16x1xf32>
    %cst_90 = arith.constant 6.400000e+01 : f32
    %264 = vector.broadcast %cst_90 : f32 to vector<16x1xf32>
    %265 = arith.divf %263, %264 : vector<16x1xf32>
    %266 = vector.broadcast %258 : vector<16x1xf32> to vector<16x64xf32>
    %267 = arith.subf %250, %266 : vector<16x64xf32>
    %cst_91 = arith.constant 9.99999974E-6 : f32
    %268 = vector.broadcast %cst_91 : f32 to vector<16x1xf32>
    %269 = arith.addf %265, %268 : vector<16x1xf32>
    %270 = math.rsqrt %269 : vector<16x1xf32>
    %271 = vector.broadcast %270 : vector<16x1xf32> to vector<16x64xf32>
    %272 = arith.mulf %267, %271 : vector<16x64xf32>
    %273 = vector.broadcast %252 : vector<1x64xf32> to vector<16x64xf32>
    %274 = arith.mulf %272, %273 : vector<16x64xf32>
    %275 = vector.broadcast %254 : vector<1x64xf32> to vector<16x64xf32>
    %276 = arith.addf %274, %275 : vector<16x64xf32>
    %c0_92 = arith.constant 0 : index
    %c0_93 = arith.constant 0 : index
    %277 = vector.load %arg20[%c0_92, %c0_93] : memref<16x64xf32, #tpu.memory_space<vmem>>, vector<16x64xf32>
    tpu.vector_store %arg20[%c0_92, %c0_93], %276 {strides = array<i32>} : memref<16x64xf32, #tpu.memory_space<vmem>>, vector<16x64xf32>,
    %c1_i32 = arith.constant 1 : i32
    %278 = arith.cmpi eq, %arg1, %c1_i32 : i32
    %279 = arith.extui %278 : i1 to i32
    %c0_i32_94 = arith.constant 0 : i32
    %280 = arith.cmpi ne, %279, %c0_i32_94 : i32
    scf.if %280 {
      %281 = vector.shape_cast %276 : vector<16x64xf32> to vector<2x8x64xf32>
      %282 = vector.extract_strided_slice %281 {offsets = [0, 7, 0], sizes = [2, 1, 64], strides = [1, 1, 1]} : vector<2x8x64xf32> to vector<2x1x64xf32>
      %283 = vector.shape_cast %282 : vector<2x1x64xf32> to vector<2x64xf32>
      %c0_95 = arith.constant 0 : index
      %c0_96 = arith.constant 0 : index
      %284 = vector.load %arg17[%c0_95, %c0_96] : memref<1x64xf32, #tpu.memory_space<vmem>>, vector<1x64xf32>
      %285 = vector.broadcast %284 : vector<1x64xf32> to vector<2x64xf32>
      %286 = arith.mulf %283, %285 : vector<2x64xf32>
      %cst_97 = arith.constant dense<0.000000e+00> : vector<2xf32>
      %287 = vector.multi_reduction <add>, %286, %cst_97 [1] : vector<2x64xf32> to vector<2xf32>
      %288 = vector.shape_cast %287 : vector<2xf32> to vector<2x1xf32>
      %c0_98 = arith.constant 0 : index
      %c0_99 = arith.constant 0 : index
      %289 = vector.load %arg18[%c0_98, %c0_99] : memref<1x1xf32, #tpu.memory_space<vmem>>, vector<1x1xf32>
      %290 = vector.broadcast %289 : vector<1x1xf32> to vector<2x1xf32>
      %291 = arith.addf %288, %290 : vector<2x1xf32>
      %c0_100 = arith.constant 0 : index
      %c0_101 = arith.constant 0 : index
      %292 = vector.load %arg19[%c0_100, %c0_101] : memref<2x1xf32, #tpu.memory_space<vmem>>, vector<2x1xf32>
      tpu.vector_store %arg19[%c0_100, %c0_101], %291 {strides = array<i32>} : memref<2x1xf32, #tpu.memory_space<vmem>>, vector<2x1xf32>,
    } else {
    }
    return
  }
  func.func @transform_0(%arg0: i32, %arg1: i32) -> (i32, i32, i32) {
    %c0_i32 = arith.constant 0 : i32
    %c0_i32_0 = arith.constant 0 : i32
    %c0_i32_1 = arith.constant 0 : i32
    return %arg0, %c0_i32, %c0_i32_0 : i32, i32, i32
  }
  func.func @transform_1(%arg0: i32, %arg1: i32) -> (i32, i32, i32) {
    %c0_i32 = arith.constant 0 : i32
    %c0_i32_0 = arith.constant 0 : i32
    %c0_i32_1 = arith.constant 0 : i32
    %c0_i32_2 = arith.constant 0 : i32
    return %c0_i32, %c0_i32_0, %c0_i32_1 : i32, i32, i32
  }
  func.func @transform_2(%arg0: i32, %arg1: i32) -> (i32, i32, i32) {
    %c0_i32 = arith.constant 0 : i32
    %c0_i32_0 = arith.constant 0 : i32
    %c0_i32_1 = arith.constant 0 : i32
    %c0_i32_2 = arith.constant 0 : i32
    return %c0_i32, %c0_i32_0, %c0_i32_1 : i32, i32, i32
  }
  func.func @transform_3(%arg0: i32, %arg1: i32) -> (i32, i32, i32, i32, i32) {
    %c0_i32 = arith.constant 0 : i32
    %c0_i32_0 = arith.constant 0 : i32
    %c0_i32_1 = arith.constant 0 : i32
    %c0_i32_2 = arith.constant 0 : i32
    %c0_i32_3 = arith.constant 0 : i32
    return %arg1, %c0_i32, %c0_i32_0, %c0_i32_1, %c0_i32_2 : i32, i32, i32, i32, i32
  }
  func.func @transform_4(%arg0: i32, %arg1: i32) -> (i32, i32, i32, i32, i32) {
    %c0_i32 = arith.constant 0 : i32
    %c0_i32_0 = arith.constant 0 : i32
    %c0_i32_1 = arith.constant 0 : i32
    %c0_i32_2 = arith.constant 0 : i32
    %c0_i32_3 = arith.constant 0 : i32
    return %arg1, %c0_i32, %c0_i32_0, %c0_i32_1, %c0_i32_2 : i32, i32, i32, i32, i32
  }
  func.func @transform_5(%arg0: i32, %arg1: i32) -> (i32, i32, i32, i32) {
    %c0_i32 = arith.constant 0 : i32
    %c0_i32_0 = arith.constant 0 : i32
    %c0_i32_1 = arith.constant 0 : i32
    %c0_i32_2 = arith.constant 0 : i32
    return %arg1, %c0_i32, %c0_i32_0, %c0_i32_1 : i32, i32, i32, i32
  }
  func.func @transform_6(%arg0: i32, %arg1: i32) -> (i32, i32, i32) {
    %c0_i32 = arith.constant 0 : i32
    %c0_i32_0 = arith.constant 0 : i32
    %c0_i32_1 = arith.constant 0 : i32
    return %arg1, %c0_i32, %c0_i32_0 : i32, i32, i32
  }
  func.func @transform_7(%arg0: i32, %arg1: i32) -> (i32, i32, i32) {
    %c0_i32 = arith.constant 0 : i32
    %c0_i32_0 = arith.constant 0 : i32
    %c0_i32_1 = arith.constant 0 : i32
    return %arg1, %c0_i32, %c0_i32_0 : i32, i32, i32
  }
  func.func @transform_8(%arg0: i32, %arg1: i32) -> (i32, i32, i32) {
    %c0_i32 = arith.constant 0 : i32
    %c0_i32_0 = arith.constant 0 : i32
    %c0_i32_1 = arith.constant 0 : i32
    return %arg1, %c0_i32, %c0_i32_0 : i32, i32, i32
  }
  func.func @transform_9(%arg0: i32, %arg1: i32) -> (i32, i32, i32) {
    %c0_i32 = arith.constant 0 : i32
    %c0_i32_0 = arith.constant 0 : i32
    %c0_i32_1 = arith.constant 0 : i32
    return %arg1, %c0_i32, %c0_i32_0 : i32, i32, i32
  }
  func.func @transform_10(%arg0: i32, %arg1: i32) -> (i32, i32, i32) {
    %c0_i32 = arith.constant 0 : i32
    %c0_i32_0 = arith.constant 0 : i32
    %c0_i32_1 = arith.constant 0 : i32
    return %arg1, %c0_i32, %c0_i32_0 : i32, i32, i32
  }
  func.func @transform_11(%arg0: i32, %arg1: i32) -> (i32, i32, i32) {
    %c0_i32 = arith.constant 0 : i32
    %c0_i32_0 = arith.constant 0 : i32
    %c0_i32_1 = arith.constant 0 : i32
    return %arg1, %c0_i32, %c0_i32_0 : i32, i32, i32
  }
  func.func @transform_12(%arg0: i32, %arg1: i32) -> (i32, i32, i32) {
    %c0_i32 = arith.constant 0 : i32
    %c0_i32_0 = arith.constant 0 : i32
    %c0_i32_1 = arith.constant 0 : i32
    return %arg1, %c0_i32, %c0_i32_0 : i32, i32, i32
  }
  func.func @transform_13(%arg0: i32, %arg1: i32) -> (i32, i32, i32) {
    %c0_i32 = arith.constant 0 : i32
    %c0_i32_0 = arith.constant 0 : i32
    %c0_i32_1 = arith.constant 0 : i32
    return %arg1, %c0_i32, %c0_i32_0 : i32, i32, i32
  }
  func.func @transform_14(%arg0: i32, %arg1: i32) -> (i32, i32, i32) {
    %c0_i32 = arith.constant 0 : i32
    %c0_i32_0 = arith.constant 0 : i32
    %c0_i32_1 = arith.constant 0 : i32
    return %arg1, %c0_i32, %c0_i32_0 : i32, i32, i32
  }
  func.func @transform_15(%arg0: i32, %arg1: i32) -> (i32, i32) {
    %c0_i32 = arith.constant 0 : i32
    %c0_i32_0 = arith.constant 0 : i32
    %c0_i32_1 = arith.constant 0 : i32
    return %c0_i32, %c0_i32_0 : i32, i32
  }
  func.func @transform_16(%arg0: i32, %arg1: i32) -> (i32, i32) {
    %c0_i32 = arith.constant 0 : i32
    %c0_i32_0 = arith.constant 0 : i32
    %c0_i32_1 = arith.constant 0 : i32
    return %c0_i32, %c0_i32_0 : i32, i32
  }
  func.func @transform_17(%arg0: i32, %arg1: i32) -> (i32, i32) {
    %c0_i32 = arith.constant 0 : i32
    %c0_i32_0 = arith.constant 0 : i32
    return %arg0, %c0_i32 : i32, i32
  }
}

</mosaic_0001>

<llo_original>
// kernel: tpu_custom_call.1
$region0: #{tpu_custom_call.1}
  #allocation0 [shape = 'u32[]', space=smem, size = 0x4, offset = 0x4, fixed_abs, tag = 'smem constant byte address 0x4 - core index']
  #allocation1 [shape = 'u32[144,128]{1,0:T(1,128)}', space=vmem, size = 0x12000, scoped, tag = 'internal scratch']
  #allocation2 [shape = 'f32[16,64]{1,0:T(8,128)}', space=vmem, size = 0x2000, scoped, tag = 'scratch operand']
  #allocation3 [shape = 'f32[1,1]{1,0:T(1,128)S(1)}', space=vmem, size = 0x200, scoped, tag = 'scoped memory for tpu_custom_call.1']
  %s0 = inlined_call_operand.vmem [shape: f32[2,8,1], index: 0, kind: input, shape index: {}]
  %s1 = inlined_call_operand.vmem [shape: f32[1,1,64], index: 1, kind: input, shape index: {}]
  %s2 = inlined_call_operand.vmem [shape: f32[1,1,64], index: 2, kind: input, shape index: {}]
  %s3 = inlined_call_operand.vmem [shape: bf16[2,3,4,64,16], index: 3, kind: input, shape index: {}]
  %s4 = inlined_call_operand.vmem [shape: f32[2,3,4,1,16], index: 4, kind: input, shape index: {}]
  %s5 = inlined_call_operand.vmem [shape: bf16[2,4,16,64], index: 5, kind: input, shape index: {}]
  %s6 = inlined_call_operand.vmem [shape: f32[2,1,64], index: 6, kind: input, shape index: {}]
  %s7 = inlined_call_operand.vmem [shape: f32[2,1,64], index: 7, kind: input, shape index: {}]
  %s8 = inlined_call_operand.vmem [shape: f32[2,1,64], index: 8, kind: input, shape index: {}]
  %s9 = inlined_call_operand.vmem [shape: bf16[2,64,2048], index: 9, kind: input, shape index: {}]
  %s10 = inlined_call_operand.vmem [shape: f32[2,1,2048], index: 10, kind: input, shape index: {}]
  %s11 = inlined_call_operand.vmem [shape: bf16[2,2048,64], index: 11, kind: input, shape index: {}]
  %s12 = inlined_call_operand.vmem [shape: f32[2,1,64], index: 12, kind: input, shape index: {}]
  %s13 = inlined_call_operand.vmem [shape: f32[2,1,64], index: 13, kind: input, shape index: {}]
  %s14 = inlined_call_operand.vmem [shape: f32[2,1,64], index: 14, kind: input, shape index: {}]
  %s15 = inlined_call_operand.vmem [shape: f32[1,64], index: 15, kind: input, shape index: {}]
  %s16 = inlined_call_operand.<no memory space> [shape: f32[1,1], index: 16, kind: input, shape index: {}]
  %s17 = inlined_call_operand.vmem [shape: f32[2,1], index: 17, kind: output, shape index: {}]
  %s18 = sld [smem:[#allocation0]]
  $region109: #{tpu_custom_call.1} parent=0
    _
  %s20 = ssub.s32 1, %s18
  %s21 = scalar_select 0, %s20, %s18
  %v22 = vstv %s16
  %23 = vst [vmem:[#allocation3] sm:$0x1] %v22
  loop: start=0, step=1, limit=4
  $region2: #{tpu_custom_call.1} parent=0 // loop_pre_header
    _
  $region3: #{tpu_custom_call.1} parent=0 // loop_header
    %s25 = sphi 0, %s29
    %p26 = scmp.ge.s32.totalorder %s25, 4
    %s32 = sphi 0, %s44
    %s33 = sphi 0, %s40
    %s34 = sphi 0, %s32
    %s35 = sphi 0, %s33
    %s36 = sphi 0, %s34
    %s37 = sphi 0, %s35
    %s47 = sphi 0, %s49
    %s50 = sphi 0, %s47
    %s51 = sphi 0, %s50
    %s67 = sphi 0, %s51
    %s71 = sphi 0, %s71
    %s73 = sphi 0, %s71
    %s74 = sphi 0, %s73
    %s88 = sphi 0, %s74
    %s92 = sphi 0, %s92
    %s94 = sphi 0, %s92
    %s95 = sphi 0, %s94
    %s109 = sphi 0, %s95
    %s115 = sphi 0, %s117
    %s118 = sphi 0, %s115
    %s119 = sphi 0, %s118
    %s135 = sphi 0, %s119
    %s141 = sphi 0, %s143
    %s144 = sphi 0, %s141
    %s145 = sphi 0, %s144
    %s161 = sphi 0, %s145
    %s167 = sphi 0, %s169
    %s170 = sphi 0, %s167
    %s171 = sphi 0, %s170
    %s187 = sphi 0, %s171
    %s193 = sphi 0, %s195
    %s196 = sphi 0, %s193
    %s197 = sphi 0, %s196
    %s213 = sphi 0, %s197
    %s219 = sphi 0, %s221
    %s222 = sphi 0, %s219
    %s223 = sphi 0, %s222
    %s239 = sphi 0, %s223
    %s245 = sphi 0, %s247
    %s248 = sphi 0, %s245
    %s249 = sphi 0, %s248
    %s265 = sphi 0, %s249
    %s271 = sphi 0, %s273
    %s274 = sphi 0, %s271
    %s275 = sphi 0, %s274
    %s291 = sphi 0, %s275
    %s297 = sphi 0, %s299
    %s300 = sphi 0, %s297
    %s301 = sphi 0, %s300
    %s317 = sphi 0, %s301
    %s323 = sphi 0, %s325
    %s326 = sphi 0, %s323
    %s327 = sphi 0, %s326
    %s343 = sphi 0, %s327
    %s349 = sphi 0, %s351
    %s352 = sphi 0, %s349
    %s353 = sphi 0, %s352
    %s369 = sphi 0, %s353
    %s375 = sphi 0, %s377
    %s378 = sphi 0, %s375
    %s379 = sphi 0, %s378
    %s395 = sphi 0, %s379
    %s401 = sphi 0, %s403
    %s404 = sphi 0, %s401
    %s405 = sphi 0, %s404
    %s421 = sphi 0, %s405
    %s425 = sphi 0, %s425
    %s427 = sphi 0, %s425
    %s428 = sphi 0, %s427
    %s442 = sphi 0, %s428
    %s446 = sphi 0, %s446
    %s448 = sphi 0, %s446
    %s449 = sphi 0, %s448
    %s463 = sphi 0, %s449
    %s469 = sphi 0, %s471
    %s472 = sphi 0, %s469
    %s473 = sphi 0, %s472
    %s489 = sphi 0, %s473
  $region4: #{tpu_custom_call.1} parent=0 // loop_header_branch
    %28 = sbr.rel (%p26) target = $region8
  $region5: #{tpu_custom_call.1} parent=0 // loop_body
    %s30 = ssub.s32 %s25, 1
    %s31 = ssub.s32 %s25, 2
    %s38 = sadd.s32 1, %s33
    %p39 = scmp.ge.s32.totalorder %s38, 2
    %s40 = scalar_select %p39, 0, %s38
    %s41 = sadd.s32 1, %s32
    %s42 = scalar_select %p39, %s41, %s32
    %p43 = scmp.ge.s32.totalorder %s42, 1
    %s44 = scalar_select %p43, 0, %s42
    %s45 = ssub.s32 %s32, %s44
    %p46 = scmp.eq.s32.totalorder %s45, 0
    %s48 = sadd.s32 %s47, 1
    %s49 = scalar_select %p46, %s47, %s48
    %p52 = pneg %p46
    %p53 = scmp.eq.s32.totalorder %s25, 1
    %p54 = por %p52, %p53
    %p55 = scmp.ne.s32.totalorder %s47, %s50
    %p56 = scmp.eq.s32.totalorder %s25, 0
    %p57 = por %p55, %p56
    %p58 = scmp.ne.s32.totalorder %s47, %s50
    %p59 = scmp.eq.s32.totalorder %s30, 1
    %p60 = por %p58, %p59
    %p61 = scmp.ne.s32.totalorder %s50, %s51
    %p62 = scmp.eq.s32.totalorder %s30, 0
    %p63 = por %p61, %p62
    %p64 = scmp.ne.s32.totalorder %s50, %s51
    %p65 = scmp.eq.s32.totalorder %s31, 1
    %p66 = por %p64, %p65
    %p68 = scmp.ne.s32.totalorder %s51, %s67
    %p69 = scmp.eq.s32.totalorder %s31, 0
    %p70 = por %p68, %p69
    %s72 = sadd.s32 %s71, 1
    %p75 = scmp.eq.s32.totalorder %s25, 1
    %p76 = scmp.ne.s32.totalorder %s71, %s73
    %p77 = scmp.eq.s32.totalorder %s25, 0
    %p78 = por %p76, %p77
    %p79 = scmp.ne.s32.totalorder %s71, %s73
    %p80 = scmp.eq.s32.totalorder %s30, 1
    %p81 = por %p79, %p80
    %p82 = scmp.ne.s32.totalorder %s73, %s74
    %p83 = scmp.eq.s32.totalorder %s30, 0
    %p84 = por %p82, %p83
    %p85 = scmp.ne.s32.totalorder %s73, %s74
    %p86 = scmp.eq.s32.totalorder %s31, 1
    %p87 = por %p85, %p86
    %p89 = scmp.ne.s32.totalorder %s74, %s88
    %p90 = scmp.eq.s32.totalorder %s31, 0
    %p91 = por %p89, %p90
    %s93 = sadd.s32 %s92, 1
    %p96 = scmp.eq.s32.totalorder %s25, 1
    %p97 = scmp.ne.s32.totalorder %s92, %s94
    %p98 = scmp.eq.s32.totalorder %s25, 0
    %p99 = por %p97, %p98
    %p100 = scmp.ne.s32.totalorder %s92, %s94
    %p101 = scmp.eq.s32.totalorder %s30, 1
    %p102 = por %p100, %p101
    %p103 = scmp.ne.s32.totalorder %s94, %s95
    %p104 = scmp.eq.s32.totalorder %s30, 0
    %p105 = por %p103, %p104
    %p106 = scmp.ne.s32.totalorder %s94, %s95
    %p107 = scmp.eq.s32.totalorder %s31, 1
    %p108 = por %p106, %p107
    %p110 = scmp.ne.s32.totalorder %s95, %s109
    %p111 = scmp.eq.s32.totalorder %s31, 0
    %p112 = por %p110, %p111
    %s113 = ssub.s32 %s33, %s40
    %p114 = scmp.eq.s32.totalorder %s113, 0
    %s116 = sadd.s32 %s115, 1
    %s117 = scalar_select %p114, %s115, %s116
    %p120 = pneg %p114
    %p121 = scmp.eq.s32.totalorder %s25, 1
    %p122 = por %p120, %p121
    %p123 = scmp.ne.s32.totalorder %s115, %s118
    %p124 = scmp.eq.s32.totalorder %s25, 0
    %p125 = por %p123, %p124
    %p126 = scmp.ne.s32.totalorder %s115, %s118
    %p127 = scmp.eq.s32.totalorder %s30, 1
    %p128 = por %p126, %p127
    %p129 = scmp.ne.s32.totalorder %s118, %s119
    %p130 = scmp.eq.s32.totalorder %s30, 0
    %p131 = por %p129, %p130
    %p132 = scmp.ne.s32.totalorder %s118, %s119
    %p133 = scmp.eq.s32.totalorder %s31, 1
    %p134 = por %p132, %p133
    %p136 = scmp.ne.s32.totalorder %s119, %s135
    %p137 = scmp.eq.s32.totalorder %s31, 0
    %p138 = por %p136, %p137
    %s139 = ssub.s32 %s33, %s40
    %p140 = scmp.eq.s32.totalorder %s139, 0
    %s142 = sadd.s32 %s141, 1
    %s143 = scalar_select %p140, %s141, %s142
    %p146 = pneg %p140
    %p147 = scmp.eq.s32.totalorder %s25, 1
    %p148 = por %p146, %p147
    %p149 = scmp.ne.s32.totalorder %s141, %s144
    %p150 = scmp.eq.s32.totalorder %s25, 0
    %p151 = por %p149, %p150
    %p152 = scmp.ne.s32.totalorder %s141, %s144
    %p153 = scmp.eq.s32.totalorder %s30, 1
    %p154 = por %p152, %p153
    %p155 = scmp.ne.s32.totalorder %s144, %s145
    %p156 = scmp.eq.s32.totalorder %s30, 0
    %p157 = por %p155, %p156
    %p158 = scmp.ne.s32.totalorder %s144, %s145
    %p159 = scmp.eq.s32.totalorder %s31, 1
    %p160 = por %p158, %p159
    %p162 = scmp.ne.s32.totalorder %s145, %s161
    %p163 = scmp.eq.s32.totalorder %s31, 0
    %p164 = por %p162, %p163
    %s165 = ssub.s32 %s33, %s40
    %p166 = scmp.eq.s32.totalorder %s165, 0
    %s168 = sadd.s32 %s167, 1
    %s169 = scalar_select %p166, %s167, %s168
    %p172 = pneg %p166
    %p173 = scmp.eq.s32.totalorder %s25, 1
    %p174 = por %p172, %p173
    %p175 = scmp.ne.s32.totalorder %s167, %s170
    %p176 = scmp.eq.s32.totalorder %s25, 0
    %p177 = por %p175, %p176
    %p178 = scmp.ne.s32.totalorder %s167, %s170
    %p179 = scmp.eq.s32.totalorder %s30, 1
    %p180 = por %p178, %p179
    %p181 = scmp.ne.s32.totalorder %s170, %s171
    %p182 = scmp.eq.s32.totalorder %s30, 0
    %p183 = por %p181, %p182
    %p184 = scmp.ne.s32.totalorder %s170, %s171
    %p185 = scmp.eq.s32.totalorder %s31, 1
    %p186 = por %p184, %p185
    %p188 = scmp.ne.s32.totalorder %s171, %s187
    %p189 = scmp.eq.s32.totalorder %s31, 0
    %p190 = por %p188, %p189
    %s191 = ssub.s32 %s33, %s40
    %p192 = scmp.eq.s32.totalorder %s191, 0
    %s194 = sadd.s32 %s193, 1
    %s195 = scalar_select %p192, %s193, %s194
    %p198 = pneg %p192
    %p199 = scmp.eq.s32.totalorder %s25, 1
    %p200 = por %p198, %p199
    %p201 = scmp.ne.s32.totalorder %s193, %s196
    %p202 = scmp.eq.s32.totalorder %s25, 0
    %p203 = por %p201, %p202
    %p204 = scmp.ne.s32.totalorder %s193, %s196
    %p205 = scmp.eq.s32.totalorder %s30, 1
    %p206 = por %p204, %p205
    %p207 = scmp.ne.s32.totalorder %s196, %s197
    %p208 = scmp.eq.s32.totalorder %s30, 0
    %p209 = por %p207, %p208
    %p210 = scmp.ne.s32.totalorder %s196, %s197
    %p211 = scmp.eq.s32.totalorder %s31, 1
    %p212 = por %p210, %p211
    %p214 = scmp.ne.s32.totalorder %s197, %s213
    %p215 = scmp.eq.s32.totalorder %s31, 0
    %p216 = por %p214, %p215
    %s217 = ssub.s32 %s33, %s40
    %p218 = scmp.eq.s32.totalorder %s217, 0
    %s220 = sadd.s32 %s219, 1
    %s221 = scalar_select %p218, %s219, %s220
    %p224 = pneg %p218
    %p225 = scmp.eq.s32.totalorder %s25, 1
    %p226 = por %p224, %p225
    %p227 = scmp.ne.s32.totalorder %s219, %s222
    %p228 = scmp.eq.s32.totalorder %s25, 0
    %p229 = por %p227, %p228
    %p230 = scmp.ne.s32.totalorder %s219, %s222
    %p231 = scmp.eq.s32.totalorder %s30, 1
    %p232 = por %p230, %p231
    %p233 = scmp.ne.s32.totalorder %s222, %s223
    %p234 = scmp.eq.s32.totalorder %s30, 0
    %p235 = por %p233, %p234
    %p236 = scmp.ne.s32.totalorder %s222, %s223
    %p237 = scmp.eq.s32.totalorder %s31, 1
    %p238 = por %p236, %p237
    %p240 = scmp.ne.s32.totalorder %s223, %s239
    %p241 = scmp.eq.s32.totalorder %s31, 0
    %p242 = por %p240, %p241
    %s243 = ssub.s32 %s33, %s40
    %p244 = scmp.eq.s32.totalorder %s243, 0
    %s246 = sadd.s32 %s245, 1
    %s247 = scalar_select %p244, %s245, %s246
    %p250 = pneg %p244
    %p251 = scmp.eq.s32.totalorder %s25, 1
    %p252 = por %p250, %p251
    %p253 = scmp.ne.s32.totalorder %s245, %s248
    %p254 = scmp.eq.s32.totalorder %s25, 0
    %p255 = por %p253, %p254
    %p256 = scmp.ne.s32.totalorder %s245, %s248
    %p257 = scmp.eq.s32.totalorder %s30, 1
    %p258 = por %p256, %p257
    %p259 = scmp.ne.s32.totalorder %s248, %s249
    %p260 = scmp.eq.s32.totalorder %s30, 0
    %p261 = por %p259, %p260
    %p262 = scmp.ne.s32.totalorder %s248, %s249
    %p263 = scmp.eq.s32.totalorder %s31, 1
    %p264 = por %p262, %p263
    %p266 = scmp.ne.s32.totalorder %s249, %s265
    %p267 = scmp.eq.s32.totalorder %s31, 0
    %p268 = por %p266, %p267
    %s269 = ssub.s32 %s33, %s40
    %p270 = scmp.eq.s32.totalorder %s269, 0
    %s272 = sadd.s32 %s271, 1
    %s273 = scalar_select %p270, %s271, %s272
    %p276 = pneg %p270
    %p277 = scmp.eq.s32.totalorder %s25, 1
    %p278 = por %p276, %p277
    %p279 = scmp.ne.s32.totalorder %s271, %s274
    %p280 = scmp.eq.s32.totalorder %s25, 0
    %p281 = por %p279, %p280
    %p282 = scmp.ne.s32.totalorder %s271, %s274
    %p283 = scmp.eq.s32.totalorder %s30, 1
    %p284 = por %p282, %p283
    %p285 = scmp.ne.s32.totalorder %s274, %s275
    %p286 = scmp.eq.s32.totalorder %s30, 0
    %p287 = por %p285, %p286
    %p288 = scmp.ne.s32.totalorder %s274, %s275
    %p289 = scmp.eq.s32.totalorder %s31, 1
    %p290 = por %p288, %p289
    %p292 = scmp.ne.s32.totalorder %s275, %s291
    %p293 = scmp.eq.s32.totalorder %s31, 0
    %p294 = por %p292, %p293
    %s295 = ssub.s32 %s33, %s40
    %p296 = scmp.eq.s32.totalorder %s295, 0
    %s298 = sadd.s32 %s297, 1
    %s299 = scalar_select %p296, %s297, %s298
    %p302 = pneg %p296
    %p303 = scmp.eq.s32.totalorder %s25, 1
    %p304 = por %p302, %p303
    %p305 = scmp.ne.s32.totalorder %s297, %s300
    %p306 = scmp.eq.s32.totalorder %s25, 0
    %p307 = por %p305, %p306
    %p308 = scmp.ne.s32.totalorder %s297, %s300
    %p309 = scmp.eq.s32.totalorder %s30, 1
    %p310 = por %p308, %p309
    %p311 = scmp.ne.s32.totalorder %s300, %s301
    %p312 = scmp.eq.s32.totalorder %s30, 0
    %p313 = por %p311, %p312
    %p314 = scmp.ne.s32.totalorder %s300, %s301
    %p315 = scmp.eq.s32.totalorder %s31, 1
    %p316 = por %p314, %p315
    %p318 = scmp.ne.s32.totalorder %s301, %s317
    %p319 = scmp.eq.s32.totalorder %s31, 0
    %p320 = por %p318, %p319
    %s321 = ssub.s32 %s33, %s40
    %p322 = scmp.eq.s32.totalorder %s321, 0
    %s324 = sadd.s32 %s323, 1
    %s325 = scalar_select %p322, %s323, %s324
    %p328 = pneg %p322
    %p329 = scmp.eq.s32.totalorder %s25, 1
    %p330 = por %p328, %p329
    %p331 = scmp.ne.s32.totalorder %s323, %s326
    %p332 = scmp.eq.s32.totalorder %s25, 0
    %p333 = por %p331, %p332
    %p334 = scmp.ne.s32.totalorder %s323, %s326
    %p335 = scmp.eq.s32.totalorder %s30, 1
    %p336 = por %p334, %p335
    %p337 = scmp.ne.s32.totalorder %s326, %s327
    %p338 = scmp.eq.s32.totalorder %s30, 0
    %p339 = por %p337, %p338
    %p340 = scmp.ne.s32.totalorder %s326, %s327
    %p341 = scmp.eq.s32.totalorder %s31, 1
    %p342 = por %p340, %p341
    %p344 = scmp.ne.s32.totalorder %s327, %s343
    %p345 = scmp.eq.s32.totalorder %s31, 0
    %p346 = por %p344, %p345
    %s347 = ssub.s32 %s33, %s40
    %p348 = scmp.eq.s32.totalorder %s347, 0
    %s350 = sadd.s32 %s349, 1
    %s351 = scalar_select %p348, %s349, %s350
    %p354 = pneg %p348
    %p355 = scmp.eq.s32.totalorder %s25, 1
    %p356 = por %p354, %p355
    %p357 = scmp.ne.s32.totalorder %s349, %s352
    %p358 = scmp.eq.s32.totalorder %s25, 0
    %p359 = por %p357, %p358
    %p360 = scmp.ne.s32.totalorder %s349, %s352
    %p361 = scmp.eq.s32.totalorder %s30, 1
    %p362 = por %p360, %p361
    %p363 = scmp.ne.s32.totalorder %s352, %s353
    %p364 = scmp.eq.s32.totalorder %s30, 0
    %p365 = por %p363, %p364
    %p366 = scmp.ne.s32.totalorder %s352, %s353
    %p367 = scmp.eq.s32.totalorder %s31, 1
    %p368 = por %p366, %p367
    %p370 = scmp.ne.s32.totalorder %s353, %s369
    %p371 = scmp.eq.s32.totalorder %s31, 0
    %p372 = por %p370, %p371
    %s373 = ssub.s32 %s33, %s40
    %p374 = scmp.eq.s32.totalorder %s373, 0
    %s376 = sadd.s32 %s375, 1
    %s377 = scalar_select %p374, %s375, %s376
    %p380 = pneg %p374
    %p381 = scmp.eq.s32.totalorder %s25, 1
    %p382 = por %p380, %p381
    %p383 = scmp.ne.s32.totalorder %s375, %s378
    %p384 = scmp.eq.s32.totalorder %s25, 0
    %p385 = por %p383, %p384
    %p386 = scmp.ne.s32.totalorder %s375, %s378
    %p387 = scmp.eq.s32.totalorder %s30, 1
    %p388 = por %p386, %p387
    %p389 = scmp.ne.s32.totalorder %s378, %s379
    %p390 = scmp.eq.s32.totalorder %s30, 0
    %p391 = por %p389, %p390
    %p392 = scmp.ne.s32.totalorder %s378, %s379
    %p393 = scmp.eq.s32.totalorder %s31, 1
    %p394 = por %p392, %p393
    %p396 = scmp.ne.s32.totalorder %s379, %s395
    %p397 = scmp.eq.s32.totalorder %s31, 0
    %p398 = por %p396, %p397
    %s399 = ssub.s32 %s33, %s40
    %p400 = scmp.eq.s32.totalorder %s399, 0
    %s402 = sadd.s32 %s401, 1
    %s403 = scalar_select %p400, %s401, %s402
    %p406 = pneg %p400
    %p407 = scmp.eq.s32.totalorder %s25, 1
    %p408 = por %p406, %p407
    %p409 = scmp.ne.s32.totalorder %s401, %s404
    %p410 = scmp.eq.s32.totalorder %s25, 0
    %p411 = por %p409, %p410
    %p412 = scmp.ne.s32.totalorder %s401, %s404
    %p413 = scmp.eq.s32.totalorder %s30, 1
    %p414 = por %p412, %p413
    %p415 = scmp.ne.s32.totalorder %s404, %s405
    %p416 = scmp.eq.s32.totalorder %s30, 0
    %p417 = por %p415, %p416
    %p418 = scmp.ne.s32.totalorder %s404, %s405
    %p419 = scmp.eq.s32.totalorder %s31, 1
    %p420 = por %p418, %p419
    %p422 = scmp.ne.s32.totalorder %s405, %s421
    %p423 = scmp.eq.s32.totalorder %s31, 0
    %p424 = por %p422, %p423
    %s426 = sadd.s32 %s425, 1
    %p429 = scmp.eq.s32.totalorder %s25, 1
    %p430 = scmp.ne.s32.totalorder %s425, %s427
    %p431 = scmp.eq.s32.totalorder %s25, 0
    %p432 = por %p430, %p431
    %p433 = scmp.ne.s32.totalorder %s425, %s427
    %p434 = scmp.eq.s32.totalorder %s30, 1
    %p435 = por %p433, %p434
    %p436 = scmp.ne.s32.totalorder %s427, %s428
    %p437 = scmp.eq.s32.totalorder %s30, 0
    %p438 = por %p436, %p437
    %p439 = scmp.ne.s32.totalorder %s427, %s428
    %p440 = scmp.eq.s32.totalorder %s31, 1
    %p441 = por %p439, %p440
    %p443 = scmp.ne.s32.totalorder %s428, %s442
    %p444 = scmp.eq.s32.totalorder %s31, 0
    %p445 = por %p443, %p444
    %s447 = sadd.s32 %s446, 1
    %p450 = scmp.eq.s32.totalorder %s25, 1
    %p451 = scmp.ne.s32.totalorder %s446, %s448
    %p452 = scmp.eq.s32.totalorder %s25, 0
    %p453 = por %p451, %p452
    %p454 = scmp.ne.s32.totalorder %s446, %s448
    %p455 = scmp.eq.s32.totalorder %s30, 1
    %p456 = por %p454, %p455
    %p457 = scmp.ne.s32.totalorder %s448, %s449
    %p458 = scmp.eq.s32.totalorder %s30, 0
    %p459 = por %p457, %p458
    %p460 = scmp.ne.s32.totalorder %s448, %s449
    %p461 = scmp.eq.s32.totalorder %s31, 1
    %p462 = por %p460, %p461
    %p464 = scmp.ne.s32.totalorder %s449, %s463
    %p465 = scmp.eq.s32.totalorder %s31, 0
    %p466 = por %p464, %p465
    %s467 = ssub.s32 %s32, %s44
    %p468 = scmp.eq.s32.totalorder %s467, 0
    %s470 = sadd.s32 %s469, 1
    %s471 = scalar_select %p468, %s469, %s470
    %p474 = pneg %p468
    %p475 = scmp.eq.s32.totalorder %s25, 1
    %p476 = por %p474, %p475
    %p477 = scmp.ne.s32.totalorder %s469, %s472
    %p478 = scmp.eq.s32.totalorder %s25, 0
    %p479 = por %p477, %p478
    %p480 = scmp.ne.s32.totalorder %s469, %s472
    %p481 = scmp.eq.s32.totalorder %s30, 1
    %p482 = por %p480, %p481
    %p483 = scmp.ne.s32.totalorder %s472, %s473
    %p484 = scmp.eq.s32.totalorder %s30, 0
    %p485 = por %p483, %p484
    %p486 = scmp.ne.s32.totalorder %s472, %s473
    %p487 = scmp.eq.s32.totalorder %s31, 1
    %p488 = por %p486, %p487
    %p490 = scmp.ne.s32.totalorder %s473, %s489
    %p491 = scmp.eq.s32.totalorder %s31, 0
    %p492 = por %p490, %p491
    %p493 = scmp.le.s32.totalorder 1, %s25
    %p494 = scmp.lt.s32.totalorder %s25, 3
    %p495 = pnand %p493, %p494
    %p496 = pneg %p495
    // Predicated region
    $region9: #{tpu_custom_call.1} parent=5 // pred_check
      _
    $region10: #{tpu_custom_call.1} parent=5 // pred_check_branch
      %498 = sbr.rel (%p495) target = $region12
    $region11: #{tpu_custom_call.1} parent=5 // pred_region
      %s499 = ssub.s32 %s25, 1
      // Predicated region
      $region13: #{tpu_custom_call.1} parent=11 // pred_check
        %p500 = pneg %p63
      $region14: #{tpu_custom_call.1} parent=11 // pred_check_branch
        %502 = sbr.rel (%p500) target = $region16
      $region15: #{tpu_custom_call.1} parent=11 // pred_region
        %s503 = smul.u32 2, %s34
        %p504 = scmp.lt.s32.totalorder %s503, 1
        %s505 = scalar_select %p504, %s503, 1
        %s506 = smul.addr %s505, 8
        %s507 = scalar_lea.vmem %s0, %s506
        %s508 = smul.u32 2, %s34
      $region16: #{tpu_custom_call.1} parent=11 // pred_fallthru
        _
      // Predicated region
      $region17: #{tpu_custom_call.1} parent=11 // pred_check
        %p509 = pneg %p84
      $region18: #{tpu_custom_call.1} parent=11 // pred_check_branch
        %511 = sbr.rel (%p509) target = $region20
      $region19: #{tpu_custom_call.1} parent=11 // pred_region
        _
      $region20: #{tpu_custom_call.1} parent=11 // pred_fallthru
        _
      // Predicated region
      $region21: #{tpu_custom_call.1} parent=11 // pred_check
        %p512 = pneg %p105
      $region22: #{tpu_custom_call.1} parent=11 // pred_check_branch
        %514 = sbr.rel (%p512) target = $region24
      $region23: #{tpu_custom_call.1} parent=11 // pred_region
        _
      $region24: #{tpu_custom_call.1} parent=11 // pred_fallthru
        _
      // Predicated region
      $region25: #{tpu_custom_call.1} parent=11 // pred_check
        %p515 = pneg %p438
      $region26: #{tpu_custom_call.1} parent=11 // pred_check_branch
        %517 = sbr.rel (%p515) target = $region28
      $region27: #{tpu_custom_call.1} parent=11 // pred_region
        _
      $region28: #{tpu_custom_call.1} parent=11 // pred_fallthru
        _
      // Predicated region
      $region29: #{tpu_custom_call.1} parent=11 // pred_check
        %p518 = pneg %p459
      $region30: #{tpu_custom_call.1} parent=11 // pred_check_branch
        %520 = sbr.rel (%p518) target = $region32
      $region31: #{tpu_custom_call.1} parent=11 // pred_region
        _
      $region32: #{tpu_custom_call.1} parent=11 // pred_fallthru
        _
    $region12: #{tpu_custom_call.1} parent=5 // pred_fallthru
      _
    %p521 = scmp.lt.s32.totalorder %s25, 2
    // Predicated region
    $region33: #{tpu_custom_call.1} parent=5 // pred_check
      %p522 = pneg %p521
    $region34: #{tpu_custom_call.1} parent=5 // pred_check_branch
      %524 = sbr.rel (%p522) target = $region36
    $region35: #{tpu_custom_call.1} parent=5 // pred_region
      // Predicated region
      $region37: #{tpu_custom_call.1} parent=35 // pred_check
        %p525 = pneg %p125
      $region38: #{tpu_custom_call.1} parent=35 // pred_check_branch
        %527 = sbr.rel (%p525) target = $region40
      $region39: #{tpu_custom_call.1} parent=35 // pred_region
        %p528 = scmp.lt.s32.totalorder %s33, 1
        %s529 = scalar_select %p528, %s33, 1
        %s530 = smul.addr %s529, 96
        %s531 = smul.addr %s530, 4
        %s532 = scalar_lea.vmem %s3, %s531
      $region40: #{tpu_custom_call.1} parent=35 // pred_fallthru
        _
      // Predicated region
      $region41: #{tpu_custom_call.1} parent=35 // pred_check
        %p533 = pneg %p151
      $region42: #{tpu_custom_call.1} parent=35 // pred_check_branch
        %535 = sbr.rel (%p533) target = $region44
      $region43: #{tpu_custom_call.1} parent=35 // pred_region
        %p536 = scmp.lt.s32.totalorder %s33, 1
        %s537 = scalar_select %p536, %s33, 1
        %s538 = smul.addr %s537, 12
        %s539 = scalar_lea.vmem %s4, %s538
      $region44: #{tpu_custom_call.1} parent=35 // pred_fallthru
        _
      // Predicated region
      $region45: #{tpu_custom_call.1} parent=35 // pred_check
        %p540 = pneg %p177
      $region46: #{tpu_custom_call.1} parent=35 // pred_check_branch
        %542 = sbr.rel (%p540) target = $region48
      $region47: #{tpu_custom_call.1} parent=35 // pred_region
        %p543 = scmp.lt.s32.totalorder %s33, 1
        %s544 = scalar_select %p543, %s33, 1
        %s545 = smul.addr %s544, 8
        %s546 = smul.addr %s545, 4
        %s547 = scalar_lea.vmem %s5, %s546
      $region48: #{tpu_custom_call.1} parent=35 // pred_fallthru
        _
      // Predicated region
      $region49: #{tpu_custom_call.1} parent=35 // pred_check
        %p548 = pneg %p203
      $region50: #{tpu_custom_call.1} parent=35 // pred_check_branch
        %550 = sbr.rel (%p548) target = $region52
      $region51: #{tpu_custom_call.1} parent=35 // pred_region
        %p551 = scmp.lt.s32.totalorder %s33, 1
        %s552 = scalar_select %p551, %s33, 1
        %s553 = scalar_lea.vmem %s6, %s552
      $region52: #{tpu_custom_call.1} parent=35 // pred_fallthru
        _
      // Predicated region
      $region53: #{tpu_custom_call.1} parent=35 // pred_check
        %p554 = pneg %p229
      $region54: #{tpu_custom_call.1} parent=35 // pred_check_branch
        %556 = sbr.rel (%p554) target = $region56
      $region55: #{tpu_custom_call.1} parent=35 // pred_region
        %p557 = scmp.lt.s32.totalorder %s33, 1
        %s558 = scalar_select %p557, %s33, 1
        %s559 = scalar_lea.vmem %s7, %s558
      $region56: #{tpu_custom_call.1} parent=35 // pred_fallthru
        _
      // Predicated region
      $region57: #{tpu_custom_call.1} parent=35 // pred_check
        %p560 = pneg %p255
      $region58: #{tpu_custom_call.1} parent=35 // pred_check_branch
        %562 = sbr.rel (%p560) target = $region60
      $region59: #{tpu_custom_call.1} parent=35 // pred_region
        %p563 = scmp.lt.s32.totalorder %s33, 1
        %s564 = scalar_select %p563, %s33, 1
        %s565 = scalar_lea.vmem %s8, %s564
      $region60: #{tpu_custom_call.1} parent=35 // pred_fallthru
        _
      // Predicated region
      $region61: #{tpu_custom_call.1} parent=35 // pred_check
        %p566 = pneg %p281
      $region62: #{tpu_custom_call.1} parent=35 // pred_check_branch
        %568 = sbr.rel (%p566) target = $region64
      $region63: #{tpu_custom_call.1} parent=35 // pred_region
        %p569 = scmp.lt.s32.totalorder %s33, 1
        %s570 = scalar_select %p569, %s33, 1
        %s571 = smul.addr %s570, 128
        %s572 = smul.addr %s571, 4
        %s573 = scalar_lea.vmem %s9, %s572
      $region64: #{tpu_custom_call.1} parent=35 // pred_fallthru
        _
      // Predicated region
      $region65: #{tpu_custom_call.1} parent=35 // pred_check
        %p574 = pneg %p307
      $region66: #{tpu_custom_call.1} parent=35 // pred_check_branch
        %576 = sbr.rel (%p574) target = $region68
      $region67: #{tpu_custom_call.1} parent=35 // pred_region
        %p577 = scmp.lt.s32.totalorder %s33, 1
        %s578 = scalar_select %p577, %s33, 1
        %s579 = smul.addr %s578, 16
        %s580 = scalar_lea.vmem %s10, %s579
      $region68: #{tpu_custom_call.1} parent=35 // pred_fallthru
        _
      // Predicated region
      $region69: #{tpu_custom_call.1} parent=35 // pred_check
        %p581 = pneg %p333
      $region70: #{tpu_custom_call.1} parent=35 // pred_check_branch
        %583 = sbr.rel (%p581) target = $region72
      $region71: #{tpu_custom_call.1} parent=35 // pred_region
        %p584 = scmp.lt.s32.totalorder %s33, 1
        %s585 = scalar_select %p584, %s33, 1
        %s586 = smul.addr %s585, 256
        %s587 = smul.addr %s586, 4
        %s588 = scalar_lea.vmem %s11, %s587
      $region72: #{tpu_custom_call.1} parent=35 // pred_fallthru
        _
      // Predicated region
      $region73: #{tpu_custom_call.1} parent=35 // pred_check
        %p589 = pneg %p359
      $region74: #{tpu_custom_call.1} parent=35 // pred_check_branch
        %591 = sbr.rel (%p589) target = $region76
      $region75: #{tpu_custom_call.1} parent=35 // pred_region
        %p592 = scmp.lt.s32.totalorder %s33, 1
        %s593 = scalar_select %p592, %s33, 1
        %s594 = scalar_lea.vmem %s12, %s593
      $region76: #{tpu_custom_call.1} parent=35 // pred_fallthru
        _
      // Predicated region
      $region77: #{tpu_custom_call.1} parent=35 // pred_check
        %p595 = pneg %p385
      $region78: #{tpu_custom_call.1} parent=35 // pred_check_branch
        %597 = sbr.rel (%p595) target = $region80
      $region79: #{tpu_custom_call.1} parent=35 // pred_region
        %p598 = scmp.lt.s32.totalorder %s33, 1
        %s599 = scalar_select %p598, %s33, 1
        %s600 = scalar_lea.vmem %s13, %s599
      $region80: #{tpu_custom_call.1} parent=35 // pred_fallthru
        _
      // Predicated region
      $region81: #{tpu_custom_call.1} parent=35 // pred_check
        %p601 = pneg %p411
      $region82: #{tpu_custom_call.1} parent=35 // pred_check_branch
        %603 = sbr.rel (%p601) target = $region84
      $region83: #{tpu_custom_call.1} parent=35 // pred_region
        %p604 = scmp.lt.s32.totalorder %s33, 1
        %s605 = scalar_select %p604, %s33, 1
        %s606 = scalar_lea.vmem %s14, %s605
      $region84: #{tpu_custom_call.1} parent=35 // pred_fallthru
        _
    $region36: #{tpu_custom_call.1} parent=5 // pred_fallthru
      _
    %p607 = scmp.le.s32.totalorder 1, %s25
    %p608 = scmp.lt.s32.totalorder %s25, 3
    %p609 = pnand %p607, %p608
    %p610 = pneg %p609
    // Predicated region
    $region85: #{tpu_custom_call.1} parent=5 // pred_check
      _
    $region86: #{tpu_custom_call.1} parent=5 // pred_check_branch
      %612 = sbr.rel (%p609) target = $region88
    $region87: #{tpu_custom_call.1} parent=5 // pred_region
      %s613 = ssub.s32 %s25, 1
      %s614 = smul.u32 2, %s34
      %p615 = scmp.lt.s32.totalorder %s614, 1
      %s616 = scalar_select %p615, %s614, 1
      %s617 = smul.addr %s616, 8
      %s618 = scalar_lea.vmem %s0, %s617
      %p619 = pneg %p63
      %p620 = pneg %p60
      %p621 = pneg %p84
      %p622 = pneg %p81
      %p623 = pneg %p105
      %p624 = pneg %p102
      %p625 = scmp.lt.s32.totalorder %s35, 1
      %s626 = scalar_select %p625, %s35, 1
      %s627 = smul.addr %s626, 96
      %s628 = smul.addr %s627, 4
      %s629 = scalar_lea.vmem %s3, %s628
      %p630 = pneg %p131
      %p631 = pneg %p128
      %p632 = scmp.lt.s32.totalorder %s35, 1
      %s633 = scalar_select %p632, %s35, 1
      %s634 = smul.addr %s633, 12
      %s635 = scalar_lea.vmem %s4, %s634
      %p636 = pneg %p157
      %p637 = pneg %p154
      %p638 = scmp.lt.s32.totalorder %s35, 1
      %s639 = scalar_select %p638, %s35, 1
      %s640 = smul.addr %s639, 8
      %s641 = smul.addr %s640, 4
      %s642 = scalar_lea.vmem %s5, %s641
      %p643 = pneg %p183
      %p644 = pneg %p180
      %p645 = scmp.lt.s32.totalorder %s35, 1
      %s646 = scalar_select %p645, %s35, 1
      %s647 = scalar_lea.vmem %s6, %s646
      %p648 = pneg %p209
      %p649 = pneg %p206
      %p650 = scmp.lt.s32.totalorder %s35, 1
      %s651 = scalar_select %p650, %s35, 1
      %s652 = scalar_lea.vmem %s7, %s651
      %p653 = pneg %p235
      %p654 = pneg %p232
      %p655 = scmp.lt.s32.totalorder %s35, 1
      %s656 = scalar_select %p655, %s35, 1
      %s657 = scalar_lea.vmem %s8, %s656
      %p658 = pneg %p261
      %p659 = pneg %p258
      %p660 = scmp.lt.s32.totalorder %s35, 1
      %s661 = scalar_select %p660, %s35, 1
      %s662 = smul.addr %s661, 128
      %s663 = smul.addr %s662, 4
      %s664 = scalar_lea.vmem %s9, %s663
      %p665 = pneg %p287
      %p666 = pneg %p284
      %p667 = scmp.lt.s32.totalorder %s35, 1
      %s668 = scalar_select %p667, %s35, 1
      %s669 = smul.addr %s668, 16
      %s670 = scalar_lea.vmem %s10, %s669
      %p671 = pneg %p313
      %p672 = pneg %p310
      %p673 = scmp.lt.s32.totalorder %s35, 1
      %s674 = scalar_select %p673, %s35, 1
      %s675 = smul.addr %s674, 256
      %s676 = smul.addr %s675, 4
      %s677 = scalar_lea.vmem %s11, %s676
      %p678 = pneg %p339
      %p679 = pneg %p336
      %p680 = scmp.lt.s32.totalorder %s35, 1
      %s681 = scalar_select %p680, %s35, 1
      %s682 = scalar_lea.vmem %s12, %s681
      %p683 = pneg %p365
      %p684 = pneg %p362
      %p685 = scmp.lt.s32.totalorder %s35, 1
      %s686 = scalar_select %p685, %s35, 1
      %s687 = scalar_lea.vmem %s13, %s686
      %p688 = pneg %p391
      %p689 = pneg %p388
      %p690 = scmp.lt.s32.totalorder %s35, 1
      %s691 = scalar_select %p690, %s35, 1
      %s692 = scalar_lea.vmem %s14, %s691
      %p693 = pneg %p417
      %p694 = pneg %p414
      %p695 = pneg %p438
      %p696 = pneg %p435
      %p697 = pneg %p459
      %p698 = pneg %p456
      %p699 = pneg %p485
      %p700 = pneg %p482
      %p701 = scmp.lt.s32.totalorder %s34, 0
      %s702 = scalar_select %p701, %s34, 0
      %s703 = smul.addr %s702, 2
      %s704 = scalar_lea.vmem %s17, %s703
      %s705 = smul.u32 2, %s34
      %p706 = scmp.lt.s32.totalorder %s705, 1
      %s707 = scalar_select %p706, %s705, 1
      %s708 = smul.addr %s707, 8
      %s709 = scalar_lea.vmem %s0, %s708
      %s710 = smul.u32 2, %s34
      %p711 = scmp.lt.s32.totalorder %s35, 1
      %s712 = scalar_select %p711, %s35, 1
      %s713 = smul.addr %s712, 96
      %s714 = smul.addr %s713, 4
      %s715 = scalar_lea.vmem %s3, %s714
      %p716 = scmp.lt.s32.totalorder %s35, 1
      %s717 = scalar_select %p716, %s35, 1
      %s718 = smul.addr %s717, 12
      %s719 = scalar_lea.vmem %s4, %s718
      %p720 = scmp.lt.s32.totalorder %s35, 1
      %s721 = scalar_select %p720, %s35, 1
      %s722 = smul.addr %s721, 8
      %s723 = smul.addr %s722, 4
      %s724 = scalar_lea.vmem %s5, %s723
      %p725 = scmp.lt.s32.totalorder %s35, 1
      %s726 = scalar_select %p725, %s35, 1
      %s727 = scalar_lea.vmem %s6, %s726
      %p728 = scmp.lt.s32.totalorder %s35, 1
      %s729 = scalar_select %p728, %s35, 1
      %s730 = scalar_lea.vmem %s7, %s729
      %p731 = scmp.lt.s32.totalorder %s35, 1
      %s732 = scalar_select %p731, %s35, 1
      %s733 = scalar_lea.vmem %s8, %s732
      %p734 = scmp.lt.s32.totalorder %s35, 1
      %s735 = scalar_select %p734, %s35, 1
      %s736 = smul.addr %s735, 128
      %s737 = smul.addr %s736, 4
      %s738 = scalar_lea.vmem %s9, %s737
      %p739 = scmp.lt.s32.totalorder %s35, 1
      %s740 = scalar_select %p739, %s35, 1
      %s741 = smul.addr %s740, 16
      %s742 = scalar_lea.vmem %s10, %s741
      %p743 = scmp.lt.s32.totalorder %s35, 1
      %s744 = scalar_select %p743, %s35, 1
      %s745 = smul.addr %s744, 256
      %s746 = smul.addr %s745, 4
      %s747 = scalar_lea.vmem %s11, %s746
      %p748 = scmp.lt.s32.totalorder %s35, 1
      %s749 = scalar_select %p748, %s35, 1
      %s750 = scalar_lea.vmem %s12, %s749
      %p751 = scmp.lt.s32.totalorder %s35, 1
      %s752 = scalar_select %p751, %s35, 1
      %s753 = scalar_lea.vmem %s13, %s752
      %p754 = scmp.lt.s32.totalorder %s35, 1
      %s755 = scalar_select %p754, %s35, 1
      %s756 = scalar_lea.vmem %s14, %s755
      %p757 = scmp.lt.s32.totalorder %s34, 0
      %s758 = scalar_select %p757, %s34, 0
      %s759 = smul.addr %s758, 2
      %s760 = scalar_lea.vmem %s17, %s759
      %p762 = scmp.eq.s32.totalorder %s35, 0
      // Predicated region
      $region89: #{tpu_custom_call.1} parent=87 // pred_check
        %p763 = pneg %p762
      $region90: #{tpu_custom_call.1} parent=87 // pred_check_branch
        %765 = sbr.rel (%p763) target = $region92
      $region91: #{tpu_custom_call.1} parent=87 // pred_region
        %v766 = vld [vmem:[%s709] sm:$0xff]
        %v767 = vld [vmem:[%s709 + $0x8] sm:$0xff]
        %v768 = vld [vmem:[%s1] sm:$0x1]
        %770 = vset.pattern.permute.xlu0 0
        %771 = vperm.xlu0 %770, %v766
        %v772 = vpop.permute.xlu0 %771
        %775 = vset.pattern.permute.xlu0 0
        %776 = vperm.xlu0 %775, %v767
        %v777 = vpop.permute.xlu0 %776
        %v780 = vlaneseq
        %v781 = vshrl.u32 %v780, 7
        %v782 = vsub.s32 0, %v781
        %v783 = vrot.slane %v768, %v782
        %v785 = vmul.f32 %v772, %v783
        %v786 = vmul.f32 %v777, %v783
        %v787 = vld [vmem:[%s2] sm:$0x1]
        %v789 = vlaneseq
        %v790 = vshrl.u32 %v789, 7
        %v791 = vsub.s32 0, %v790
        %v792 = vrot.slane %v787, %v791
        %v794 = vadd.f32 %v785, %v792
        %v795 = vadd.f32 %v786, %v792
        %vm796 = vcmask 523264
        %797 = vst.msk [vmem:[#allocation2] sm:$0xff] %vm796, %v794
        %798 = vst.msk [vmem:[#allocation2 + $0x8] sm:$0xff] %vm796, %v795
      $region92: #{tpu_custom_call.1} parent=87 // pred_fallthru
        _
      %v799 = vld [vmem:[#allocation2] sm:$0xff]
      %v800 = vld [vmem:[#allocation2 + $0x8] sm:$0xff]
      %v801 = vpack.c.bf16 %v800, %v799
      %v802 = vld [vmem:[%s715] sm:$0xf]
      %v803 = vld [vmem:[%s715 + $0x4] sm:$0xf]
      %v804 = vld [vmem:[%s715 + $0x8] sm:$0xf]
      %v805 = vld [vmem:[%s715 + $0xc] sm:$0xf]
      %v806 = vld [vmem:[%s715 + $0x10] sm:$0xf]
      %v807 = vld [vmem:[%s715 + $0x14] sm:$0xf]
      %v808 = vld [vmem:[%s715 + $0x18] sm:$0xf]
      %v809 = vld [vmem:[%s715 + $0x1c] sm:$0xf]
      %v810 = vld [vmem:[%s715 + $0x20] sm:$0xf]
      %v811 = vld [vmem:[%s715 + $0x24] sm:$0xf]
      %v812 = vld [vmem:[%s715 + $0x28] sm:$0xf]
      %v813 = vld [vmem:[%s715 + $0x2c] sm:$0xf]
      %v814 = vld [vmem:[%s715 + $0x30] sm:$0xf]
      %v815 = vld [vmem:[%s715 + $0x34] sm:$0xf]
      %v816 = vld [vmem:[%s715 + $0x38] sm:$0xf]
      %v817 = vld [vmem:[%s715 + $0x3c] sm:$0xf]
      %v818 = vld [vmem:[%s715 + $0x40] sm:$0xf]
      %v819 = vld [vmem:[%s715 + $0x44] sm:$0xf]
      %v820 = vld [vmem:[%s715 + $0x48] sm:$0xf]
      %v821 = vld [vmem:[%s715 + $0x4c] sm:$0xf]
      %v822 = vld [vmem:[%s715 + $0x50] sm:$0xf]
      %v823 = vld [vmem:[%s715 + $0x54] sm:$0xf]
      %v824 = vld [vmem:[%s715 + $0x58] sm:$0xf]
      %v825 = vld [vmem:[%s715 + $0x5c] sm:$0xf]
      %v826 = vld [vmem:[%s715 + $0x60] sm:$0xf]
      %v827 = vld [vmem:[%s715 + $0x64] sm:$0xf]
      %v828 = vld [vmem:[%s715 + $0x68] sm:$0xf]
      %v829 = vld [vmem:[%s715 + $0x6c] sm:$0xf]
      %v830 = vld [vmem:[%s715 + $0x70] sm:$0xf]
      %v831 = vld [vmem:[%s715 + $0x74] sm:$0xf]
      %v832 = vld [vmem:[%s715 + $0x78] sm:$0xf]
      %v833 = vld [vmem:[%s715 + $0x7c] sm:$0xf]
      %v834 = vld [vmem:[%s715 + $0x80] sm:$0xf]
      %v835 = vld [vmem:[%s715 + $0x84] sm:$0xf]
      %v836 = vld [vmem:[%s715 + $0x88] sm:$0xf]
      %v837 = vld [vmem:[%s715 + $0x8c] sm:$0xf]
      %v838 = vld [vmem:[%s715 + $0x90] sm:$0xf]
      %v839 = vld [vmem:[%s715 + $0x94] sm:$0xf]
      %v840 = vld [vmem:[%s715 + $0x98] sm:$0xf]
      %v841 = vld [vmem:[%s715 + $0x9c] sm:$0xf]
      %v842 = vld [vmem:[%s715 + $0xa0] sm:$0xf]
      %v843 = vld [vmem:[%s715 + $0xa4] sm:$0xf]
      %v844 = vld [vmem:[%s715 + $0xa8] sm:$0xf]
      %v845 = vld [vmem:[%s715 + $0xac] sm:$0xf]
      %v846 = vld [vmem:[%s715 + $0xb0] sm:$0xf]
      %v847 = vld [vmem:[%s715 + $0xb4] sm:$0xf]
      %v848 = vld [vmem:[%s715 + $0xb8] sm:$0xf]
      %v849 = vld [vmem:[%s715 + $0xbc] sm:$0xf]
      %v850 = vld [vmem:[%s715 + $0xc0] sm:$0xf]
      %v851 = vld [vmem:[%s715 + $0xc4] sm:$0xf]
      %v852 = vld [vmem:[%s715 + $0xc8] sm:$0xf]
      %v853 = vld [vmem:[%s715 + $0xcc] sm:$0xf]
      %v854 = vld [vmem:[%s715 + $0xd0] sm:$0xf]
      %v855 = vld [vmem:[%s715 + $0xd4] sm:$0xf]
      %v856 = vld [vmem:[%s715 + $0xd8] sm:$0xf]
      %v857 = vld [vmem:[%s715 + $0xdc] sm:$0xf]
      %v858 = vld [vmem:[%s715 + $0xe0] sm:$0xf]
      %v859 = vld [vmem:[%s715 + $0xe4] sm:$0xf]
      %v860 = vld [vmem:[%s715 + $0xe8] sm:$0xf]
      %v861 = vld [vmem:[%s715 + $0xec] sm:$0xf]
      %v862 = vld [vmem:[%s715 + $0xf0] sm:$0xf]
      %v863 = vld [vmem:[%s715 + $0xf4] sm:$0xf]
      %v864 = vld [vmem:[%s715 + $0xf8] sm:$0xf]
      %v865 = vld [vmem:[%s715 + $0xfc] sm:$0xf]
      %v866 = vld [vmem:[%s715 + $0x100] sm:$0xf]
      %v867 = vld [vmem:[%s715 + $0x104] sm:$0xf]
      %v868 = vld [vmem:[%s715 + $0x108] sm:$0xf]
      %v869 = vld [vmem:[%s715 + $0x10c] sm:$0xf]
      %v870 = vld [vmem:[%s715 + $0x110] sm:$0xf]
      %v871 = vld [vmem:[%s715 + $0x114] sm:$0xf]
      %v872 = vld [vmem:[%s715 + $0x118] sm:$0xf]
      %v873 = vld [vmem:[%s715 + $0x11c] sm:$0xf]
      %v874 = vld [vmem:[%s715 + $0x120] sm:$0xf]
      %v875 = vld [vmem:[%s715 + $0x124] sm:$0xf]
      %v876 = vld [vmem:[%s715 + $0x128] sm:$0xf]
      %v877 = vld [vmem:[%s715 + $0x12c] sm:$0xf]
      %v878 = vld [vmem:[%s715 + $0x130] sm:$0xf]
      %v879 = vld [vmem:[%s715 + $0x134] sm:$0xf]
      %v880 = vld [vmem:[%s715 + $0x138] sm:$0xf]
      %v881 = vld [vmem:[%s715 + $0x13c] sm:$0xf]
      %v882 = vld [vmem:[%s715 + $0x140] sm:$0xf]
      %v883 = vld [vmem:[%s715 + $0x144] sm:$0xf]
      %v884 = vld [vmem:[%s715 + $0x148] sm:$0xf]
      %v885 = vld [vmem:[%s715 + $0x14c] sm:$0xf]
      %v886 = vld [vmem:[%s715 + $0x150] sm:$0xf]
      %v887 = vld [vmem:[%s715 + $0x154] sm:$0xf]
      %v888 = vld [vmem:[%s715 + $0x158] sm:$0xf]
      %v889 = vld [vmem:[%s715 + $0x15c] sm:$0xf]
      %v890 = vld [vmem:[%s715 + $0x160] sm:$0xf]
      %v891 = vld [vmem:[%s715 + $0x164] sm:$0xf]
      %v892 = vld [vmem:[%s715 + $0x168] sm:$0xf]
      %v893 = vld [vmem:[%s715 + $0x16c] sm:$0xf]
      %v894 = vld [vmem:[%s715 + $0x170] sm:$0xf]
      %v895 = vld [vmem:[%s715 + $0x174] sm:$0xf]
      %v896 = vld [vmem:[%s715 + $0x178] sm:$0xf]
      %v897 = vld [vmem:[%s715 + $0x17c] sm:$0xf]
      %v898 = vld [vmem:[%s719] sm:$0x1]
      %v899 = vld [vmem:[%s719 + $0x1] sm:$0x1]
      %v900 = vld [vmem:[%s719 + $0x2] sm:$0x1]
      %v901 = vld [vmem:[%s719 + $0x3] sm:$0x1]
      %v902 = vld [vmem:[%s719 + $0x4] sm:$0x1]
      %v903 = vld [vmem:[%s719 + $0x5] sm:$0x1]
      %v904 = vld [vmem:[%s719 + $0x6] sm:$0x1]
      %v905 = vld [vmem:[%s719 + $0x7] sm:$0x1]
      %v906 = vld [vmem:[%s719 + $0x8] sm:$0x1]
      %v907 = vld [vmem:[%s719 + $0x9] sm:$0x1]
      %v908 = vld [vmem:[%s719 + $0xa] sm:$0x1]
      %v909 = vld [vmem:[%s719 + $0xb] sm:$0x1]
      %v910 = vld [vmem:[%s724] sm:$0xf]
      %v911 = vld [vmem:[%s724 + $0x4] sm:$0xf]
      %v912 = vld [vmem:[%s724 + $0x8] sm:$0xf]
      %v913 = vld [vmem:[%s724 + $0xc] sm:$0xf]
      %v914 = vld [vmem:[%s724 + $0x10] sm:$0xf]
      %v915 = vld [vmem:[%s724 + $0x14] sm:$0xf]
      %v916 = vld [vmem:[%s724 + $0x18] sm:$0xf]
      %v917 = vld [vmem:[%s724 + $0x1c] sm:$0xf]
      %v919 = vlaneseq
      %v920 = vshrl.u32 %v919, 7
      %v921 = vsub.s32 0, %v920
      %v922 = vrot.slane %v898, %v921
      %v932 = vunpack.c.l.b16 %v802
      %v933 = vunpack.c.l.b16 %v803
      %v934 = vunpack.c.l.b16 %v804
      %v935 = vunpack.c.l.b16 %v805
      %v936 = vunpack.c.l.b16 %v806
      %v937 = vunpack.c.l.b16 %v807
      %v938 = vunpack.c.l.b16 %v808
      %v939 = vunpack.c.l.b16 %v809
      %v940 = vpack.c.b16 %v933, %v932
      %v941 = vpack.c.b16 %v935, %v934
      %v942 = vpack.c.b16 %v937, %v936
      %v943 = vpack.c.b16 %v939, %v938
      %vm948 = vcmask 523264
      %v950 = vsel %vm948, %v801, 0
      %952 = vmatprep.subr.bf16.mxu0 0
      %953 = vmatpush1.bf16.msra.mxu0 %v940
      %954 = vmatprep.subr.bf16.mxu0 0
      %955 = vmatpush1.bf16.msra.mxu0 %v941
      %956 = vmatprep.subr.bf16.mxu0 0
      %957 = vmatpush1.bf16.msra.mxu0 %v942
      %958 = vmatprep.subr.bf16.mxu0 0
      %959 = vmatpush1.bf16.msra.mxu0 %v943
      %960 = vmatprep.subr.bf16.mxu0 0
      %961 = vmatpush1.bf16.msra.mxu0 0
      %962 = vmatprep.subr.bf16.mxu0 0
      %963 = vmatpush1.bf16.msra.mxu0 0
      %964 = vmatprep.subr.bf16.mxu0 0
      %965 = vmatpush1.bf16.msra.mxu0 0
      %966 = vmatprep.subr.bf16.mxu0 0
      %967 = vmatpush1.bf16.msra.mxu0 0
      %968 = vmatprep.subr.bf16.mxu0 0
      %969 = vmatpush1.bf16.msra.mxu0 0
      %970 = vmatprep.subr.bf16.mxu0 0
      %971 = vmatpush1.bf16.msra.mxu0 0
      %972 = vmatprep.subr.bf16.mxu0 0
      %973 = vmatpush1.bf16.msra.mxu0 0
      %974 = vmatprep.subr.bf16.mxu0 0
      %975 = vmatpush1.bf16.msra.mxu0 0
      %976 = vmatprep.subr.bf16.mxu0 0
      %977 = vmatpush1.bf16.msra.mxu0 0
      %978 = vmatprep.subr.bf16.mxu0 0
      %979 = vmatpush1.bf16.msra.mxu0 0
      %980 = vmatprep.subr.bf16.mxu0 0
      %981 = vmatpush1.bf16.msra.mxu0 0
      %982 = vmatprep.subr.bf16.mxu0 0
      %983 = vmatpush1.bf16.msra.mxu0 0
      %984 = vmatprep.mubr.bf16.mxu0 0
      %985 = vmatmul.mubr.bf16.gmra.mrb[0].mxu0 %v950
      %v986 = vpop.f32.mrb[0].mxu0
      %v987 = vadd.f32 %v922, %v986
      %v988 = vpop.f32.mrb[0].mxu0
      %v989 = vpop.f32.mrb[0].mxu0
      %v990 = vadd.f32 %v922, %v989
      %v991 = vpop.f32.mrb[0].mxu0
      %992 = vdwg.mxu0
      %v994 = vlaneseq
      %v995 = vshrl.u32 %v994, 7
      %v996 = vsub.s32 0, %v995
      %v997 = vrot.slane %v902, %v996
      %v1007 = vunpack.c.l.b16 %v834
      %v1008 = vunpack.c.l.b16 %v835
      %v1009 = vunpack.c.l.b16 %v836
      %v1010 = vunpack.c.l.b16 %v837
      %v1011 = vunpack.c.l.b16 %v838
      %v1012 = vunpack.c.l.b16 %v839
      %v1013 = vunpack.c.l.b16 %v840
      %v1014 = vunpack.c.l.b16 %v841
      %v1015 = vpack.c.b16 %v1008, %v1007
      %v1016 = vpack.c.b16 %v1010, %v1009
      %v1017 = vpack.c.b16 %v1012, %v1011
      %v1018 = vpack.c.b16 %v1014, %v1013
      %1023 = vmatprep.subr.bf16.mxu0 0
      %1024 = vmatpush1.bf16.msra.mxu0 %v1015
      %1025 = vmatprep.subr.bf16.mxu0 0
      %1026 = vmatpush1.bf16.msra.mxu0 %v1016
      %1027 = vmatprep.subr.bf16.mxu0 0
      %1028 = vmatpush1.bf16.msra.mxu0 %v1017
      %1029 = vmatprep.subr.bf16.mxu0 0
      %1030 = vmatpush1.bf16.msra.mxu0 %v1018
      %1031 = vmatprep.subr.bf16.mxu0 0
      %1032 = vmatpush1.bf16.msra.mxu0 0
      %1033 = vmatprep.subr.bf16.mxu0 0
      %1034 = vmatpush1.bf16.msra.mxu0 0
      %1035 = vmatprep.subr.bf16.mxu0 0
      %1036 = vmatpush1.bf16.msra.mxu0 0
      %1037 = vmatprep.subr.bf16.mxu0 0
      %1038 = vmatpush1.bf16.msra.mxu0 0
      %1039 = vmatprep.subr.bf16.mxu0 0
      %1040 = vmatpush1.bf16.msra.mxu0 0
      %1041 = vmatprep.subr.bf16.mxu0 0
      %1042 = vmatpush1.bf16.msra.mxu0 0
      %1043 = vmatprep.subr.bf16.mxu0 0
      %1044 = vmatpush1.bf16.msra.mxu0 0
      %1045 = vmatprep.subr.bf16.mxu0 0
      %1046 = vmatpush1.bf16.msra.mxu0 0
      %1047 = vmatprep.subr.bf16.mxu0 0
      %1048 = vmatpush1.bf16.msra.mxu0 0
      %1049 = vmatprep.subr.bf16.mxu0 0
      %1050 = vmatpush1.bf16.msra.mxu0 0
      %1051 = vmatprep.subr.bf16.mxu0 0
      %1052 = vmatpush1.bf16.msra.mxu0 0
      %1053 = vmatprep.subr.bf16.mxu0 0
      %1054 = vmatpush1.bf16.msra.mxu0 0
      %1055 = vmatprep.mubr.bf16.mxu0 0
      %1056 = vmatmul.mubr.bf16.gmra.mrb[0].mxu0 %v950
      %v1057 = vpop.f32.mrb[0].mxu0
      %v1058 = vadd.f32 %v997, %v1057
      %v1059 = vpop.f32.mrb[0].mxu0
      %v1060 = vpop.f32.mrb[0].mxu0
      %v1061 = vadd.f32 %v997, %v1060
      %v1062 = vpop.f32.mrb[0].mxu0
      %1063 = vdwg.mxu0
      %v1065 = vlaneseq
      %v1066 = vshrl.u32 %v1065, 7
      %v1067 = vsub.s32 0, %v1066
      %v1068 = vrot.slane %v906, %v1067
      %v1078 = vunpack.c.l.b16 %v866
      %v1079 = vunpack.c.l.b16 %v867
      %v1080 = vunpack.c.l.b16 %v868
      %v1081 = vunpack.c.l.b16 %v869
      %v1082 = vunpack.c.l.b16 %v870
      %v1083 = vunpack.c.l.b16 %v871
      %v1084 = vunpack.c.l.b16 %v872
      %v1085 = vunpack.c.l.b16 %v873
      %v1086 = vpack.c.b16 %v1079, %v1078
      %v1087 = vpack.c.b16 %v1081, %v1080
      %v1088 = vpack.c.b16 %v1083, %v1082
      %v1089 = vpack.c.b16 %v1085, %v1084
      %1094 = vmatprep.subr.bf16.mxu0 0
      %1095 = vmatpush1.bf16.msra.mxu0 %v1086
      %1096 = vmatprep.subr.bf16.mxu0 0
      %1097 = vmatpush1.bf16.msra.mxu0 %v1087
      %1098 = vmatprep.subr.bf16.mxu0 0
      %1099 = vmatpush1.bf16.msra.mxu0 %v1088
      %1100 = vmatprep.subr.bf16.mxu0 0
      %1101 = vmatpush1.bf16.msra.mxu0 %v1089
      %1102 = vmatprep.subr.bf16.mxu0 0
      %1103 = vmatpush1.bf16.msra.mxu0 0
      %1104 = vmatprep.subr.bf16.mxu0 0
      %1105 = vmatpush1.bf16.msra.mxu0 0
      %1106 = vmatprep.subr.bf16.mxu0 0
      %1107 = vmatpush1.bf16.msra.mxu0 0
      %1108 = vmatprep.subr.bf16.mxu0 0
      %1109 = vmatpush1.bf16.msra.mxu0 0
      %1110 = vmatprep.subr.bf16.mxu0 0
      %1111 = vmatpush1.bf16.msra.mxu0 0
      %1112 = vmatprep.subr.bf16.mxu0 0
      %1113 = vmatpush1.bf16.msra.mxu0 0
      %1114 = vmatprep.subr.bf16.mxu0 0
      %1115 = vmatpush1.bf16.msra.mxu0 0
      %1116 = vmatprep.subr.bf16.mxu0 0
      %1117 = vmatpush1.bf16.msra.mxu0 0
      %1118 = vmatprep.subr.bf16.mxu0 0
      %1119 = vmatpush1.bf16.msra.mxu0 0
      %1120 = vmatprep.subr.bf16.mxu0 0
      %1121 = vmatpush1.bf16.msra.mxu0 0
      %1122 = vmatprep.subr.bf16.mxu0 0
      %1123 = vmatpush1.bf16.msra.mxu0 0
      %1124 = vmatprep.subr.bf16.mxu0 0
      %1125 = vmatpush1.bf16.msra.mxu0 0
      %1126 = vmatprep.mubr.bf16.mxu0 0
      %1127 = vmatmul.mubr.bf16.gmra.mrb[0].mxu0 %v950
      %v1128 = vpop.f32.mrb[0].mxu0
      %v1129 = vadd.f32 %v1068, %v1128
      %v1130 = vpop.f32.mrb[0].mxu0
      %v1131 = vpop.f32.mrb[0].mxu0
      %v1132 = vadd.f32 %v1068, %v1131
      %v1133 = vpop.f32.mrb[0].mxu0
      %1134 = vdwg.mxu0
      %v1135 = vpack.c.bf16 %v987, %v987
      %v1136 = vpack.c.bf16 %v990, %v990
      %v1137 = vpack.c.bf16 %v1058, %v1058
      %v1138 = vpack.c.bf16 %v1061, %v1061
      %v1139 = vpack.c.bf16 %v1129, %v1129
      %v1140 = vpack.c.bf16 %v1132, %v1132
      %vm1141 = vcmask 130048
      %v1143 = vsel %vm1141, %v1135, 0
      %v1146 = vsel %vm1141, %v1137, 0
      %1148 = vmatprep.subr.bf16.mxu0 0
      %1149 = vmatpush1.bf16.xpose.msra.mxu0 %v1146
      %1150 = vmatprep.subr.bf16.mxu0 0
      %1151 = vmatpush1.bf16.xpose.msra.mxu0 0
      %1152 = vmatprep.subr.bf16.mxu0 0
      %1153 = vmatpush1.bf16.xpose.msra.mxu0 0
      %1154 = vmatprep.subr.bf16.mxu0 0
      %1155 = vmatpush1.bf16.xpose.msra.mxu0 0
      %1156 = vmatprep.subr.bf16.mxu0 0
      %1157 = vmatpush1.bf16.xpose.msra.mxu0 0
      %1158 = vmatprep.subr.bf16.mxu0 0
      %1159 = vmatpush1.bf16.xpose.msra.mxu0 0
      %1160 = vmatprep.subr.bf16.mxu0 0
      %1161 = vmatpush1.bf16.xpose.msra.mxu0 0
      %1162 = vmatprep.subr.bf16.mxu0 0
      %1163 = vmatpush1.bf16.xpose.msra.mxu0 0
      %1164 = vmatprep.subr.bf16.mxu0 0
      %1165 = vmatpush1.bf16.xpose.msra.mxu0 0
      %1166 = vmatprep.subr.bf16.mxu0 0
      %1167 = vmatpush1.bf16.xpose.msra.mxu0 0
      %1168 = vmatprep.subr.bf16.mxu0 0
      %1169 = vmatpush1.bf16.xpose.msra.mxu0 0
      %1170 = vmatprep.subr.bf16.mxu0 0
      %1171 = vmatpush1.bf16.xpose.msra.mxu0 0
      %1172 = vmatprep.subr.bf16.mxu0 0
      %1173 = vmatpush1.bf16.xpose.msra.mxu0 0
      %1174 = vmatprep.subr.bf16.mxu0 0
      %1175 = vmatpush1.bf16.xpose.msra.mxu0 0
      %1176 = vmatprep.subr.bf16.mxu0 0
      %1177 = vmatpush1.bf16.xpose.msra.mxu0 0
      %1178 = vmatprep.subr.bf16.mxu0 0
      %1179 = vmatpush1.bf16.xpose.msra.mxu0 0
      %1180 = vmatprep.mubr.bf16.mxu0 0
      %1181 = vmatmul.mubr.bf16.gmra.mrb[0].mxu0 %v1143
      %v1182 = vpop.f32.mrb[0].mxu0
      %v1183 = vadd.f32 0.0, %v1182
      %v1184 = vpop.f32.mrb[0].mxu0
      %v1185 = vpop.f32.mrb[0].mxu0
      %v1186 = vpop.f32.mrb[0].mxu0
      %1187 = vdwg.mxu0
      %v1189 = vsel %vm1141, %v1136, 0
      %v1192 = vsel %vm1141, %v1138, 0
      %1194 = vmatprep.subr.bf16.mxu0 0
      %1195 = vmatpush1.bf16.xpose.msra.mxu0 %v1192
      %1196 = vmatprep.subr.bf16.mxu0 0
      %1197 = vmatpush1.bf16.xpose.msra.mxu0 0
      %1198 = vmatprep.subr.bf16.mxu0 0
      %1199 = vmatpush1.bf16.xpose.msra.mxu0 0
      %1200 = vmatprep.subr.bf16.mxu0 0
      %1201 = vmatpush1.bf16.xpose.msra.mxu0 0
      %1202 = vmatprep.subr.bf16.mxu0 0
      %1203 = vmatpush1.bf16.xpose.msra.mxu0 0
      %1204 = vmatprep.subr.bf16.mxu0 0
      %1205 = vmatpush1.bf16.xpose.msra.mxu0 0
      %1206 = vmatprep.subr.bf16.mxu0 0
      %1207 = vmatpush1.bf16.xpose.msra.mxu0 0
      %1208 = vmatprep.subr.bf16.mxu0 0
      %1209 = vmatpush1.bf16.xpose.msra.mxu0 0
      %1210 = vmatprep.subr.bf16.mxu0 0
      %1211 = vmatpush1.bf16.xpose.msra.mxu0 0
      %1212 = vmatprep.subr.bf16.mxu0 0
      %1213 = vmatpush1.bf16.xpose.msra.mxu0 0
      %1214 = vmatprep.subr.bf16.mxu0 0
      %1215 = vmatpush1.bf16.xpose.msra.mxu0 0
      %1216 = vmatprep.subr.bf16.mxu0 0
      %1217 = vmatpush1.bf16.xpose.msra.mxu0 0
      %1218 = vmatprep.subr.bf16.mxu0 0
      %1219 = vmatpush1.bf16.xpose.msra.mxu0 0
      %1220 = vmatprep.subr.bf16.mxu0 0
      %1221 = vmatpush1.bf16.xpose.msra.mxu0 0
      %1222 = vmatprep.subr.bf16.mxu0 0
      %1223 = vmatpush1.bf16.xpose.msra.mxu0 0
      %1224 = vmatprep.subr.bf16.mxu0 0
      %1225 = vmatpush1.bf16.xpose.msra.mxu0 0
      %1226 = vmatprep.mubr.bf16.mxu0 0
      %1227 = vmatmul.mubr.bf16.gmra.mrb[0].mxu0 %v1189
      %v1228 = vpop.f32.mrb[0].mxu0
      %v1229 = vadd.f32 0.0, %v1228
      %v1230 = vpop.f32.mrb[0].mxu0
      %v1231 = vpop.f32.mrb[0].mxu0
      %v1232 = vpop.f32.mrb[0].mxu0
      %1233 = vdwg.mxu0
      %v1234 = vmul.f32 %v1183, 0.25
      %v1235 = vmul.f32 %v1229, 0.25
      %vm1236 = vcmask 64512
      %v1237 = vsel %vm1236, %v1234, -inf
      %1238 = vmax.xlane.f32.xlu0 %v1237
      %v1239 = vpop.xlane.xlu0 %1238
      %v1240 = vsel %vm1236, %v1235, -inf
      %1241 = vmax.xlane.f32.xlu0 %v1240
      %v1242 = vpop.xlane.xlu0 %1241
      %v1243 = vsub.f32 %v1234, %v1239
      %v1244 = vsub.f32 %v1235, %v1242
      %v1245 = vmul.f32 %v1243, 1.442695
      %v1246 = vpow.pop %v1245
      %v1247 = vmul.f32 %v1244, 1.442695
      %v1248 = vpow.pop %v1247
      %v1249 = vsel %vm1236, %v1246, 0.0
      %1250 = vadd.xlane.f32.xlu0 %v1249
      %v1251 = vpop.xlane.xlu0 %1250
      %v1252 = vsel %vm1236, %v1248, 0.0
      %1253 = vadd.xlane.f32.xlu0 %v1252
      %v1254 = vpop.xlane.xlu0 %1253
      %v1255 = vrcp.pop %v1251
      %v1256 = vrcp.pop %v1254
      %v1257 = vmul.f32 %v1246, %v1255
      %v1258 = vmul.f32 %v1248, %v1256
      %v1259 = vpack.c.bf16 %v1257, %v1257
      %v1260 = vpack.c.bf16 %v1258, %v1258
      %v1262 = vsel %vm1236, %v1259, 0
      %vm1264 = vcmask 1043456
      %v1266 = vsel %vm1264, %v1139, 0
      %1268 = vmatprep.subr.bf16.mxu0 0
      %1269 = vmatpush1.bf16.msra.mxu0 %v1266
      %1270 = vmatprep.subr.bf16.mxu0 0
      %1271 = vmatpush1.bf16.msra.mxu0 0
      %1272 = vmatprep.subr.bf16.mxu0 0
      %1273 = vmatpush1.bf16.msra.mxu0 0
      %1274 = vmatprep.subr.bf16.mxu0 0
      %1275 = vmatpush1.bf16.msra.mxu0 0
      %1276 = vmatprep.subr.bf16.mxu0 0
      %1277 = vmatpush1.bf16.msra.mxu0 0
      %1278 = vmatprep.subr.bf16.mxu0 0
      %1279 = vmatpush1.bf16.msra.mxu0 0
      %1280 = vmatprep.subr.bf16.mxu0 0
      %1281 = vmatpush1.bf16.msra.mxu0 0
      %1282 = vmatprep.subr.bf16.mxu0 0
      %1283 = vmatpush1.bf16.msra.mxu0 0
      %1284 = vmatprep.subr.bf16.mxu0 0
      %1285 = vmatpush1.bf16.msra.mxu0 0
      %1286 = vmatprep.subr.bf16.mxu0 0
      %1287 = vmatpush1.bf16.msra.mxu0 0
      %1288 = vmatprep.subr.bf16.mxu0 0
      %1289 = vmatpush1.bf16.msra.mxu0 0
      %1290 = vmatprep.subr.bf16.mxu0 0
      %1291 = vmatpush1.bf16.msra.mxu0 0
      %1292 = vmatprep.subr.bf16.mxu0 0
      %1293 = vmatpush1.bf16.msra.mxu0 0
      %1294 = vmatprep.subr.bf16.mxu0 0
      %1295 = vmatpush1.bf16.msra.mxu0 0
      %1296 = vmatprep.subr.bf16.mxu0 0
      %1297 = vmatpush1.bf16.msra.mxu0 0
      %1298 = vmatprep.subr.bf16.mxu0 0
      %1299 = vmatpush1.bf16.msra.mxu0 0
      %1300 = vmatprep.mubr.bf16.mxu0 0
      %1301 = vmatmul.mubr.bf16.gmra.mrb[0].mxu0 %v1262
      %v1302 = vpop.f32.mrb[0].mxu0
      %v1303 = vadd.f32 0.0, %v1302
      %v1304 = vpop.f32.mrb[0].mxu0
      %v1305 = vpop.f32.mrb[0].mxu0
      %v1306 = vpop.f32.mrb[0].mxu0
      %1307 = vdwg.mxu0
      %v1309 = vsel %vm1236, %v1260, 0
      %v1312 = vsel %vm1264, %v1140, 0
      %1314 = vmatprep.subr.bf16.mxu0 0
      %1315 = vmatpush1.bf16.msra.mxu0 %v1312
      %1316 = vmatprep.subr.bf16.mxu0 0
      %1317 = vmatpush1.bf16.msra.mxu0 0
      %1318 = vmatprep.subr.bf16.mxu0 0
      %1319 = vmatpush1.bf16.msra.mxu0 0
      %1320 = vmatprep.subr.bf16.mxu0 0
      %1321 = vmatpush1.bf16.msra.mxu0 0
      %1322 = vmatprep.subr.bf16.mxu0 0
      %1323 = vmatpush1.bf16.msra.mxu0 0
      %1324 = vmatprep.subr.bf16.mxu0 0
      %1325 = vmatpush1.bf16.msra.mxu0 0
      %1326 = vmatprep.subr.bf16.mxu0 0
      %1327 = vmatpush1.bf16.msra.mxu0 0
      %1328 = vmatprep.subr.bf16.mxu0 0
      %1329 = vmatpush1.bf16.msra.mxu0 0
      %1330 = vmatprep.subr.bf16.mxu0 0
      %1331 = vmatpush1.bf16.msra.mxu0 0
      %1332 = vmatprep.subr.bf16.mxu0 0
      %1333 = vmatpush1.bf16.msra.mxu0 0
      %1334 = vmatprep.subr.bf16.mxu0 0
      %1335 = vmatpush1.bf16.msra.mxu0 0
      %1336 = vmatprep.subr.bf16.mxu0 0
      %1337 = vmatpush1.bf16.msra.mxu0 0
      %1338 = vmatprep.subr.bf16.mxu0 0
      %1339 = vmatpush1.bf16.msra.mxu0 0
      %1340 = vmatprep.subr.bf16.mxu0 0
      %1341 = vmatpush1.bf16.msra.mxu0 0
      %1342 = vmatprep.subr.bf16.mxu0 0
      %1343 = vmatpush1.bf16.msra.mxu0 0
      %1344 = vmatprep.subr.bf16.mxu0 0
      %1345 = vmatpush1.bf16.msra.mxu0 0
      %1346 = vmatprep.mubr.bf16.mxu0 0
      %1347 = vmatmul.mubr.bf16.gmra.mrb[0].mxu0 %v1309
      %v1348 = vpop.f32.mrb[0].mxu0
      %v1349 = vadd.f32 0.0, %v1348
      %v1350 = vpop.f32.mrb[0].mxu0
      %v1351 = vpop.f32.mrb[0].mxu0
      %v1352 = vpop.f32.mrb[0].mxu0
      %1353 = vdwg.mxu0
      %v1354 = vpack.c.bf16 %v1349, %v1303
      %v1356 = vlaneseq
      %v1357 = vshrl.u32 %v1356, 7
      %v1358 = vsub.s32 0, %v1357
      %v1359 = vrot.slane %v899, %v1358
      %v1369 = vunpack.c.l.b16 %v810
      %v1370 = vunpack.c.l.b16 %v811
      %v1371 = vunpack.c.l.b16 %v812
      %v1372 = vunpack.c.l.b16 %v813
      %v1373 = vunpack.c.l.b16 %v814
      %v1374 = vunpack.c.l.b16 %v815
      %v1375 = vunpack.c.l.b16 %v816
      %v1376 = vunpack.c.l.b16 %v817
      %v1377 = vpack.c.b16 %v1370, %v1369
      %v1378 = vpack.c.b16 %v1372, %v1371
      %v1379 = vpack.c.b16 %v1374, %v1373
      %v1380 = vpack.c.b16 %v1376, %v1375
      %1385 = vmatprep.subr.bf16.mxu0 0
      %1386 = vmatpush1.bf16.msra.mxu0 %v1377
      %1387 = vmatprep.subr.bf16.mxu0 0
      %1388 = vmatpush1.bf16.msra.mxu0 %v1378
      %1389 = vmatprep.subr.bf16.mxu0 0
      %1390 = vmatpush1.bf16.msra.mxu0 %v1379
      %1391 = vmatprep.subr.bf16.mxu0 0
      %1392 = vmatpush1.bf16.msra.mxu0 %v1380
      %1393 = vmatprep.subr.bf16.mxu0 0
      %1394 = vmatpush1.bf16.msra.mxu0 0
      %1395 = vmatprep.subr.bf16.mxu0 0
      %1396 = vmatpush1.bf16.msra.mxu0 0
      %1397 = vmatprep.subr.bf16.mxu0 0
      %1398 = vmatpush1.bf16.msra.mxu0 0
      %1399 = vmatprep.subr.bf16.mxu0 0
      %1400 = vmatpush1.bf16.msra.mxu0 0
      %1401 = vmatprep.subr.bf16.mxu0 0
      %1402 = vmatpush1.bf16.msra.mxu0 0
      %1403 = vmatprep.subr.bf16.mxu0 0
      %1404 = vmatpush1.bf16.msra.mxu0 0
      %1405 = vmatprep.subr.bf16.mxu0 0
      %1406 = vmatpush1.bf16.msra.mxu0 0
      %1407 = vmatprep.subr.bf16.mxu0 0
      %1408 = vmatpush1.bf16.msra.mxu0 0
      %1409 = vmatprep.subr.bf16.mxu0 0
      %1410 = vmatpush1.bf16.msra.mxu0 0
      %1411 = vmatprep.subr.bf16.mxu0 0
      %1412 = vmatpush1.bf16.msra.mxu0 0
      %1413 = vmatprep.subr.bf16.mxu0 0
      %1414 = vmatpush1.bf16.msra.mxu0 0
      %1415 = vmatprep.subr.bf16.mxu0 0
      %1416 = vmatpush1.bf16.msra.mxu0 0
      %1417 = vmatprep.mubr.bf16.mxu0 0
      %1418 = vmatmul.mubr.bf16.gmra.mrb[0].mxu0 %v950
      %v1419 = vpop.f32.mrb[0].mxu0
      %v1420 = vadd.f32 %v1359, %v1419
      %v1421 = vpop.f32.mrb[0].mxu0
      %v1422 = vpop.f32.mrb[0].mxu0
      %v1423 = vadd.f32 %v1359, %v1422
      %v1424 = vpop.f32.mrb[0].mxu0
      %1425 = vdwg.mxu0
      %v1427 = vlaneseq
      %v1428 = vshrl.u32 %v1427, 7
      %v1429 = vsub.s32 0, %v1428
      %v1430 = vrot.slane %v903, %v1429
      %v1440 = vunpack.c.l.b16 %v842
      %v1441 = vunpack.c.l.b16 %v843
      %v1442 = vunpack.c.l.b16 %v844
      %v1443 = vunpack.c.l.b16 %v845
      %v1444 = vunpack.c.l.b16 %v846
      %v1445 = vunpack.c.l.b16 %v847
      %v1446 = vunpack.c.l.b16 %v848
      %v1447 = vunpack.c.l.b16 %v849
      %v1448 = vpack.c.b16 %v1441, %v1440
      %v1449 = vpack.c.b16 %v1443, %v1442
      %v1450 = vpack.c.b16 %v1445, %v1444
      %v1451 = vpack.c.b16 %v1447, %v1446
      %1456 = vmatprep.subr.bf16.mxu0 0
      %1457 = vmatpush1.bf16.msra.mxu0 %v1448
      %1458 = vmatprep.subr.bf16.mxu0 0
      %1459 = vmatpush1.bf16.msra.mxu0 %v1449
      %1460 = vmatprep.subr.bf16.mxu0 0
      %1461 = vmatpush1.bf16.msra.mxu0 %v1450
      %1462 = vmatprep.subr.bf16.mxu0 0
      %1463 = vmatpush1.bf16.msra.mxu0 %v1451
      %1464 = vmatprep.subr.bf16.mxu0 0
      %1465 = vmatpush1.bf16.msra.mxu0 0
      %1466 = vmatprep.subr.bf16.mxu0 0
      %1467 = vmatpush1.bf16.msra.mxu0 0
      %1468 = vmatprep.subr.bf16.mxu0 0
      %1469 = vmatpush1.bf16.msra.mxu0 0
      %1470 = vmatprep.subr.bf16.mxu0 0
      %1471 = vmatpush1.bf16.msra.mxu0 0
      %1472 = vmatprep.subr.bf16.mxu0 0
      %1473 = vmatpush1.bf16.msra.mxu0 0
      %1474 = vmatprep.subr.bf16.mxu0 0
      %1475 = vmatpush1.bf16.msra.mxu0 0
      %1476 = vmatprep.subr.bf16.mxu0 0
      %1477 = vmatpush1.bf16.msra.mxu0 0
      %1478 = vmatprep.subr.bf16.mxu0 0
      %1479 = vmatpush1.bf16.msra.mxu0 0
      %1480 = vmatprep.subr.bf16.mxu0 0
      %1481 = vmatpush1.bf16.msra.mxu0 0
      %1482 = vmatprep.subr.bf16.mxu0 0
      %1483 = vmatpush1.bf16.msra.mxu0 0
      %1484 = vmatprep.subr.bf16.mxu0 0
      %1485 = vmatpush1.bf16.msra.mxu0 0
      %1486 = vmatprep.subr.bf16.mxu0 0
      %1487 = vmatpush1.bf16.msra.mxu0 0
      %1488 = vmatprep.mubr.bf16.mxu0 0
      %1489 = vmatmul.mubr.bf16.gmra.mrb[0].mxu0 %v950
      %v1490 = vpop.f32.mrb[0].mxu0
      %v1491 = vadd.f32 %v1430, %v1490
      %v1492 = vpop.f32.mrb[0].mxu0
      %v1493 = vpop.f32.mrb[0].mxu0
      %v1494 = vadd.f32 %v1430, %v1493
      %v1495 = vpop.f32.mrb[0].mxu0
      %1496 = vdwg.mxu0
      %v1498 = vlaneseq
      %v1499 = vshrl.u32 %v1498, 7
      %v1500 = vsub.s32 0, %v1499
      %v1501 = vrot.slane %v907, %v1500
      %v1511 = vunpack.c.l.b16 %v874
      %v1512 = vunpack.c.l.b16 %v875
      %v1513 = vunpack.c.l.b16 %v876
      %v1514 = vunpack.c.l.b16 %v877
      %v1515 = vunpack.c.l.b16 %v878
      %v1516 = vunpack.c.l.b16 %v879
      %v1517 = vunpack.c.l.b16 %v880
      %v1518 = vunpack.c.l.b16 %v881
      %v1519 = vpack.c.b16 %v1512, %v1511
      %v1520 = vpack.c.b16 %v1514, %v1513
      %v1521 = vpack.c.b16 %v1516, %v1515
      %v1522 = vpack.c.b16 %v1518, %v1517
      %1527 = vmatprep.subr.bf16.mxu0 0
      %1528 = vmatpush1.bf16.msra.mxu0 %v1519
      %1529 = vmatprep.subr.bf16.mxu0 0
      %1530 = vmatpush1.bf16.msra.mxu0 %v1520
      %1531 = vmatprep.subr.bf16.mxu0 0
      %1532 = vmatpush1.bf16.msra.mxu0 %v1521
      %1533 = vmatprep.subr.bf16.mxu0 0
      %1534 = vmatpush1.bf16.msra.mxu0 %v1522
      %1535 = vmatprep.subr.bf16.mxu0 0
      %1536 = vmatpush1.bf16.msra.mxu0 0
      %1537 = vmatprep.subr.bf16.mxu0 0
      %1538 = vmatpush1.bf16.msra.mxu0 0
      %1539 = vmatprep.subr.bf16.mxu0 0
      %1540 = vmatpush1.bf16.msra.mxu0 0
      %1541 = vmatprep.subr.bf16.mxu0 0
      %1542 = vmatpush1.bf16.msra.mxu0 0
      %1543 = vmatprep.subr.bf16.mxu0 0
      %1544 = vmatpush1.bf16.msra.mxu0 0
      %1545 = vmatprep.subr.bf16.mxu0 0
      %1546 = vmatpush1.bf16.msra.mxu0 0
      %1547 = vmatprep.subr.bf16.mxu0 0
      %1548 = vmatpush1.bf16.msra.mxu0 0
      %1549 = vmatprep.subr.bf16.mxu0 0
      %1550 = vmatpush1.bf16.msra.mxu0 0
      %1551 = vmatprep.subr.bf16.mxu0 0
      %1552 = vmatpush1.bf16.msra.mxu0 0
      %1553 = vmatprep.subr.bf16.mxu0 0
      %1554 = vmatpush1.bf16.msra.mxu0 0
      %1555 = vmatprep.subr.bf16.mxu0 0
      %1556 = vmatpush1.bf16.msra.mxu0 0
      %1557 = vmatprep.subr.bf16.mxu0 0
      %1558 = vmatpush1.bf16.msra.mxu0 0
      %1559 = vmatprep.mubr.bf16.mxu0 0
      %1560 = vmatmul.mubr.bf16.gmra.mrb[0].mxu0 %v950
      %v1561 = vpop.f32.mrb[0].mxu0
      %v1562 = vadd.f32 %v1501, %v1561
      %v1563 = vpop.f32.mrb[0].mxu0
      %v1564 = vpop.f32.mrb[0].mxu0
      %v1565 = vadd.f32 %v1501, %v1564
      %v1566 = vpop.f32.mrb[0].mxu0
      %1567 = vdwg.mxu0
      %v1568 = vpack.c.bf16 %v1420, %v1420
      %v1569 = vpack.c.bf16 %v1423, %v1423
      %v1570 = vpack.c.bf16 %v1491, %v1491
      %v1571 = vpack.c.bf16 %v1494, %v1494
      %v1572 = vpack.c.bf16 %v1562, %v1562
      %v1573 = vpack.c.bf16 %v1565, %v1565
      %v1575 = vsel %vm1141, %v1568, 0
      %v1578 = vsel %vm1141, %v1570, 0
      %1580 = vmatprep.subr.bf16.mxu0 0
      %1581 = vmatpush1.bf16.xpose.msra.mxu0 %v1578
      %1582 = vmatprep.subr.bf16.mxu0 0
      %1583 = vmatpush1.bf16.xpose.msra.mxu0 0
      %1584 = vmatprep.subr.bf16.mxu0 0
      %1585 = vmatpush1.bf16.xpose.msra.mxu0 0
      %1586 = vmatprep.subr.bf16.mxu0 0
      %1587 = vmatpush1.bf16.xpose.msra.mxu0 0
      %1588 = vmatprep.subr.bf16.mxu0 0
      %1589 = vmatpush1.bf16.xpose.msra.mxu0 0
      %1590 = vmatprep.subr.bf16.mxu0 0
      %1591 = vmatpush1.bf16.xpose.msra.mxu0 0
      %1592 = vmatprep.subr.bf16.mxu0 0
      %1593 = vmatpush1.bf16.xpose.msra.mxu0 0
      %1594 = vmatprep.subr.bf16.mxu0 0
      %1595 = vmatpush1.bf16.xpose.msra.mxu0 0
      %1596 = vmatprep.subr.bf16.mxu0 0
      %1597 = vmatpush1.bf16.xpose.msra.mxu0 0
      %1598 = vmatprep.subr.bf16.mxu0 0
      %1599 = vmatpush1.bf16.xpose.msra.mxu0 0
      %1600 = vmatprep.subr.bf16.mxu0 0
      %1601 = vmatpush1.bf16.xpose.msra.mxu0 0
      %1602 = vmatprep.subr.bf16.mxu0 0
      %1603 = vmatpush1.bf16.xpose.msra.mxu0 0
      %1604 = vmatprep.subr.bf16.mxu0 0
      %1605 = vmatpush1.bf16.xpose.msra.mxu0 0
      %1606 = vmatprep.subr.bf16.mxu0 0
      %1607 = vmatpush1.bf16.xpose.msra.mxu0 0
      %1608 = vmatprep.subr.bf16.mxu0 0
      %1609 = vmatpush1.bf16.xpose.msra.mxu0 0
      %1610 = vmatprep.subr.bf16.mxu0 0
      %1611 = vmatpush1.bf16.xpose.msra.mxu0 0
      %1612 = vmatprep.mubr.bf16.mxu0 0
      %1613 = vmatmul.mubr.bf16.gmra.mrb[0].mxu0 %v1575
      %v1614 = vpop.f32.mrb[0].mxu0
      %v1615 = vadd.f32 0.0, %v1614
      %v1616 = vpop.f32.mrb[0].mxu0
      %v1617 = vpop.f32.mrb[0].mxu0
      %v1618 = vpop.f32.mrb[0].mxu0
      %1619 = vdwg.mxu0
      %v1621 = vsel %vm1141, %v1569, 0
      %v1624 = vsel %vm1141, %v1571, 0
      %1626 = vmatprep.subr.bf16.mxu0 0
      %1627 = vmatpush1.bf16.xpose.msra.mxu0 %v1624
      %1628 = vmatprep.subr.bf16.mxu0 0
      %1629 = vmatpush1.bf16.xpose.msra.mxu0 0
      %1630 = vmatprep.subr.bf16.mxu0 0
      %1631 = vmatpush1.bf16.xpose.msra.mxu0 0
      %1632 = vmatprep.subr.bf16.mxu0 0
      %1633 = vmatpush1.bf16.xpose.msra.mxu0 0
      %1634 = vmatprep.subr.bf16.mxu0 0
      %1635 = vmatpush1.bf16.xpose.msra.mxu0 0
      %1636 = vmatprep.subr.bf16.mxu0 0
      %1637 = vmatpush1.bf16.xpose.msra.mxu0 0
      %1638 = vmatprep.subr.bf16.mxu0 0
      %1639 = vmatpush1.bf16.xpose.msra.mxu0 0
      %1640 = vmatprep.subr.bf16.mxu0 0
      %1641 = vmatpush1.bf16.xpose.msra.mxu0 0
      %1642 = vmatprep.subr.bf16.mxu0 0
      %1643 = vmatpush1.bf16.xpose.msra.mxu0 0
      %1644 = vmatprep.subr.bf16.mxu0 0
      %1645 = vmatpush1.bf16.xpose.msra.mxu0 0
      %1646 = vmatprep.subr.bf16.mxu0 0
      %1647 = vmatpush1.bf16.xpose.msra.mxu0 0
      %1648 = vmatprep.subr.bf16.mxu0 0
      %1649 = vmatpush1.bf16.xpose.msra.mxu0 0
      %1650 = vmatprep.subr.bf16.mxu0 0
      %1651 = vmatpush1.bf16.xpose.msra.mxu0 0
      %1652 = vmatprep.subr.bf16.mxu0 0
      %1653 = vmatpush1.bf16.xpose.msra.mxu0 0
      %1654 = vmatprep.subr.bf16.mxu0 0
      %1655 = vmatpush1.bf16.xpose.msra.mxu0 0
      %1656 = vmatprep.subr.bf16.mxu0 0
      %1657 = vmatpush1.bf16.xpose.msra.mxu0 0
      %1658 = vmatprep.mubr.bf16.mxu0 0
      %1659 = vmatmul.mubr.bf16.gmra.mrb[0].mxu0 %v1621
      %v1660 = vpop.f32.mrb[0].mxu0
      %v1661 = vadd.f32 0.0, %v1660
      %v1662 = vpop.f32.mrb[0].mxu0
      %v1663 = vpop.f32.mrb[0].mxu0
      %v1664 = vpop.f32.mrb[0].mxu0
      %1665 = vdwg.mxu0
      %v1666 = vmul.f32 %v1615, 0.25
      %v1667 = vmul.f32 %v1661, 0.25
      %v1668 = vsel %vm1236, %v1666, -inf
      %1669 = vmax.xlane.f32.xlu0 %v1668
      %v1670 = vpop.xlane.xlu0 %1669
      %v1671 = vsel %vm1236, %v1667, -inf
      %1672 = vmax.xlane.f32.xlu0 %v1671
      %v1673 = vpop.xlane.xlu0 %1672
      %v1674 = vsub.f32 %v1666, %v1670
      %v1675 = vsub.f32 %v1667, %v1673
      %v1676 = vmul.f32 %v1674, 1.442695
      %v1677 = vpow.pop %v1676
      %v1678 = vmul.f32 %v1675, 1.442695
      %v1679 = vpow.pop %v1678
      %v1680 = vsel %vm1236, %v1677, 0.0
      %1681 = vadd.xlane.f32.xlu0 %v1680
      %v1682 = vpop.xlane.xlu0 %1681
      %v1683 = vsel %vm1236, %v1679, 0.0
      %1684 = vadd.xlane.f32.xlu0 %v1683
      %v1685 = vpop.xlane.xlu0 %1684
      %v1686 = vrcp.pop %v1682
      %v1687 = vrcp.pop %v1685
      %v1688 = vmul.f32 %v1677, %v1686
      %v1689 = vmul.f32 %v1679, %v1687
      %v1690 = vpack.c.bf16 %v1688, %v1688
      %v1691 = vpack.c.bf16 %v1689, %v1689
      %v1693 = vsel %vm1236, %v1690, 0
      %v1696 = vsel %vm1264, %v1572, 0
      %1698 = vmatprep.subr.bf16.mxu0 0
      %1699 = vmatpush1.bf16.msra.mxu0 %v1696
      %1700 = vmatprep.subr.bf16.mxu0 0
      %1701 = vmatpush1.bf16.msra.mxu0 0
      %1702 = vmatprep.subr.bf16.mxu0 0
      %1703 = vmatpush1.bf16.msra.mxu0 0
      %1704 = vmatprep.subr.bf16.mxu0 0
      %1705 = vmatpush1.bf16.msra.mxu0 0
      %1706 = vmatprep.subr.bf16.mxu0 0
      %1707 = vmatpush1.bf16.msra.mxu0 0
      %1708 = vmatprep.subr.bf16.mxu0 0
      %1709 = vmatpush1.bf16.msra.mxu0 0
      %1710 = vmatprep.subr.bf16.mxu0 0
      %1711 = vmatpush1.bf16.msra.mxu0 0
      %1712 = vmatprep.subr.bf16.mxu0 0
      %1713 = vmatpush1.bf16.msra.mxu0 0
      %1714 = vmatprep.subr.bf16.mxu0 0
      %1715 = vmatpush1.bf16.msra.mxu0 0
      %1716 = vmatprep.subr.bf16.mxu0 0
      %1717 = vmatpush1.bf16.msra.mxu0 0
      %1718 = vmatprep.subr.bf16.mxu0 0
      %1719 = vmatpush1.bf16.msra.mxu0 0
      %1720 = vmatprep.subr.bf16.mxu0 0
      %1721 = vmatpush1.bf16.msra.mxu0 0
      %1722 = vmatprep.subr.bf16.mxu0 0
      %1723 = vmatpush1.bf16.msra.mxu0 0
      %1724 = vmatprep.subr.bf16.mxu0 0
      %1725 = vmatpush1.bf16.msra.mxu0 0
      %1726 = vmatprep.subr.bf16.mxu0 0
      %1727 = vmatpush1.bf16.msra.mxu0 0
      %1728 = vmatprep.subr.bf16.mxu0 0
      %1729 = vmatpush1.bf16.msra.mxu0 0
      %1730 = vmatprep.mubr.bf16.mxu0 0
      %1731 = vmatmul.mubr.bf16.gmra.mrb[0].mxu0 %v1693
      %v1732 = vpop.f32.mrb[0].mxu0
      %v1733 = vadd.f32 0.0, %v1732
      %v1734 = vpop.f32.mrb[0].mxu0
      %v1735 = vpop.f32.mrb[0].mxu0
      %v1736 = vpop.f32.mrb[0].mxu0
      %1737 = vdwg.mxu0
      %v1739 = vsel %vm1236, %v1691, 0
      %v1742 = vsel %vm1264, %v1573, 0
      %1744 = vmatprep.subr.bf16.mxu0 0
      %1745 = vmatpush1.bf16.msra.mxu0 %v1742
      %1746 = vmatprep.subr.bf16.mxu0 0
      %1747 = vmatpush1.bf16.msra.mxu0 0
      %1748 = vmatprep.subr.bf16.mxu0 0
      %1749 = vmatpush1.bf16.msra.mxu0 0
      %1750 = vmatprep.subr.bf16.mxu0 0
      %1751 = vmatpush1.bf16.msra.mxu0 0
      %1752 = vmatprep.subr.bf16.mxu0 0
      %1753 = vmatpush1.bf16.msra.mxu0 0
      %1754 = vmatprep.subr.bf16.mxu0 0
      %1755 = vmatpush1.bf16.msra.mxu0 0
      %1756 = vmatprep.subr.bf16.mxu0 0
      %1757 = vmatpush1.bf16.msra.mxu0 0
      %1758 = vmatprep.subr.bf16.mxu0 0
      %1759 = vmatpush1.bf16.msra.mxu0 0
      %1760 = vmatprep.subr.bf16.mxu0 0
      %1761 = vmatpush1.bf16.msra.mxu0 0
      %1762 = vmatprep.subr.bf16.mxu0 0
      %1763 = vmatpush1.bf16.msra.mxu0 0
      %1764 = vmatprep.subr.bf16.mxu0 0
      %1765 = vmatpush1.bf16.msra.mxu0 0
      %1766 = vmatprep.subr.bf16.mxu0 0
      %1767 = vmatpush1.bf16.msra.mxu0 0
      %1768 = vmatprep.subr.bf16.mxu0 0
      %1769 = vmatpush1.bf16.msra.mxu0 0
      %1770 = vmatprep.subr.bf16.mxu0 0
      %1771 = vmatpush1.bf16.msra.mxu0 0
      %1772 = vmatprep.subr.bf16.mxu0 0
      %1773 = vmatpush1.bf16.msra.mxu0 0
      %1774 = vmatprep.subr.bf16.mxu0 0
      %1775 = vmatpush1.bf16.msra.mxu0 0
      %1776 = vmatprep.mubr.bf16.mxu0 0
      %1777 = vmatmul.mubr.bf16.gmra.mrb[0].mxu0 %v1739
      %v1778 = vpop.f32.mrb[0].mxu0
      %v1779 = vadd.f32 0.0, %v1778
      %v1780 = vpop.f32.mrb[0].mxu0
      %v1781 = vpop.f32.mrb[0].mxu0
      %v1782 = vpop.f32.mrb[0].mxu0
      %1783 = vdwg.mxu0
      %v1784 = vpack.c.bf16 %v1779, %v1733
      %v1787 = vunpack.c.l.b16 %v912
      %v1788 = vunpack.c.l.b16 %v913
      %v1789 = vpack.c.b16 %v1788, %v1787
      %v1792 = vsel %vm1141, %v1784, 0
      %1794 = vmatprep.subr.bf16.mxu0 0
      %1795 = vmatpush1.bf16.msra.mxu0 %v1789
      %1796 = vmatprep.subr.bf16.mxu0 0
      %1797 = vmatpush1.bf16.msra.mxu0 0
      %1798 = vmatprep.subr.bf16.mxu0 0
      %1799 = vmatpush1.bf16.msra.mxu0 0
      %1800 = vmatprep.subr.bf16.mxu0 0
      %1801 = vmatpush1.bf16.msra.mxu0 0
      %1802 = vmatprep.subr.bf16.mxu0 0
      %1803 = vmatpush1.bf16.msra.mxu0 0
      %1804 = vmatprep.subr.bf16.mxu0 0
      %1805 = vmatpush1.bf16.msra.mxu0 0
      %1806 = vmatprep.subr.bf16.mxu0 0
      %1807 = vmatpush1.bf16.msra.mxu0 0
      %1808 = vmatprep.subr.bf16.mxu0 0
      %1809 = vmatpush1.bf16.msra.mxu0 0
      %1810 = vmatprep.subr.bf16.mxu0 0
      %1811 = vmatpush1.bf16.msra.mxu0 0
      %1812 = vmatprep.subr.bf16.mxu0 0
      %1813 = vmatpush1.bf16.msra.mxu0 0
      %1814 = vmatprep.subr.bf16.mxu0 0
      %1815 = vmatpush1.bf16.msra.mxu0 0
      %1816 = vmatprep.subr.bf16.mxu0 0
      %1817 = vmatpush1.bf16.msra.mxu0 0
      %1818 = vmatprep.subr.bf16.mxu0 0
      %1819 = vmatpush1.bf16.msra.mxu0 0
      %1820 = vmatprep.subr.bf16.mxu0 0
      %1821 = vmatpush1.bf16.msra.mxu0 0
      %1822 = vmatprep.subr.bf16.mxu0 0
      %1823 = vmatpush1.bf16.msra.mxu0 0
      %1824 = vmatprep.subr.bf16.mxu0 0
      %1825 = vmatpush1.bf16.msra.mxu0 0
      %1826 = vmatprep.mubr.bf16.mxu0 0
      %1827 = vmatmul.mubr.bf16.gmra.mrb[0].mxu0 %v1792
      %v1828 = vpop.f32.mrb[0].mxu0
      %v1829 = vadd.f32 0.0, %v1828
      %v1830 = vpop.f32.mrb[0].mxu0
      %v1831 = vpop.f32.mrb[0].mxu0
      %v1832 = vadd.f32 0.0, %v1831
      %v1833 = vpop.f32.mrb[0].mxu0
      %1834 = vdwg.mxu0
      %v1837 = vunpack.c.l.b16 %v910
      %v1838 = vunpack.c.l.b16 %v911
      %v1839 = vpack.c.b16 %v1838, %v1837
      %v1842 = vsel %vm1141, %v1354, 0
      %1844 = vmatprep.subr.bf16.mxu0 0
      %1845 = vmatpush1.bf16.msra.mxu0 %v1839
      %1846 = vmatprep.subr.bf16.mxu0 0
      %1847 = vmatpush1.bf16.msra.mxu0 0
      %1848 = vmatprep.subr.bf16.mxu0 0
      %1849 = vmatpush1.bf16.msra.mxu0 0
      %1850 = vmatprep.subr.bf16.mxu0 0
      %1851 = vmatpush1.bf16.msra.mxu0 0
      %1852 = vmatprep.subr.bf16.mxu0 0
      %1853 = vmatpush1.bf16.msra.mxu0 0
      %1854 = vmatprep.subr.bf16.mxu0 0
      %1855 = vmatpush1.bf16.msra.mxu0 0
      %1856 = vmatprep.subr.bf16.mxu0 0
      %1857 = vmatpush1.bf16.msra.mxu0 0
      %1858 = vmatprep.subr.bf16.mxu0 0
      %1859 = vmatpush1.bf16.msra.mxu0 0
      %1860 = vmatprep.subr.bf16.mxu0 0
      %1861 = vmatpush1.bf16.msra.mxu0 0
      %1862 = vmatprep.subr.bf16.mxu0 0
      %1863 = vmatpush1.bf16.msra.mxu0 0
      %1864 = vmatprep.subr.bf16.mxu0 0
      %1865 = vmatpush1.bf16.msra.mxu0 0
      %1866 = vmatprep.subr.bf16.mxu0 0
      %1867 = vmatpush1.bf16.msra.mxu0 0
      %1868 = vmatprep.subr.bf16.mxu0 0
      %1869 = vmatpush1.bf16.msra.mxu0 0
      %1870 = vmatprep.subr.bf16.mxu0 0
      %1871 = vmatpush1.bf16.msra.mxu0 0
      %1872 = vmatprep.subr.bf16.mxu0 0
      %1873 = vmatpush1.bf16.msra.mxu0 0
      %1874 = vmatprep.subr.bf16.mxu0 0
      %1875 = vmatpush1.bf16.msra.mxu0 0
      %1876 = vmatprep.mubr.bf16.mxu0 0
      %1877 = vmatmul.mubr.bf16.gmra.mrb[0].mxu0 %v1842
      %v1878 = vpop.f32.mrb[0].mxu0
      %v1879 = vadd.f32 %v1829, %v1878
      %v1880 = vpop.f32.mrb[0].mxu0
      %v1881 = vpop.f32.mrb[0].mxu0
      %v1882 = vadd.f32 %v1832, %v1881
      %v1883 = vpop.f32.mrb[0].mxu0
      %1884 = vdwg.mxu0
      %v1886 = vlaneseq
      %v1887 = vshrl.u32 %v1886, 7
      %v1888 = vsub.s32 0, %v1887
      %v1889 = vrot.slane %v900, %v1888
      %v1899 = vunpack.c.l.b16 %v818
      %v1900 = vunpack.c.l.b16 %v819
      %v1901 = vunpack.c.l.b16 %v820
      %v1902 = vunpack.c.l.b16 %v821
      %v1903 = vunpack.c.l.b16 %v822
      %v1904 = vunpack.c.l.b16 %v823
      %v1905 = vunpack.c.l.b16 %v824
      %v1906 = vunpack.c.l.b16 %v825
      %v1907 = vpack.c.b16 %v1900, %v1899
      %v1908 = vpack.c.b16 %v1902, %v1901
      %v1909 = vpack.c.b16 %v1904, %v1903
      %v1910 = vpack.c.b16 %v1906, %v1905
      %1915 = vmatprep.subr.bf16.mxu0 0
      %1916 = vmatpush1.bf16.msra.mxu0 %v1907
      %1917 = vmatprep.subr.bf16.mxu0 0
      %1918 = vmatpush1.bf16.msra.mxu0 %v1908
      %1919 = vmatprep.subr.bf16.mxu0 0
      %1920 = vmatpush1.bf16.msra.mxu0 %v1909
      %1921 = vmatprep.subr.bf16.mxu0 0
      %1922 = vmatpush1.bf16.msra.mxu0 %v1910
      %1923 = vmatprep.subr.bf16.mxu0 0
      %1924 = vmatpush1.bf16.msra.mxu0 0
      %1925 = vmatprep.subr.bf16.mxu0 0
      %1926 = vmatpush1.bf16.msra.mxu0 0
      %1927 = vmatprep.subr.bf16.mxu0 0
      %1928 = vmatpush1.bf16.msra.mxu0 0
      %1929 = vmatprep.subr.bf16.mxu0 0
      %1930 = vmatpush1.bf16.msra.mxu0 0
      %1931 = vmatprep.subr.bf16.mxu0 0
      %1932 = vmatpush1.bf16.msra.mxu0 0
      %1933 = vmatprep.subr.bf16.mxu0 0
      %1934 = vmatpush1.bf16.msra.mxu0 0
      %1935 = vmatprep.subr.bf16.mxu0 0
      %1936 = vmatpush1.bf16.msra.mxu0 0
      %1937 = vmatprep.subr.bf16.mxu0 0
      %1938 = vmatpush1.bf16.msra.mxu0 0
      %1939 = vmatprep.subr.bf16.mxu0 0
      %1940 = vmatpush1.bf16.msra.mxu0 0
      %1941 = vmatprep.subr.bf16.mxu0 0
      %1942 = vmatpush1.bf16.msra.mxu0 0
      %1943 = vmatprep.subr.bf16.mxu0 0
      %1944 = vmatpush1.bf16.msra.mxu0 0
      %1945 = vmatprep.subr.bf16.mxu0 0
      %1946 = vmatpush1.bf16.msra.mxu0 0
      %1947 = vmatprep.mubr.bf16.mxu0 0
      %1948 = vmatmul.mubr.bf16.gmra.mrb[0].mxu0 %v950
      %v1949 = vpop.f32.mrb[0].mxu0
      %v1950 = vadd.f32 %v1889, %v1949
      %v1951 = vpop.f32.mrb[0].mxu0
      %v1952 = vpop.f32.mrb[0].mxu0
      %v1953 = vadd.f32 %v1889, %v1952
      %v1954 = vpop.f32.mrb[0].mxu0
      %1955 = vdwg.mxu0
      %v1957 = vlaneseq
      %v1958 = vshrl.u32 %v1957, 7
      %v1959 = vsub.s32 0, %v1958
      %v1960 = vrot.slane %v904, %v1959
      %v1970 = vunpack.c.l.b16 %v850
      %v1971 = vunpack.c.l.b16 %v851
      %v1972 = vunpack.c.l.b16 %v852
      %v1973 = vunpack.c.l.b16 %v853
      %v1974 = vunpack.c.l.b16 %v854
      %v1975 = vunpack.c.l.b16 %v855
      %v1976 = vunpack.c.l.b16 %v856
      %v1977 = vunpack.c.l.b16 %v857
      %v1978 = vpack.c.b16 %v1971, %v1970
      %v1979 = vpack.c.b16 %v1973, %v1972
      %v1980 = vpack.c.b16 %v1975, %v1974
      %v1981 = vpack.c.b16 %v1977, %v1976
      %1986 = vmatprep.subr.bf16.mxu0 0
      %1987 = vmatpush1.bf16.msra.mxu0 %v1978
      %1988 = vmatprep.subr.bf16.mxu0 0
      %1989 = vmatpush1.bf16.msra.mxu0 %v1979
      %1990 = vmatprep.subr.bf16.mxu0 0
      %1991 = vmatpush1.bf16.msra.mxu0 %v1980
      %1992 = vmatprep.subr.bf16.mxu0 0
      %1993 = vmatpush1.bf16.msra.mxu0 %v1981
      %1994 = vmatprep.subr.bf16.mxu0 0
      %1995 = vmatpush1.bf16.msra.mxu0 0
      %1996 = vmatprep.subr.bf16.mxu0 0
      %1997 = vmatpush1.bf16.msra.mxu0 0
      %1998 = vmatprep.subr.bf16.mxu0 0
      %1999 = vmatpush1.bf16.msra.mxu0 0
      %2000 = vmatprep.subr.bf16.mxu0 0
      %2001 = vmatpush1.bf16.msra.mxu0 0
      %2002 = vmatprep.subr.bf16.mxu0 0
      %2003 = vmatpush1.bf16.msra.mxu0 0
      %2004 = vmatprep.subr.bf16.mxu0 0
      %2005 = vmatpush1.bf16.msra.mxu0 0
      %2006 = vmatprep.subr.bf16.mxu0 0
      %2007 = vmatpush1.bf16.msra.mxu0 0
      %2008 = vmatprep.subr.bf16.mxu0 0
      %2009 = vmatpush1.bf16.msra.mxu0 0
      %2010 = vmatprep.subr.bf16.mxu0 0
      %2011 = vmatpush1.bf16.msra.mxu0 0
      %2012 = vmatprep.subr.bf16.mxu0 0
      %2013 = vmatpush1.bf16.msra.mxu0 0
      %2014 = vmatprep.subr.bf16.mxu0 0
      %2015 = vmatpush1.bf16.msra.mxu0 0
      %2016 = vmatprep.subr.bf16.mxu0 0
      %2017 = vmatpush1.bf16.msra.mxu0 0
      %2018 = vmatprep.mubr.bf16.mxu0 0
      %2019 = vmatmul.mubr.bf16.gmra.mrb[0].mxu0 %v950
      %v2020 = vpop.f32.mrb[0].mxu0
      %v2021 = vadd.f32 %v1960, %v2020
      %v2022 = vpop.f32.mrb[0].mxu0
      %v2023 = vpop.f32.mrb[0].mxu0
      %v2024 = vadd.f32 %v1960, %v2023
      %v2025 = vpop.f32.mrb[0].mxu0
      %2026 = vdwg.mxu0
      %v2028 = vlaneseq
      %v2029 = vshrl.u32 %v2028, 7
      %v2030 = vsub.s32 0, %v2029
      %v2031 = vrot.slane %v908, %v2030
      %v2041 = vunpack.c.l.b16 %v882
      %v2042 = vunpack.c.l.b16 %v883
      %v2043 = vunpack.c.l.b16 %v884
      %v2044 = vunpack.c.l.b16 %v885
      %v2045 = vunpack.c.l.b16 %v886
      %v2046 = vunpack.c.l.b16 %v887
      %v2047 = vunpack.c.l.b16 %v888
      %v2048 = vunpack.c.l.b16 %v889
      %v2049 = vpack.c.b16 %v2042, %v2041
      %v2050 = vpack.c.b16 %v2044, %v2043
      %v2051 = vpack.c.b16 %v2046, %v2045
      %v2052 = vpack.c.b16 %v2048, %v2047
      %2057 = vmatprep.subr.bf16.mxu0 0
      %2058 = vmatpush1.bf16.msra.mxu0 %v2049
      %2059 = vmatprep.subr.bf16.mxu0 0
      %2060 = vmatpush1.bf16.msra.mxu0 %v2050
      %2061 = vmatprep.subr.bf16.mxu0 0
      %2062 = vmatpush1.bf16.msra.mxu0 %v2051
      %2063 = vmatprep.subr.bf16.mxu0 0
      %2064 = vmatpush1.bf16.msra.mxu0 %v2052
      %2065 = vmatprep.subr.bf16.mxu0 0
      %2066 = vmatpush1.bf16.msra.mxu0 0
      %2067 = vmatprep.subr.bf16.mxu0 0
      %2068 = vmatpush1.bf16.msra.mxu0 0
      %2069 = vmatprep.subr.bf16.mxu0 0
      %2070 = vmatpush1.bf16.msra.mxu0 0
      %2071 = vmatprep.subr.bf16.mxu0 0
      %2072 = vmatpush1.bf16.msra.mxu0 0
      %2073 = vmatprep.subr.bf16.mxu0 0
      %2074 = vmatpush1.bf16.msra.mxu0 0
      %2075 = vmatprep.subr.bf16.mxu0 0
      %2076 = vmatpush1.bf16.msra.mxu0 0
      %2077 = vmatprep.subr.bf16.mxu0 0
      %2078 = vmatpush1.bf16.msra.mxu0 0
      %2079 = vmatprep.subr.bf16.mxu0 0
      %2080 = vmatpush1.bf16.msra.mxu0 0
      %2081 = vmatprep.subr.bf16.mxu0 0
      %2082 = vmatpush1.bf16.msra.mxu0 0
      %2083 = vmatprep.subr.bf16.mxu0 0
      %2084 = vmatpush1.bf16.msra.mxu0 0
      %2085 = vmatprep.subr.bf16.mxu0 0
      %2086 = vmatpush1.bf16.msra.mxu0 0
      %2087 = vmatprep.subr.bf16.mxu0 0
      %2088 = vmatpush1.bf16.msra.mxu0 0
      %2089 = vmatprep.mubr.bf16.mxu0 0
      %2090 = vmatmul.mubr.bf16.gmra.mrb[0].mxu0 %v950
      %v2091 = vpop.f32.mrb[0].mxu0
      %v2092 = vadd.f32 %v2031, %v2091
      %v2093 = vpop.f32.mrb[0].mxu0
      %v2094 = vpop.f32.mrb[0].mxu0
      %v2095 = vadd.f32 %v2031, %v2094
      %v2096 = vpop.f32.mrb[0].mxu0
      %2097 = vdwg.mxu0
      %v2098 = vpack.c.bf16 %v1950, %v1950
      %v2099 = vpack.c.bf16 %v1953, %v1953
      %v2100 = vpack.c.bf16 %v2021, %v2021
      %v2101 = vpack.c.bf16 %v2024, %v2024
      %v2102 = vpack.c.bf16 %v2092, %v2092
      %v2103 = vpack.c.bf16 %v2095, %v2095
      %v2105 = vsel %vm1141, %v2098, 0
      %v2108 = vsel %vm1141, %v2100, 0
      %2110 = vmatprep.subr.bf16.mxu0 0
      %2111 = vmatpush1.bf16.xpose.msra.mxu0 %v2108
      %2112 = vmatprep.subr.bf16.mxu0 0
      %2113 = vmatpush1.bf16.xpose.msra.mxu0 0
      %2114 = vmatprep.subr.bf16.mxu0 0
      %2115 = vmatpush1.bf16.xpose.msra.mxu0 0
      %2116 = vmatprep.subr.bf16.mxu0 0
      %2117 = vmatpush1.bf16.xpose.msra.mxu0 0
      %2118 = vmatprep.subr.bf16.mxu0 0
      %2119 = vmatpush1.bf16.xpose.msra.mxu0 0
      %2120 = vmatprep.subr.bf16.mxu0 0
      %2121 = vmatpush1.bf16.xpose.msra.mxu0 0
      %2122 = vmatprep.subr.bf16.mxu0 0
      %2123 = vmatpush1.bf16.xpose.msra.mxu0 0
      %2124 = vmatprep.subr.bf16.mxu0 0
      %2125 = vmatpush1.bf16.xpose.msra.mxu0 0
      %2126 = vmatprep.subr.bf16.mxu0 0
      %2127 = vmatpush1.bf16.xpose.msra.mxu0 0
      %2128 = vmatprep.subr.bf16.mxu0 0
      %2129 = vmatpush1.bf16.xpose.msra.mxu0 0
      %2130 = vmatprep.subr.bf16.mxu0 0
      %2131 = vmatpush1.bf16.xpose.msra.mxu0 0
      %2132 = vmatprep.subr.bf16.mxu0 0
      %2133 = vmatpush1.bf16.xpose.msra.mxu0 0
      %2134 = vmatprep.subr.bf16.mxu0 0
      %2135 = vmatpush1.bf16.xpose.msra.mxu0 0
      %2136 = vmatprep.subr.bf16.mxu0 0
      %2137 = vmatpush1.bf16.xpose.msra.mxu0 0
      %2138 = vmatprep.subr.bf16.mxu0 0
      %2139 = vmatpush1.bf16.xpose.msra.mxu0 0
      %2140 = vmatprep.subr.bf16.mxu0 0
      %2141 = vmatpush1.bf16.xpose.msra.mxu0 0
      %2142 = vmatprep.mubr.bf16.mxu0 0
      %2143 = vmatmul.mubr.bf16.gmra.mrb[0].mxu0 %v2105
      %v2144 = vpop.f32.mrb[0].mxu0
      %v2145 = vadd.f32 0.0, %v2144
      %v2146 = vpop.f32.mrb[0].mxu0
      %v2147 = vpop.f32.mrb[0].mxu0
      %v2148 = vpop.f32.mrb[0].mxu0
      %2149 = vdwg.mxu0
      %v2151 = vsel %vm1141, %v2099, 0
      %v2154 = vsel %vm1141, %v2101, 0
      %2156 = vmatprep.subr.bf16.mxu0 0
      %2157 = vmatpush1.bf16.xpose.msra.mxu0 %v2154
      %2158 = vmatprep.subr.bf16.mxu0 0
      %2159 = vmatpush1.bf16.xpose.msra.mxu0 0
      %2160 = vmatprep.subr.bf16.mxu0 0
      %2161 = vmatpush1.bf16.xpose.msra.mxu0 0
      %2162 = vmatprep.subr.bf16.mxu0 0
      %2163 = vmatpush1.bf16.xpose.msra.mxu0 0
      %2164 = vmatprep.subr.bf16.mxu0 0
      %2165 = vmatpush1.bf16.xpose.msra.mxu0 0
      %2166 = vmatprep.subr.bf16.mxu0 0
      %2167 = vmatpush1.bf16.xpose.msra.mxu0 0
      %2168 = vmatprep.subr.bf16.mxu0 0
      %2169 = vmatpush1.bf16.xpose.msra.mxu0 0
      %2170 = vmatprep.subr.bf16.mxu0 0
      %2171 = vmatpush1.bf16.xpose.msra.mxu0 0
      %2172 = vmatprep.subr.bf16.mxu0 0
      %2173 = vmatpush1.bf16.xpose.msra.mxu0 0
      %2174 = vmatprep.subr.bf16.mxu0 0
      %2175 = vmatpush1.bf16.xpose.msra.mxu0 0
      %2176 = vmatprep.subr.bf16.mxu0 0
      %2177 = vmatpush1.bf16.xpose.msra.mxu0 0
      %2178 = vmatprep.subr.bf16.mxu0 0
      %2179 = vmatpush1.bf16.xpose.msra.mxu0 0
      %2180 = vmatprep.subr.bf16.mxu0 0
      %2181 = vmatpush1.bf16.xpose.msra.mxu0 0
      %2182 = vmatprep.subr.bf16.mxu0 0
      %2183 = vmatpush1.bf16.xpose.msra.mxu0 0
      %2184 = vmatprep.subr.bf16.mxu0 0
      %2185 = vmatpush1.bf16.xpose.msra.mxu0 0
      %2186 = vmatprep.subr.bf16.mxu0 0
      %2187 = vmatpush1.bf16.xpose.msra.mxu0 0
      %2188 = vmatprep.mubr.bf16.mxu0 0
      %2189 = vmatmul.mubr.bf16.gmra.mrb[0].mxu0 %v2151
      %v2190 = vpop.f32.mrb[0].mxu0
      %v2191 = vadd.f32 0.0, %v2190
      %v2192 = vpop.f32.mrb[0].mxu0
      %v2193 = vpop.f32.mrb[0].mxu0
      %v2194 = vpop.f32.mrb[0].mxu0
      %2195 = vdwg.mxu0
      %v2196 = vmul.f32 %v2145, 0.25
      %v2197 = vmul.f32 %v2191, 0.25
      %v2198 = vsel %vm1236, %v2196, -inf
      %2199 = vmax.xlane.f32.xlu0 %v2198
      %v2200 = vpop.xlane.xlu0 %2199
      %v2201 = vsel %vm1236, %v2197, -inf
      %2202 = vmax.xlane.f32.xlu0 %v2201
      %v2203 = vpop.xlane.xlu0 %2202
      %v2204 = vsub.f32 %v2196, %v2200
      %v2205 = vsub.f32 %v2197, %v2203
      %v2206 = vmul.f32 %v2204, 1.442695
      %v2207 = vpow.pop %v2206
      %v2208 = vmul.f32 %v2205, 1.442695
      %v2209 = vpow.pop %v2208
      %v2210 = vsel %vm1236, %v2207, 0.0
      %2211 = vadd.xlane.f32.xlu0 %v2210
      %v2212 = vpop.xlane.xlu0 %2211
      %v2213 = vsel %vm1236, %v2209, 0.0
      %2214 = vadd.xlane.f32.xlu0 %v2213
      %v2215 = vpop.xlane.xlu0 %2214
      %v2216 = vrcp.pop %v2212
      %v2217 = vrcp.pop %v2215
      %v2218 = vmul.f32 %v2207, %v2216
      %v2219 = vmul.f32 %v2209, %v2217
      %v2220 = vpack.c.bf16 %v2218, %v2218
      %v2221 = vpack.c.bf16 %v2219, %v2219
      %v2223 = vsel %vm1236, %v2220, 0
      %v2226 = vsel %vm1264, %v2102, 0
      %2228 = vmatprep.subr.bf16.mxu0 0
      %2229 = vmatpush1.bf16.msra.mxu0 %v2226
      %2230 = vmatprep.subr.bf16.mxu0 0
      %2231 = vmatpush1.bf16.msra.mxu0 0
      %2232 = vmatprep.subr.bf16.mxu0 0
      %2233 = vmatpush1.bf16.msra.mxu0 0
      %2234 = vmatprep.subr.bf16.mxu0 0
      %2235 = vmatpush1.bf16.msra.mxu0 0
      %2236 = vmatprep.subr.bf16.mxu0 0
      %2237 = vmatpush1.bf16.msra.mxu0 0
      %2238 = vmatprep.subr.bf16.mxu0 0
      %2239 = vmatpush1.bf16.msra.mxu0 0
      %2240 = vmatprep.subr.bf16.mxu0 0
      %2241 = vmatpush1.bf16.msra.mxu0 0
      %2242 = vmatprep.subr.bf16.mxu0 0
      %2243 = vmatpush1.bf16.msra.mxu0 0
      %2244 = vmatprep.subr.bf16.mxu0 0
      %2245 = vmatpush1.bf16.msra.mxu0 0
      %2246 = vmatprep.subr.bf16.mxu0 0
      %2247 = vmatpush1.bf16.msra.mxu0 0
      %2248 = vmatprep.subr.bf16.mxu0 0
      %2249 = vmatpush1.bf16.msra.mxu0 0
      %2250 = vmatprep.subr.bf16.mxu0 0
      %2251 = vmatpush1.bf16.msra.mxu0 0
      %2252 = vmatprep.subr.bf16.mxu0 0
      %2253 = vmatpush1.bf16.msra.mxu0 0
      %2254 = vmatprep.subr.bf16.mxu0 0
      %2255 = vmatpush1.bf16.msra.mxu0 0
      %2256 = vmatprep.subr.bf16.mxu0 0
      %2257 = vmatpush1.bf16.msra.mxu0 0
      %2258 = vmatprep.subr.bf16.mxu0 0
      %2259 = vmatpush1.bf16.msra.mxu0 0
      %2260 = vmatprep.mubr.bf16.mxu0 0
      %2261 = vmatmul.mubr.bf16.gmra.mrb[0].mxu0 %v2223
      %v2262 = vpop.f32.mrb[0].mxu0
      %v2263 = vadd.f32 0.0, %v2262
      %v2264 = vpop.f32.mrb[0].mxu0
      %v2265 = vpop.f32.mrb[0].mxu0
      %v2266 = vpop.f32.mrb[0].mxu0
      %2267 = vdwg.mxu0
      %v2269 = vsel %vm1236, %v2221, 0
      %v2272 = vsel %vm1264, %v2103, 0
      %2274 = vmatprep.subr.bf16.mxu0 0
      %2275 = vmatpush1.bf16.msra.mxu0 %v2272
      %2276 = vmatprep.subr.bf16.mxu0 0
      %2277 = vmatpush1.bf16.msra.mxu0 0
      %2278 = vmatprep.subr.bf16.mxu0 0
      %2279 = vmatpush1.bf16.msra.mxu0 0
      %2280 = vmatprep.subr.bf16.mxu0 0
      %2281 = vmatpush1.bf16.msra.mxu0 0
      %2282 = vmatprep.subr.bf16.mxu0 0
      %2283 = vmatpush1.bf16.msra.mxu0 0
      %2284 = vmatprep.subr.bf16.mxu0 0
      %2285 = vmatpush1.bf16.msra.mxu0 0
      %2286 = vmatprep.subr.bf16.mxu0 0
      %2287 = vmatpush1.bf16.msra.mxu0 0
      %2288 = vmatprep.subr.bf16.mxu0 0
      %2289 = vmatpush1.bf16.msra.mxu0 0
      %2290 = vmatprep.subr.bf16.mxu0 0
      %2291 = vmatpush1.bf16.msra.mxu0 0
      %2292 = vmatprep.subr.bf16.mxu0 0
      %2293 = vmatpush1.bf16.msra.mxu0 0
      %2294 = vmatprep.subr.bf16.mxu0 0
      %2295 = vmatpush1.bf16.msra.mxu0 0
      %2296 = vmatprep.subr.bf16.mxu0 0
      %2297 = vmatpush1.bf16.msra.mxu0 0
      %2298 = vmatprep.subr.bf16.mxu0 0
      %2299 = vmatpush1.bf16.msra.mxu0 0
      %2300 = vmatprep.subr.bf16.mxu0 0
      %2301 = vmatpush1.bf16.msra.mxu0 0
      %2302 = vmatprep.subr.bf16.mxu0 0
      %2303 = vmatpush1.bf16.msra.mxu0 0
      %2304 = vmatprep.subr.bf16.mxu0 0
      %2305 = vmatpush1.bf16.msra.mxu0 0
      %2306 = vmatprep.mubr.bf16.mxu0 0
      %2307 = vmatmul.mubr.bf16.gmra.mrb[0].mxu0 %v2269
      %v2308 = vpop.f32.mrb[0].mxu0
      %v2309 = vadd.f32 0.0, %v2308
      %v2310 = vpop.f32.mrb[0].mxu0
      %v2311 = vpop.f32.mrb[0].mxu0
      %v2312 = vpop.f32.mrb[0].mxu0
      %2313 = vdwg.mxu0
      %v2314 = vpack.c.bf16 %v2309, %v2263
      %v2317 = vunpack.c.l.b16 %v914
      %v2318 = vunpack.c.l.b16 %v915
      %v2319 = vpack.c.b16 %v2318, %v2317
      %v2322 = vsel %vm1141, %v2314, 0
      %2324 = vmatprep.subr.bf16.mxu0 0
      %2325 = vmatpush1.bf16.msra.mxu0 %v2319
      %2326 = vmatprep.subr.bf16.mxu0 0
      %2327 = vmatpush1.bf16.msra.mxu0 0
      %2328 = vmatprep.subr.bf16.mxu0 0
      %2329 = vmatpush1.bf16.msra.mxu0 0
      %2330 = vmatprep.subr.bf16.mxu0 0
      %2331 = vmatpush1.bf16.msra.mxu0 0
      %2332 = vmatprep.subr.bf16.mxu0 0
      %2333 = vmatpush1.bf16.msra.mxu0 0
      %2334 = vmatprep.subr.bf16.mxu0 0
      %2335 = vmatpush1.bf16.msra.mxu0 0
      %2336 = vmatprep.subr.bf16.mxu0 0
      %2337 = vmatpush1.bf16.msra.mxu0 0
      %2338 = vmatprep.subr.bf16.mxu0 0
      %2339 = vmatpush1.bf16.msra.mxu0 0
      %2340 = vmatprep.subr.bf16.mxu0 0
      %2341 = vmatpush1.bf16.msra.mxu0 0
      %2342 = vmatprep.subr.bf16.mxu0 0
      %2343 = vmatpush1.bf16.msra.mxu0 0
      %2344 = vmatprep.subr.bf16.mxu0 0
      %2345 = vmatpush1.bf16.msra.mxu0 0
      %2346 = vmatprep.subr.bf16.mxu0 0
      %2347 = vmatpush1.bf16.msra.mxu0 0
      %2348 = vmatprep.subr.bf16.mxu0 0
      %2349 = vmatpush1.bf16.msra.mxu0 0
      %2350 = vmatprep.subr.bf16.mxu0 0
      %2351 = vmatpush1.bf16.msra.mxu0 0
      %2352 = vmatprep.subr.bf16.mxu0 0
      %2353 = vmatpush1.bf16.msra.mxu0 0
      %2354 = vmatprep.subr.bf16.mxu0 0
      %2355 = vmatpush1.bf16.msra.mxu0 0
      %2356 = vmatprep.mubr.bf16.mxu0 0
      %2357 = vmatmul.mubr.bf16.gmra.mrb[0].mxu0 %v2322
      %v2358 = vpop.f32.mrb[0].mxu0
      %v2359 = vadd.f32 0.0, %v2358
      %v2360 = vpop.f32.mrb[0].mxu0
      %v2361 = vpop.f32.mrb[0].mxu0
      %v2362 = vadd.f32 0.0, %v2361
      %v2363 = vpop.f32.mrb[0].mxu0
      %2364 = vdwg.mxu0
      %v2365 = vadd.f32 %v1879, %v2359
      %v2366 = vadd.f32 %v1882, %v2362
      %v2368 = vlaneseq
      %v2369 = vshrl.u32 %v2368, 7
      %v2370 = vsub.s32 0, %v2369
      %v2371 = vrot.slane %v901, %v2370
      %v2381 = vunpack.c.l.b16 %v826
      %v2382 = vunpack.c.l.b16 %v827
      %v2383 = vunpack.c.l.b16 %v828
      %v2384 = vunpack.c.l.b16 %v829
      %v2385 = vunpack.c.l.b16 %v830
      %v2386 = vunpack.c.l.b16 %v831
      %v2387 = vunpack.c.l.b16 %v832
      %v2388 = vunpack.c.l.b16 %v833
      %v2389 = vpack.c.b16 %v2382, %v2381
      %v2390 = vpack.c.b16 %v2384, %v2383
      %v2391 = vpack.c.b16 %v2386, %v2385
      %v2392 = vpack.c.b16 %v2388, %v2387
      %2397 = vmatprep.subr.bf16.mxu0 0
      %2398 = vmatpush1.bf16.msra.mxu0 %v2389
      %2399 = vmatprep.subr.bf16.mxu0 0
      %2400 = vmatpush1.bf16.msra.mxu0 %v2390
      %2401 = vmatprep.subr.bf16.mxu0 0
      %2402 = vmatpush1.bf16.msra.mxu0 %v2391
      %2403 = vmatprep.subr.bf16.mxu0 0
      %2404 = vmatpush1.bf16.msra.mxu0 %v2392
      %2405 = vmatprep.subr.bf16.mxu0 0
      %2406 = vmatpush1.bf16.msra.mxu0 0
      %2407 = vmatprep.subr.bf16.mxu0 0
      %2408 = vmatpush1.bf16.msra.mxu0 0
      %2409 = vmatprep.subr.bf16.mxu0 0
      %2410 = vmatpush1.bf16.msra.mxu0 0
      %2411 = vmatprep.subr.bf16.mxu0 0
      %2412 = vmatpush1.bf16.msra.mxu0 0
      %2413 = vmatprep.subr.bf16.mxu0 0
      %2414 = vmatpush1.bf16.msra.mxu0 0
      %2415 = vmatprep.subr.bf16.mxu0 0
      %2416 = vmatpush1.bf16.msra.mxu0 0
      %2417 = vmatprep.subr.bf16.mxu0 0
      %2418 = vmatpush1.bf16.msra.mxu0 0
      %2419 = vmatprep.subr.bf16.mxu0 0
      %2420 = vmatpush1.bf16.msra.mxu0 0
      %2421 = vmatprep.subr.bf16.mxu0 0
      %2422 = vmatpush1.bf16.msra.mxu0 0
      %2423 = vmatprep.subr.bf16.mxu0 0
      %2424 = vmatpush1.bf16.msra.mxu0 0
      %2425 = vmatprep.subr.bf16.mxu0 0
      %2426 = vmatpush1.bf16.msra.mxu0 0
      %2427 = vmatprep.subr.bf16.mxu0 0
      %2428 = vmatpush1.bf16.msra.mxu0 0
      %2429 = vmatprep.mubr.bf16.mxu0 0
      %2430 = vmatmul.mubr.bf16.gmra.mrb[0].mxu0 %v950
      %v2431 = vpop.f32.mrb[0].mxu0
      %v2432 = vadd.f32 %v2371, %v2431
      %v2433 = vpop.f32.mrb[0].mxu0
      %v2434 = vpop.f32.mrb[0].mxu0
      %v2435 = vadd.f32 %v2371, %v2434
      %v2436 = vpop.f32.mrb[0].mxu0
      %2437 = vdwg.mxu0
      %v2439 = vlaneseq
      %v2440 = vshrl.u32 %v2439, 7
      %v2441 = vsub.s32 0, %v2440
      %v2442 = vrot.slane %v905, %v2441
      %v2452 = vunpack.c.l.b16 %v858
      %v2453 = vunpack.c.l.b16 %v859
      %v2454 = vunpack.c.l.b16 %v860
      %v2455 = vunpack.c.l.b16 %v861
      %v2456 = vunpack.c.l.b16 %v862
      %v2457 = vunpack.c.l.b16 %v863
      %v2458 = vunpack.c.l.b16 %v864
      %v2459 = vunpack.c.l.b16 %v865
      %v2460 = vpack.c.b16 %v2453, %v2452
      %v2461 = vpack.c.b16 %v2455, %v2454
      %v2462 = vpack.c.b16 %v2457, %v2456
      %v2463 = vpack.c.b16 %v2459, %v2458
      %2468 = vmatprep.subr.bf16.mxu0 0
      %2469 = vmatpush1.bf16.msra.mxu0 %v2460
      %2470 = vmatprep.subr.bf16.mxu0 0
      %2471 = vmatpush1.bf16.msra.mxu0 %v2461
      %2472 = vmatprep.subr.bf16.mxu0 0
      %2473 = vmatpush1.bf16.msra.mxu0 %v2462
      %2474 = vmatprep.subr.bf16.mxu0 0
      %2475 = vmatpush1.bf16.msra.mxu0 %v2463
      %2476 = vmatprep.subr.bf16.mxu0 0
      %2477 = vmatpush1.bf16.msra.mxu0 0
      %2478 = vmatprep.subr.bf16.mxu0 0
      %2479 = vmatpush1.bf16.msra.mxu0 0
      %2480 = vmatprep.subr.bf16.mxu0 0
      %2481 = vmatpush1.bf16.msra.mxu0 0
      %2482 = vmatprep.subr.bf16.mxu0 0
      %2483 = vmatpush1.bf16.msra.mxu0 0
      %2484 = vmatprep.subr.bf16.mxu0 0
      %2485 = vmatpush1.bf16.msra.mxu0 0
      %2486 = vmatprep.subr.bf16.mxu0 0
      %2487 = vmatpush1.bf16.msra.mxu0 0
      %2488 = vmatprep.subr.bf16.mxu0 0
      %2489 = vmatpush1.bf16.msra.mxu0 0
      %2490 = vmatprep.subr.bf16.mxu0 0
      %2491 = vmatpush1.bf16.msra.mxu0 0
      %2492 = vmatprep.subr.bf16.mxu0 0
      %2493 = vmatpush1.bf16.msra.mxu0 0
      %2494 = vmatprep.subr.bf16.mxu0 0
      %2495 = vmatpush1.bf16.msra.mxu0 0
      %2496 = vmatprep.subr.bf16.mxu0 0
      %2497 = vmatpush1.bf16.msra.mxu0 0
      %2498 = vmatprep.subr.bf16.mxu0 0
      %2499 = vmatpush1.bf16.msra.mxu0 0
      %2500 = vmatprep.mubr.bf16.mxu0 0
      %2501 = vmatmul.mubr.bf16.gmra.mrb[0].mxu0 %v950
      %v2502 = vpop.f32.mrb[0].mxu0
      %v2503 = vadd.f32 %v2442, %v2502
      %v2504 = vpop.f32.mrb[0].mxu0
      %v2505 = vpop.f32.mrb[0].mxu0
      %v2506 = vadd.f32 %v2442, %v2505
      %v2507 = vpop.f32.mrb[0].mxu0
      %2508 = vdwg.mxu0
      %v2510 = vlaneseq
      %v2511 = vshrl.u32 %v2510, 7
      %v2512 = vsub.s32 0, %v2511
      %v2513 = vrot.slane %v909, %v2512
      %v2523 = vunpack.c.l.b16 %v890
      %v2524 = vunpack.c.l.b16 %v891
      %v2525 = vunpack.c.l.b16 %v892
      %v2526 = vunpack.c.l.b16 %v893
      %v2527 = vunpack.c.l.b16 %v894
      %v2528 = vunpack.c.l.b16 %v895
      %v2529 = vunpack.c.l.b16 %v896
      %v2530 = vunpack.c.l.b16 %v897
      %v2531 = vpack.c.b16 %v2524, %v2523
      %v2532 = vpack.c.b16 %v2526, %v2525
      %v2533 = vpack.c.b16 %v2528, %v2527
      %v2534 = vpack.c.b16 %v2530, %v2529
      %2539 = vmatprep.subr.bf16.mxu0 0
      %2540 = vmatpush1.bf16.msra.mxu0 %v2531
      %2541 = vmatprep.subr.bf16.mxu0 0
      %2542 = vmatpush1.bf16.msra.mxu0 %v2532
      %2543 = vmatprep.subr.bf16.mxu0 0
      %2544 = vmatpush1.bf16.msra.mxu0 %v2533
      %2545 = vmatprep.subr.bf16.mxu0 0
      %2546 = vmatpush1.bf16.msra.mxu0 %v2534
      %2547 = vmatprep.subr.bf16.mxu0 0
      %2548 = vmatpush1.bf16.msra.mxu0 0
      %2549 = vmatprep.subr.bf16.mxu0 0
      %2550 = vmatpush1.bf16.msra.mxu0 0
      %2551 = vmatprep.subr.bf16.mxu0 0
      %2552 = vmatpush1.bf16.msra.mxu0 0
      %2553 = vmatprep.subr.bf16.mxu0 0
      %2554 = vmatpush1.bf16.msra.mxu0 0
      %2555 = vmatprep.subr.bf16.mxu0 0
      %2556 = vmatpush1.bf16.msra.mxu0 0
      %2557 = vmatprep.subr.bf16.mxu0 0
      %2558 = vmatpush1.bf16.msra.mxu0 0
      %2559 = vmatprep.subr.bf16.mxu0 0
      %2560 = vmatpush1.bf16.msra.mxu0 0
      %2561 = vmatprep.subr.bf16.mxu0 0
      %2562 = vmatpush1.bf16.msra.mxu0 0
      %2563 = vmatprep.subr.bf16.mxu0 0
      %2564 = vmatpush1.bf16.msra.mxu0 0
      %2565 = vmatprep.subr.bf16.mxu0 0
      %2566 = vmatpush1.bf16.msra.mxu0 0
      %2567 = vmatprep.subr.bf16.mxu0 0
      %2568 = vmatpush1.bf16.msra.mxu0 0
      %2569 = vmatprep.subr.bf16.mxu0 0
      %2570 = vmatpush1.bf16.msra.mxu0 0
      %2571 = vmatprep.mubr.bf16.mxu0 0
      %2572 = vmatmul.mubr.bf16.gmra.mrb[0].mxu0 %v950
      %v2573 = vpop.f32.mrb[0].mxu0
      %v2574 = vadd.f32 %v2513, %v2573
      %v2575 = vpop.f32.mrb[0].mxu0
      %v2576 = vpop.f32.mrb[0].mxu0
      %v2577 = vadd.f32 %v2513, %v2576
      %v2578 = vpop.f32.mrb[0].mxu0
      %2579 = vdwg.mxu0
      %v2580 = vpack.c.bf16 %v2432, %v2432
      %v2581 = vpack.c.bf16 %v2435, %v2435
      %v2582 = vpack.c.bf16 %v2503, %v2503
      %v2583 = vpack.c.bf16 %v2506, %v2506
      %v2584 = vpack.c.bf16 %v2574, %v2574
      %v2585 = vpack.c.bf16 %v2577, %v2577
      %v2587 = vsel %vm1141, %v2580, 0
      %v2590 = vsel %vm1141, %v2582, 0
      %2592 = vmatprep.subr.bf16.mxu0 0
      %2593 = vmatpush1.bf16.xpose.msra.mxu0 %v2590
      %2594 = vmatprep.subr.bf16.mxu0 0
      %2595 = vmatpush1.bf16.xpose.msra.mxu0 0
      %2596 = vmatprep.subr.bf16.mxu0 0
      %2597 = vmatpush1.bf16.xpose.msra.mxu0 0
      %2598 = vmatprep.subr.bf16.mxu0 0
      %2599 = vmatpush1.bf16.xpose.msra.mxu0 0
      %2600 = vmatprep.subr.bf16.mxu0 0
      %2601 = vmatpush1.bf16.xpose.msra.mxu0 0
      %2602 = vmatprep.subr.bf16.mxu0 0
      %2603 = vmatpush1.bf16.xpose.msra.mxu0 0
      %2604 = vmatprep.subr.bf16.mxu0 0
      %2605 = vmatpush1.bf16.xpose.msra.mxu0 0
      %2606 = vmatprep.subr.bf16.mxu0 0
      %2607 = vmatpush1.bf16.xpose.msra.mxu0 0
      %2608 = vmatprep.subr.bf16.mxu0 0
      %2609 = vmatpush1.bf16.xpose.msra.mxu0 0
      %2610 = vmatprep.subr.bf16.mxu0 0
      %2611 = vmatpush1.bf16.xpose.msra.mxu0 0
      %2612 = vmatprep.subr.bf16.mxu0 0
      %2613 = vmatpush1.bf16.xpose.msra.mxu0 0
      %2614 = vmatprep.subr.bf16.mxu0 0
      %2615 = vmatpush1.bf16.xpose.msra.mxu0 0
      %2616 = vmatprep.subr.bf16.mxu0 0
      %2617 = vmatpush1.bf16.xpose.msra.mxu0 0
      %2618 = vmatprep.subr.bf16.mxu0 0
      %2619 = vmatpush1.bf16.xpose.msra.mxu0 0
      %2620 = vmatprep.subr.bf16.mxu0 0
      %2621 = vmatpush1.bf16.xpose.msra.mxu0 0
      %2622 = vmatprep.subr.bf16.mxu0 0
      %2623 = vmatpush1.bf16.xpose.msra.mxu0 0
      %2624 = vmatprep.mubr.bf16.mxu0 0
      %2625 = vmatmul.mubr.bf16.gmra.mrb[0].mxu0 %v2587
      %v2626 = vpop.f32.mrb[0].mxu0
      %v2627 = vadd.f32 0.0, %v2626
      %v2628 = vpop.f32.mrb[0].mxu0
      %v2629 = vpop.f32.mrb[0].mxu0
      %v2630 = vpop.f32.mrb[0].mxu0
      %2631 = vdwg.mxu0
      %v2633 = vsel %vm1141, %v2581, 0
      %v2636 = vsel %vm1141, %v2583, 0
      %2638 = vmatprep.subr.bf16.mxu0 0
      %2639 = vmatpush1.bf16.xpose.msra.mxu0 %v2636
      %2640 = vmatprep.subr.bf16.mxu0 0
      %2641 = vmatpush1.bf16.xpose.msra.mxu0 0
      %2642 = vmatprep.subr.bf16.mxu0 0
      %2643 = vmatpush1.bf16.xpose.msra.mxu0 0
      %2644 = vmatprep.subr.bf16.mxu0 0
      %2645 = vmatpush1.bf16.xpose.msra.mxu0 0
      %2646 = vmatprep.subr.bf16.mxu0 0
      %2647 = vmatpush1.bf16.xpose.msra.mxu0 0
      %2648 = vmatprep.subr.bf16.mxu0 0
      %2649 = vmatpush1.bf16.xpose.msra.mxu0 0
      %2650 = vmatprep.subr.bf16.mxu0 0
      %2651 = vmatpush1.bf16.xpose.msra.mxu0 0
      %2652 = vmatprep.subr.bf16.mxu0 0
      %2653 = vmatpush1.bf16.xpose.msra.mxu0 0
      %2654 = vmatprep.subr.bf16.mxu0 0
      %2655 = vmatpush1.bf16.xpose.msra.mxu0 0
      %2656 = vmatprep.subr.bf16.mxu0 0
      %2657 = vmatpush1.bf16.xpose.msra.mxu0 0
      %2658 = vmatprep.subr.bf16.mxu0 0
      %2659 = vmatpush1.bf16.xpose.msra.mxu0 0
      %2660 = vmatprep.subr.bf16.mxu0 0
      %2661 = vmatpush1.bf16.xpose.msra.mxu0 0
      %2662 = vmatprep.subr.bf16.mxu0 0
      %2663 = vmatpush1.bf16.xpose.msra.mxu0 0
      %2664 = vmatprep.subr.bf16.mxu0 0
      %2665 = vmatpush1.bf16.xpose.msra.mxu0 0
      %2666 = vmatprep.subr.bf16.mxu0 0
      %2667 = vmatpush1.bf16.xpose.msra.mxu0 0
      %2668 = vmatprep.subr.bf16.mxu0 0
      %2669 = vmatpush1.bf16.xpose.msra.mxu0 0
      %2670 = vmatprep.mubr.bf16.mxu0 0
      %2671 = vmatmul.mubr.bf16.gmra.mrb[0].mxu0 %v2633
      %v2672 = vpop.f32.mrb[0].mxu0
      %v2673 = vadd.f32 0.0, %v2672
      %v2674 = vpop.f32.mrb[0].mxu0
      %v2675 = vpop.f32.mrb[0].mxu0
      %v2676 = vpop.f32.mrb[0].mxu0
      %2677 = vdwg.mxu0
      %v2678 = vmul.f32 %v2627, 0.25
      %v2679 = vmul.f32 %v2673, 0.25
      %v2680 = vsel %vm1236, %v2678, -inf
      %2681 = vmax.xlane.f32.xlu0 %v2680
      %v2682 = vpop.xlane.xlu0 %2681
      %v2683 = vsel %vm1236, %v2679, -inf
      %2684 = vmax.xlane.f32.xlu0 %v2683
      %v2685 = vpop.xlane.xlu0 %2684
      %v2686 = vsub.f32 %v2678, %v2682
      %v2687 = vsub.f32 %v2679, %v2685
      %v2688 = vmul.f32 %v2686, 1.442695
      %v2689 = vpow.pop %v2688
      %v2690 = vmul.f32 %v2687, 1.442695
      %v2691 = vpow.pop %v2690
      %v2692 = vsel %vm1236, %v2689, 0.0
      %2693 = vadd.xlane.f32.xlu0 %v2692
      %v2694 = vpop.xlane.xlu0 %2693
      %v2695 = vsel %vm1236, %v2691, 0.0
      %2696 = vadd.xlane.f32.xlu0 %v2695
      %v2697 = vpop.xlane.xlu0 %2696
      %v2698 = vrcp.pop %v2694
      %v2699 = vrcp.pop %v2697
      %v2700 = vmul.f32 %v2689, %v2698
      %v2701 = vmul.f32 %v2691, %v2699
      %v2702 = vpack.c.bf16 %v2700, %v2700
      %v2703 = vpack.c.bf16 %v2701, %v2701
      %v2705 = vsel %vm1236, %v2702, 0
      %v2708 = vsel %vm1264, %v2584, 0
      %2710 = vmatprep.subr.bf16.mxu0 0
      %2711 = vmatpush1.bf16.msra.mxu0 %v2708
      %2712 = vmatprep.subr.bf16.mxu0 0
      %2713 = vmatpush1.bf16.msra.mxu0 0
      %2714 = vmatprep.subr.bf16.mxu0 0
      %2715 = vmatpush1.bf16.msra.mxu0 0
      %2716 = vmatprep.subr.bf16.mxu0 0
      %2717 = vmatpush1.bf16.msra.mxu0 0
      %2718 = vmatprep.subr.bf16.mxu0 0
      %2719 = vmatpush1.bf16.msra.mxu0 0
      %2720 = vmatprep.subr.bf16.mxu0 0
      %2721 = vmatpush1.bf16.msra.mxu0 0
      %2722 = vmatprep.subr.bf16.mxu0 0
      %2723 = vmatpush1.bf16.msra.mxu0 0
      %2724 = vmatprep.subr.bf16.mxu0 0
      %2725 = vmatpush1.bf16.msra.mxu0 0
      %2726 = vmatprep.subr.bf16.mxu0 0
      %2727 = vmatpush1.bf16.msra.mxu0 0
      %2728 = vmatprep.subr.bf16.mxu0 0
      %2729 = vmatpush1.bf16.msra.mxu0 0
      %2730 = vmatprep.subr.bf16.mxu0 0
      %2731 = vmatpush1.bf16.msra.mxu0 0
      %2732 = vmatprep.subr.bf16.mxu0 0
      %2733 = vmatpush1.bf16.msra.mxu0 0
      %2734 = vmatprep.subr.bf16.mxu0 0
      %2735 = vmatpush1.bf16.msra.mxu0 0
      %2736 = vmatprep.subr.bf16.mxu0 0
      %2737 = vmatpush1.bf16.msra.mxu0 0
      %2738 = vmatprep.subr.bf16.mxu0 0
      %2739 = vmatpush1.bf16.msra.mxu0 0
      %2740 = vmatprep.subr.bf16.mxu0 0
      %2741 = vmatpush1.bf16.msra.mxu0 0
      %2742 = vmatprep.mubr.bf16.mxu0 0
      %2743 = vmatmul.mubr.bf16.gmra.mrb[0].mxu0 %v2705
      %v2744 = vpop.f32.mrb[0].mxu0
      %v2745 = vadd.f32 0.0, %v2744
      %v2746 = vpop.f32.mrb[0].mxu0
      %v2747 = vpop.f32.mrb[0].mxu0
      %v2748 = vpop.f32.mrb[0].mxu0
      %2749 = vdwg.mxu0
      %v2751 = vsel %vm1236, %v2703, 0
      %v2754 = vsel %vm1264, %v2585, 0
      %2756 = vmatprep.subr.bf16.mxu0 0
      %2757 = vmatpush1.bf16.msra.mxu0 %v2754
      %2758 = vmatprep.subr.bf16.mxu0 0
      %2759 = vmatpush1.bf16.msra.mxu0 0
      %2760 = vmatprep.subr.bf16.mxu0 0
      %2761 = vmatpush1.bf16.msra.mxu0 0
      %2762 = vmatprep.subr.bf16.mxu0 0
      %2763 = vmatpush1.bf16.msra.mxu0 0
      %2764 = vmatprep.subr.bf16.mxu0 0
      %2765 = vmatpush1.bf16.msra.mxu0 0
      %2766 = vmatprep.subr.bf16.mxu0 0
      %2767 = vmatpush1.bf16.msra.mxu0 0
      %2768 = vmatprep.subr.bf16.mxu0 0
      %2769 = vmatpush1.bf16.msra.mxu0 0
      %2770 = vmatprep.subr.bf16.mxu0 0
      %2771 = vmatpush1.bf16.msra.mxu0 0
      %2772 = vmatprep.subr.bf16.mxu0 0
      %2773 = vmatpush1.bf16.msra.mxu0 0
      %2774 = vmatprep.subr.bf16.mxu0 0
      %2775 = vmatpush1.bf16.msra.mxu0 0
      %2776 = vmatprep.subr.bf16.mxu0 0
      %2777 = vmatpush1.bf16.msra.mxu0 0
      %2778 = vmatprep.subr.bf16.mxu0 0
      %2779 = vmatpush1.bf16.msra.mxu0 0
      %2780 = vmatprep.subr.bf16.mxu0 0
      %2781 = vmatpush1.bf16.msra.mxu0 0
      %2782 = vmatprep.subr.bf16.mxu0 0
      %2783 = vmatpush1.bf16.msra.mxu0 0
      %2784 = vmatprep.subr.bf16.mxu0 0
      %2785 = vmatpush1.bf16.msra.mxu0 0
      %2786 = vmatprep.subr.bf16.mxu0 0
      %2787 = vmatpush1.bf16.msra.mxu0 0
      %2788 = vmatprep.mubr.bf16.mxu0 0
      %2789 = vmatmul.mubr.bf16.gmra.mrb[0].mxu0 %v2751
      %v2790 = vpop.f32.mrb[0].mxu0
      %v2791 = vadd.f32 0.0, %v2790
      %v2792 = vpop.f32.mrb[0].mxu0
      %v2793 = vpop.f32.mrb[0].mxu0
      %v2794 = vpop.f32.mrb[0].mxu0
      %2795 = vdwg.mxu0
      %v2796 = vpack.c.bf16 %v2791, %v2745
      %v2799 = vunpack.c.l.b16 %v916
      %v2800 = vunpack.c.l.b16 %v917
      %v2801 = vpack.c.b16 %v2800, %v2799
      %v2804 = vsel %vm1141, %v2796, 0
      %2806 = vmatprep.subr.bf16.mxu0 0
      %2807 = vmatpush1.bf16.msra.mxu0 %v2801
      %2808 = vmatprep.subr.bf16.mxu0 0
      %2809 = vmatpush1.bf16.msra.mxu0 0
      %2810 = vmatprep.subr.bf16.mxu0 0
      %2811 = vmatpush1.bf16.msra.mxu0 0
      %2812 = vmatprep.subr.bf16.mxu0 0
      %2813 = vmatpush1.bf16.msra.mxu0 0
      %2814 = vmatprep.subr.bf16.mxu0 0
      %2815 = vmatpush1.bf16.msra.mxu0 0
      %2816 = vmatprep.subr.bf16.mxu0 0
      %2817 = vmatpush1.bf16.msra.mxu0 0
      %2818 = vmatprep.subr.bf16.mxu0 0
      %2819 = vmatpush1.bf16.msra.mxu0 0
      %2820 = vmatprep.subr.bf16.mxu0 0
      %2821 = vmatpush1.bf16.msra.mxu0 0
      %2822 = vmatprep.subr.bf16.mxu0 0
      %2823 = vmatpush1.bf16.msra.mxu0 0
      %2824 = vmatprep.subr.bf16.mxu0 0
      %2825 = vmatpush1.bf16.msra.mxu0 0
      %2826 = vmatprep.subr.bf16.mxu0 0
      %2827 = vmatpush1.bf16.msra.mxu0 0
      %2828 = vmatprep.subr.bf16.mxu0 0
      %2829 = vmatpush1.bf16.msra.mxu0 0
      %2830 = vmatprep.subr.bf16.mxu0 0
      %2831 = vmatpush1.bf16.msra.mxu0 0
      %2832 = vmatprep.subr.bf16.mxu0 0
      %2833 = vmatpush1.bf16.msra.mxu0 0
      %2834 = vmatprep.subr.bf16.mxu0 0
      %2835 = vmatpush1.bf16.msra.mxu0 0
      %2836 = vmatprep.subr.bf16.mxu0 0
      %2837 = vmatpush1.bf16.msra.mxu0 0
      %2838 = vmatprep.mubr.bf16.mxu0 0
      %2839 = vmatmul.mubr.bf16.gmra.mrb[0].mxu0 %v2804
      %v2840 = vpop.f32.mrb[0].mxu0
      %v2841 = vadd.f32 0.0, %v2840
      %v2842 = vpop.f32.mrb[0].mxu0
      %v2843 = vpop.f32.mrb[0].mxu0
      %v2844 = vadd.f32 0.0, %v2843
      %v2845 = vpop.f32.mrb[0].mxu0
      %2846 = vdwg.mxu0
      %v2847 = vadd.f32 %v2365, %v2841
      %v2848 = vadd.f32 %v2366, %v2844
      %v2849 = vld [vmem:[%s727] sm:$0x1]
      %v2851 = vlaneseq
      %v2852 = vshrl.u32 %v2851, 7
      %v2853 = vsub.s32 0, %v2852
      %v2854 = vrot.slane %v2849, %v2853
      %v2856 = vadd.f32 %v2847, %v2854
      %v2857 = vadd.f32 %v2848, %v2854
      %v2858 = vadd.f32 %v799, %v2856
      %v2859 = vadd.f32 %v800, %v2857
      %v2860 = vld [vmem:[%s730] sm:$0x1]
      %v2861 = vld [vmem:[%s733] sm:$0x1]
      %v2862 = vsel %vm948, %v2858, 0.0
      %2863 = vadd.xlane.f32.xlu0 %v2862
      %v2864 = vpop.xlane.xlu0 %2863
      %v2865 = vsel %vm948, %v2859, 0.0
      %2866 = vadd.xlane.f32.xlu0 %v2865
      %v2867 = vpop.xlane.xlu0 %2866
      %v2868 = vrcp.pop 64.0
      %v2869 = vmul.f32 %v2864, %v2868
      %v2870 = vmul.f32 %v2867, %v2868
      %v2871 = vsub.f32 %v2858, %v2869
      %v2872 = vsub.f32 %v2859, %v2870
      %v2873 = vmul.f32 %v2871, %v2871
      %v2874 = vmul.f32 %v2872, %v2872
      %v2875 = vsel %vm948, %v2873, 0.0
      %2876 = vadd.xlane.f32.xlu0 %v2875
      %v2877 = vpop.xlane.xlu0 %2876
      %v2878 = vsel %vm948, %v2874, 0.0
      %2879 = vadd.xlane.f32.xlu0 %v2878
      %v2880 = vpop.xlane.xlu0 %2879
      %v2881 = vmul.f32 %v2877, %v2868
      %v2882 = vmul.f32 %v2880, %v2868
      %v2883 = vadd.f32 %v2881, 1e-05
      %v2884 = vadd.f32 %v2882, 1e-05
      %v2885 = vrsqrt.pop %v2883
      %v2886 = vrsqrt.pop %v2884
      %v2887 = vmul.f32 %v2871, %v2885
      %v2888 = vmul.f32 %v2872, %v2886
      %v2890 = vlaneseq
      %v2891 = vshrl.u32 %v2890, 7
      %v2892 = vsub.s32 0, %v2891
      %v2893 = vrot.slane %v2860, %v2892
      %v2895 = vmul.f32 %v2887, %v2893
      %v2896 = vmul.f32 %v2888, %v2893
      %v2898 = vlaneseq
      %v2899 = vshrl.u32 %v2898, 7
      %v2900 = vsub.s32 0, %v2899
      %v2901 = vrot.slane %v2861, %v2900
      %v2903 = vadd.f32 %v2895, %v2901
      %v2904 = vadd.f32 %v2896, %v2901
      %v2905 = vpack.c.bf16 %v2904, %v2903
      %v2906 = vld [vmem:[%s738] sm:$0xff]
      %v2907 = vld [vmem:[%s738 + $0x8] sm:$0xff]
      %v2908 = vld [vmem:[%s738 + $0x10] sm:$0xff]
      %v2909 = vld [vmem:[%s738 + $0x18] sm:$0xff]
      %v2910 = vld [vmem:[%s738 + $0x20] sm:$0xff]
      %v2911 = vld [vmem:[%s738 + $0x28] sm:$0xff]
      %v2912 = vld [vmem:[%s738 + $0x30] sm:$0xff]
      %v2913 = vld [vmem:[%s738 + $0x38] sm:$0xff]
      %v2914 = vld [vmem:[%s738 + $0x40] sm:$0xff]
      %v2915 = vld [vmem:[%s738 + $0x48] sm:$0xff]
      %v2916 = vld [vmem:[%s738 + $0x50] sm:$0xff]
      %v2917 = vld [vmem:[%s738 + $0x58] sm:$0xff]
      %v2918 = vld [vmem:[%s738 + $0x60] sm:$0xff]
      %v2919 = vld [vmem:[%s738 + $0x68] sm:$0xff]
      %v2920 = vld [vmem:[%s738 + $0x70] sm:$0xff]
      %v2921 = vld [vmem:[%s738 + $0x78] sm:$0xff]
      %v2922 = vld [vmem:[%s738 + $0x80] sm:$0xff]
      %v2923 = vld [vmem:[%s738 + $0x88] sm:$0xff]
      %v2924 = vld [vmem:[%s738 + $0x90] sm:$0xff]
      %v2925 = vld [vmem:[%s738 + $0x98] sm:$0xff]
      %v2926 = vld [vmem:[%s738 + $0xa0] sm:$0xff]
      %v2927 = vld [vmem:[%s738 + $0xa8] sm:$0xff]
      %v2928 = vld [vmem:[%s738 + $0xb0] sm:$0xff]
      %v2929 = vld [vmem:[%s738 + $0xb8] sm:$0xff]
      %v2930 = vld [vmem:[%s738 + $0xc0] sm:$0xff]
      %v2931 = vld [vmem:[%s738 + $0xc8] sm:$0xff]
      %v2932 = vld [vmem:[%s738 + $0xd0] sm:$0xff]
      %v2933 = vld [vmem:[%s738 + $0xd8] sm:$0xff]
      %v2934 = vld [vmem:[%s738 + $0xe0] sm:$0xff]
      %v2935 = vld [vmem:[%s738 + $0xe8] sm:$0xff]
      %v2936 = vld [vmem:[%s738 + $0xf0] sm:$0xff]
      %v2937 = vld [vmem:[%s738 + $0xf8] sm:$0xff]
      %v2938 = vld [vmem:[%s738 + $0x100] sm:$0xff]
      %v2939 = vld [vmem:[%s738 + $0x108] sm:$0xff]
      %v2940 = vld [vmem:[%s738 + $0x110] sm:$0xff]
      %v2941 = vld [vmem:[%s738 + $0x118] sm:$0xff]
      %v2942 = vld [vmem:[%s738 + $0x120] sm:$0xff]
      %v2943 = vld [vmem:[%s738 + $0x128] sm:$0xff]
      %v2944 = vld [vmem:[%s738 + $0x130] sm:$0xff]
      %v2945 = vld [vmem:[%s738 + $0x138] sm:$0xff]
      %v2946 = vld [vmem:[%s738 + $0x140] sm:$0xff]
      %v2947 = vld [vmem:[%s738 + $0x148] sm:$0xff]
      %v2948 = vld [vmem:[%s738 + $0x150] sm:$0xff]
      %v2949 = vld [vmem:[%s738 + $0x158] sm:$0xff]
      %v2950 = vld [vmem:[%s738 + $0x160] sm:$0xff]
      %v2951 = vld [vmem:[%s738 + $0x168] sm:$0xff]
      %v2952 = vld [vmem:[%s738 + $0x170] sm:$0xff]
      %v2953 = vld [vmem:[%s738 + $0x178] sm:$0xff]
      %v2954 = vld [vmem:[%s738 + $0x180] sm:$0xff]
      %v2955 = vld [vmem:[%s738 + $0x188] sm:$0xff]
      %v2956 = vld [vmem:[%s738 + $0x190] sm:$0xff]
      %v2957 = vld [vmem:[%s738 + $0x198] sm:$0xff]
      %v2958 = vld [vmem:[%s738 + $0x1a0] sm:$0xff]
      %v2959 = vld [vmem:[%s738 + $0x1a8] sm:$0xff]
      %v2960 = vld [vmem:[%s738 + $0x1b0] sm:$0xff]
      %v2961 = vld [vmem:[%s738 + $0x1b8] sm:$0xff]
      %v2962 = vld [vmem:[%s738 + $0x1c0] sm:$0xff]
      %v2963 = vld [vmem:[%s738 + $0x1c8] sm:$0xff]
      %v2964 = vld [vmem:[%s738 + $0x1d0] sm:$0xff]
      %v2965 = vld [vmem:[%s738 + $0x1d8] sm:$0xff]
      %v2966 = vld [vmem:[%s738 + $0x1e0] sm:$0xff]
      %v2967 = vld [vmem:[%s738 + $0x1e8] sm:$0xff]
      %v2968 = vld [vmem:[%s738 + $0x1f0] sm:$0xff]
      %v2969 = vld [vmem:[%s738 + $0x1f8] sm:$0xff]
      %v2970 = vld [vmem:[%s742] sm:$0xff]
      %v2971 = vld [vmem:[%s742 + $0x8] sm:$0xff]
      %v2974 = vlaneseq
      %v2975 = vshrl.u32 %v2974, 7
      %v2976 = vsub.s32 0, %v2975
      %v2977 = vrot.slane %v2970, %v2976
      %v2978 = vlaneseq
      %v2979 = vshrl.u32 %v2978, 7
      %v2980 = vsub.s32 1, %v2979
      %v2981 = vrot.slane %v2970, %v2980
      %v2982 = vlaneseq
      %v2983 = vshrl.u32 %v2982, 7
      %v2984 = vsub.s32 2, %v2983
      %v2985 = vrot.slane %v2970, %v2984
      %v2986 = vlaneseq
      %v2987 = vshrl.u32 %v2986, 7
      %v2988 = vsub.s32 3, %v2987
      %v2989 = vrot.slane %v2970, %v2988
      %v2990 = vlaneseq
      %v2991 = vshrl.u32 %v2990, 7
      %v2992 = vsub.s32 4, %v2991
      %v2993 = vrot.slane %v2970, %v2992
      %v2994 = vlaneseq
      %v2995 = vshrl.u32 %v2994, 7
      %v2996 = vsub.s32 5, %v2995
      %v2997 = vrot.slane %v2970, %v2996
      %v2998 = vlaneseq
      %v2999 = vshrl.u32 %v2998, 7
      %v3000 = vsub.s32 6, %v2999
      %v3001 = vrot.slane %v2970, %v3000
      %v3002 = vlaneseq
      %v3003 = vshrl.u32 %v3002, 7
      %v3004 = vsub.s32 7, %v3003
      %v3005 = vrot.slane %v2970, %v3004
      %v3006 = vlaneseq
      %v3007 = vshrl.u32 %v3006, 7
      %v3008 = vsub.s32 0, %v3007
      %v3009 = vrot.slane %v2971, %v3008
      %v3010 = vlaneseq
      %v3011 = vshrl.u32 %v3010, 7
      %v3012 = vsub.s32 1, %v3011
      %v3013 = vrot.slane %v2971, %v3012
      %v3014 = vlaneseq
      %v3015 = vshrl.u32 %v3014, 7
      %v3016 = vsub.s32 2, %v3015
      %v3017 = vrot.slane %v2971, %v3016
      %v3018 = vlaneseq
      %v3019 = vshrl.u32 %v3018, 7
      %v3020 = vsub.s32 3, %v3019
      %v3021 = vrot.slane %v2971, %v3020
      %v3022 = vlaneseq
      %v3023 = vshrl.u32 %v3022, 7
      %v3024 = vsub.s32 4, %v3023
      %v3025 = vrot.slane %v2971, %v3024
      %v3026 = vlaneseq
      %v3027 = vshrl.u32 %v3026, 7
      %v3028 = vsub.s32 5, %v3027
      %v3029 = vrot.slane %v2971, %v3028
      %v3030 = vlaneseq
      %v3031 = vshrl.u32 %v3030, 7
      %v3032 = vsub.s32 6, %v3031
      %v3033 = vrot.slane %v2971, %v3032
      %v3034 = vlaneseq
      %v3035 = vshrl.u32 %v3034, 7
      %v3036 = vsub.s32 7, %v3035
      %v3037 = vrot.slane %v2971, %v3036
      %v3118 = vunpack.c.l.b16 %v2906
      %v3119 = vunpack.c.h.b16 %v2906
      %v3120 = vunpack.c.l.b16 %v2907
      %v3121 = vunpack.c.h.b16 %v2907
      %v3122 = vunpack.c.l.b16 %v2908
      %v3123 = vunpack.c.h.b16 %v2908
      %v3124 = vunpack.c.l.b16 %v2909
      %v3125 = vunpack.c.h.b16 %v2909
      %v3126 = vunpack.c.l.b16 %v2910
      %v3127 = vunpack.c.h.b16 %v2910
      %v3128 = vunpack.c.l.b16 %v2911
      %v3129 = vunpack.c.h.b16 %v2911
      %v3130 = vunpack.c.l.b16 %v2912
      %v3131 = vunpack.c.h.b16 %v2912
      %v3132 = vunpack.c.l.b16 %v2913
      %v3133 = vunpack.c.h.b16 %v2913
      %v3134 = vunpack.c.l.b16 %v2914
      %v3135 = vunpack.c.h.b16 %v2914
      %v3136 = vunpack.c.l.b16 %v2915
      %v3137 = vunpack.c.h.b16 %v2915
      %v3138 = vunpack.c.l.b16 %v2916
      %v3139 = vunpack.c.h.b16 %v2916
      %v3140 = vunpack.c.l.b16 %v2917
      %v3141 = vunpack.c.h.b16 %v2917
      %v3142 = vunpack.c.l.b16 %v2918
      %v3143 = vunpack.c.h.b16 %v2918
      %v3144 = vunpack.c.l.b16 %v2919
      %v3145 = vunpack.c.h.b16 %v2919
      %v3146 = vunpack.c.l.b16 %v2920
      %v3147 = vunpack.c.h.b16 %v2920
      %v3148 = vunpack.c.l.b16 %v2921
      %v3149 = vunpack.c.h.b16 %v2921
      %v3150 = vunpack.c.l.b16 %v2922
      %v3151 = vunpack.c.h.b16 %v2922
      %v3152 = vunpack.c.l.b16 %v2923
      %v3153 = vunpack.c.h.b16 %v2923
      %v3154 = vunpack.c.l.b16 %v2924
      %v3155 = vunpack.c.h.b16 %v2924
      %v3156 = vunpack.c.l.b16 %v2925
      %v3157 = vunpack.c.h.b16 %v2925
      %v3158 = vunpack.c.l.b16 %v2926
      %v3159 = vunpack.c.h.b16 %v2926
      %v3160 = vunpack.c.l.b16 %v2927
      %v3161 = vunpack.c.h.b16 %v2927
      %v3162 = vunpack.c.l.b16 %v2928
      %v3163 = vunpack.c.h.b16 %v2928
      %v3164 = vunpack.c.l.b16 %v2929
      %v3165 = vunpack.c.h.b16 %v2929
      %v3166 = vunpack.c.l.b16 %v2930
      %v3167 = vunpack.c.h.b16 %v2930
      %v3168 = vunpack.c.l.b16 %v2931
      %v3169 = vunpack.c.h.b16 %v2931
      %v3170 = vunpack.c.l.b16 %v2932
      %v3171 = vunpack.c.h.b16 %v2932
      %v3172 = vunpack.c.l.b16 %v2933
      %v3173 = vunpack.c.h.b16 %v2933
      %v3174 = vunpack.c.l.b16 %v2934
      %v3175 = vunpack.c.h.b16 %v2934
      %v3176 = vunpack.c.l.b16 %v2935
      %v3177 = vunpack.c.h.b16 %v2935
      %v3178 = vunpack.c.l.b16 %v2936
      %v3179 = vunpack.c.h.b16 %v2936
      %v3180 = vunpack.c.l.b16 %v2937
      %v3181 = vunpack.c.h.b16 %v2937
      %v3182 = vunpack.c.l.b16 %v2938
      %v3183 = vunpack.c.h.b16 %v2938
      %v3184 = vunpack.c.l.b16 %v2939
      %v3185 = vunpack.c.h.b16 %v2939
      %v3186 = vunpack.c.l.b16 %v2940
      %v3187 = vunpack.c.h.b16 %v2940
      %v3188 = vunpack.c.l.b16 %v2941
      %v3189 = vunpack.c.h.b16 %v2941
      %v3190 = vunpack.c.l.b16 %v2942
      %v3191 = vunpack.c.h.b16 %v2942
      %v3192 = vunpack.c.l.b16 %v2943
      %v3193 = vunpack.c.h.b16 %v2943
      %v3194 = vunpack.c.l.b16 %v2944
      %v3195 = vunpack.c.h.b16 %v2944
      %v3196 = vunpack.c.l.b16 %v2945
      %v3197 = vunpack.c.h.b16 %v2945
      %v3198 = vunpack.c.l.b16 %v2946
      %v3199 = vunpack.c.h.b16 %v2946
      %v3200 = vunpack.c.l.b16 %v2947
      %v3201 = vunpack.c.h.b16 %v2947
      %v3202 = vunpack.c.l.b16 %v2948
      %v3203 = vunpack.c.h.b16 %v2948
      %v3204 = vunpack.c.l.b16 %v2949
      %v3205 = vunpack.c.h.b16 %v2949
      %v3206 = vunpack.c.l.b16 %v2950
      %v3207 = vunpack.c.h.b16 %v2950
      %v3208 = vunpack.c.l.b16 %v2951
      %v3209 = vunpack.c.h.b16 %v2951
      %v3210 = vunpack.c.l.b16 %v2952
      %v3211 = vunpack.c.h.b16 %v2952
      %v3212 = vunpack.c.l.b16 %v2953
      %v3213 = vunpack.c.h.b16 %v2953
      %v3214 = vunpack.c.l.b16 %v2954
      %v3215 = vunpack.c.h.b16 %v2954
      %v3216 = vunpack.c.l.b16 %v2955
      %v3217 = vunpack.c.h.b16 %v2955
      %v3218 = vunpack.c.l.b16 %v2956
      %v3219 = vunpack.c.h.b16 %v2956
      %v3220 = vunpack.c.l.b16 %v2957
      %v3221 = vunpack.c.h.b16 %v2957
      %v3222 = vunpack.c.l.b16 %v2958
      %v3223 = vunpack.c.h.b16 %v2958
      %v3224 = vunpack.c.l.b16 %v2959
      %v3225 = vunpack.c.h.b16 %v2959
      %v3226 = vunpack.c.l.b16 %v2960
      %v3227 = vunpack.c.h.b16 %v2960
      %v3228 = vunpack.c.l.b16 %v2961
      %v3229 = vunpack.c.h.b16 %v2961
      %v3230 = vunpack.c.l.b16 %v2962
      %v3231 = vunpack.c.h.b16 %v2962
      %v3232 = vunpack.c.l.b16 %v2963
      %v3233 = vunpack.c.h.b16 %v2963
      %v3234 = vunpack.c.l.b16 %v2964
      %v3235 = vunpack.c.h.b16 %v2964
      %v3236 = vunpack.c.l.b16 %v2965
      %v3237 = vunpack.c.h.b16 %v2965
      %v3238 = vunpack.c.l.b16 %v2966
      %v3239 = vunpack.c.h.b16 %v2966
      %v3240 = vunpack.c.l.b16 %v2967
      %v3241 = vunpack.c.h.b16 %v2967
      %v3242 = vunpack.c.l.b16 %v2968
      %v3243 = vunpack.c.h.b16 %v2968
      %v3244 = vunpack.c.l.b16 %v2969
      %v3245 = vunpack.c.h.b16 %v2969
      %v3246 = vpack.c.b16 %v3134, %v3118
      %v3247 = vpack.c.b16 %v3135, %v3119
      %v3248 = vpack.c.b16 %v3136, %v3120
      %v3249 = vpack.c.b16 %v3137, %v3121
      %v3250 = vpack.c.b16 %v3138, %v3122
      %v3251 = vpack.c.b16 %v3139, %v3123
      %v3252 = vpack.c.b16 %v3140, %v3124
      %v3253 = vpack.c.b16 %v3141, %v3125
      %v3254 = vpack.c.b16 %v3142, %v3126
      %v3255 = vpack.c.b16 %v3143, %v3127
      %v3256 = vpack.c.b16 %v3144, %v3128
      %v3257 = vpack.c.b16 %v3145, %v3129
      %v3258 = vpack.c.b16 %v3146, %v3130
      %v3259 = vpack.c.b16 %v3147, %v3131
      %v3260 = vpack.c.b16 %v3148, %v3132
      %v3261 = vpack.c.b16 %v3149, %v3133
      %v3262 = vpack.c.b16 %v3166, %v3150
      %v3263 = vpack.c.b16 %v3167, %v3151
      %v3264 = vpack.c.b16 %v3168, %v3152
      %v3265 = vpack.c.b16 %v3169, %v3153
      %v3266 = vpack.c.b16 %v3170, %v3154
      %v3267 = vpack.c.b16 %v3171, %v3155
      %v3268 = vpack.c.b16 %v3172, %v3156
      %v3269 = vpack.c.b16 %v3173, %v3157
      %v3270 = vpack.c.b16 %v3174, %v3158
      %v3271 = vpack.c.b16 %v3175, %v3159
      %v3272 = vpack.c.b16 %v3176, %v3160
      %v3273 = vpack.c.b16 %v3177, %v3161
      %v3274 = vpack.c.b16 %v3178, %v3162
      %v3275 = vpack.c.b16 %v3179, %v3163
      %v3276 = vpack.c.b16 %v3180, %v3164
      %v3277 = vpack.c.b16 %v3181, %v3165
      %v3278 = vpack.c.b16 %v3198, %v3182
      %v3279 = vpack.c.b16 %v3199, %v3183
      %v3280 = vpack.c.b16 %v3200, %v3184
      %v3281 = vpack.c.b16 %v3201, %v3185
      %v3282 = vpack.c.b16 %v3202, %v3186
      %v3283 = vpack.c.b16 %v3203, %v3187
      %v3284 = vpack.c.b16 %v3204, %v3188
      %v3285 = vpack.c.b16 %v3205, %v3189
      %v3286 = vpack.c.b16 %v3206, %v3190
      %v3287 = vpack.c.b16 %v3207, %v3191
      %v3288 = vpack.c.b16 %v3208, %v3192
      %v3289 = vpack.c.b16 %v3209, %v3193
      %v3290 = vpack.c.b16 %v3210, %v3194
      %v3291 = vpack.c.b16 %v3211, %v3195
      %v3292 = vpack.c.b16 %v3212, %v3196
      %v3293 = vpack.c.b16 %v3213, %v3197
      %v3294 = vpack.c.b16 %v3230, %v3214
      %v3295 = vpack.c.b16 %v3231, %v3215
      %v3296 = vpack.c.b16 %v3232, %v3216
      %v3297 = vpack.c.b16 %v3233, %v3217
      %v3298 = vpack.c.b16 %v3234, %v3218
      %v3299 = vpack.c.b16 %v3235, %v3219
      %v3300 = vpack.c.b16 %v3236, %v3220
      %v3301 = vpack.c.b16 %v3237, %v3221
      %v3302 = vpack.c.b16 %v3238, %v3222
      %v3303 = vpack.c.b16 %v3239, %v3223
      %v3304 = vpack.c.b16 %v3240, %v3224
      %v3305 = vpack.c.b16 %v3241, %v3225
      %v3306 = vpack.c.b16 %v3242, %v3226
      %v3307 = vpack.c.b16 %v3243, %v3227
      %v3308 = vpack.c.b16 %v3244, %v3228
      %v3309 = vpack.c.b16 %v3245, %v3229
      %v3375 = vsel %vm948, %v2905, 0
      %3377 = vmatprep.subr.bf16.mxu0 %v3247
      %3378 = vmatpush1.bf16.msra.mxu0 %v3246
      %3379 = vmatprep.subr.bf16.mxu0 %v3263
      %3380 = vmatpush1.bf16.msra.mxu0 %v3262
      %3381 = vmatprep.subr.bf16.mxu0 %v3279
      %3382 = vmatpush1.bf16.msra.mxu0 %v3278
      %3383 = vmatprep.subr.bf16.mxu0 %v3295
      %3384 = vmatpush1.bf16.msra.mxu0 %v3294
      %3385 = vmatprep.subr.bf16.mxu0 0
      %3386 = vmatpush1.bf16.msra.mxu0 0
      %3387 = vmatprep.subr.bf16.mxu0 0
      %3388 = vmatpush1.bf16.msra.mxu0 0
      %3389 = vmatprep.subr.bf16.mxu0 0
      %3390 = vmatpush1.bf16.msra.mxu0 0
      %3391 = vmatprep.subr.bf16.mxu0 0
      %3392 = vmatpush1.bf16.msra.mxu0 0
      %3393 = vmatprep.subr.bf16.mxu0 0
      %3394 = vmatpush1.bf16.msra.mxu0 0
      %3395 = vmatprep.subr.bf16.mxu0 0
      %3396 = vmatpush1.bf16.msra.mxu0 0
      %3397 = vmatprep.subr.bf16.mxu0 0
      %3398 = vmatpush1.bf16.msra.mxu0 0
      %3399 = vmatprep.subr.bf16.mxu0 0
      %3400 = vmatpush1.bf16.msra.mxu0 0
      %3401 = vmatprep.subr.bf16.mxu0 0
      %3402 = vmatpush1.bf16.msra.mxu0 0
      %3403 = vmatprep.subr.bf16.mxu0 0
      %3404 = vmatpush1.bf16.msra.mxu0 0
      %3405 = vmatprep.subr.bf16.mxu0 0
      %3406 = vmatpush1.bf16.msra.mxu0 0
      %3407 = vmatprep.subr.bf16.mxu0 0
      %3408 = vmatpush1.bf16.msra.mxu0 0
      %3409 = vmatprep.mubr.bf16.mxu0 0
      %3410 = vmatmul.mubr.bf16.gmra.mrb[0].mxu0 %v3375
      %v3411 = vpop.f32.mrb[0].mxu0
      %v3412 = vadd.f32 %v2977, %v3411
      %v3413 = vpop.f32.mrb[0].mxu0
      %v3414 = vadd.f32 %v2981, %v3413
      %v3415 = vpop.f32.mrb[0].mxu0
      %v3416 = vadd.f32 %v2977, %v3415
      %v3417 = vpop.f32.mrb[0].mxu0
      %v3418 = vadd.f32 %v2981, %v3417
      %3419 = vdwg.mxu0
      %3420 = vmatprep.subr.bf16.mxu0 %v3249
      %3421 = vmatpush1.bf16.msra.mxu0 %v3248
      %3422 = vmatprep.subr.bf16.mxu0 %v3265
      %3423 = vmatpush1.bf16.msra.mxu0 %v3264
      %3424 = vmatprep.subr.bf16.mxu0 %v3281
      %3425 = vmatpush1.bf16.msra.mxu0 %v3280
      %3426 = vmatprep.subr.bf16.mxu0 %v3297
      %3427 = vmatpush1.bf16.msra.mxu0 %v3296
      %3428 = vmatprep.subr.bf16.mxu0 0
      %3429 = vmatpush1.bf16.msra.mxu0 0
      %3430 = vmatprep.subr.bf16.mxu0 0
      %3431 = vmatpush1.bf16.msra.mxu0 0
      %3432 = vmatprep.subr.bf16.mxu0 0
      %3433 = vmatpush1.bf16.msra.mxu0 0
      %3434 = vmatprep.subr.bf16.mxu0 0
      %3435 = vmatpush1.bf16.msra.mxu0 0
      %3436 = vmatprep.subr.bf16.mxu0 0
      %3437 = vmatpush1.bf16.msra.mxu0 0
      %3438 = vmatprep.subr.bf16.mxu0 0
      %3439 = vmatpush1.bf16.msra.mxu0 0
      %3440 = vmatprep.subr.bf16.mxu0 0
      %3441 = vmatpush1.bf16.msra.mxu0 0
      %3442 = vmatprep.subr.bf16.mxu0 0
      %3443 = vmatpush1.bf16.msra.mxu0 0
      %3444 = vmatprep.subr.bf16.mxu0 0
      %3445 = vmatpush1.bf16.msra.mxu0 0
      %3446 = vmatprep.subr.bf16.mxu0 0
      %3447 = vmatpush1.bf16.msra.mxu0 0
      %3448 = vmatprep.subr.bf16.mxu0 0
      %3449 = vmatpush1.bf16.msra.mxu0 0
      %3450 = vmatprep.subr.bf16.mxu0 0
      %3451 = vmatpush1.bf16.msra.mxu0 0
      %3452 = vmatprep.mubr.bf16.mxu0 0
      %3453 = vmatmul.mubr.bf16.gmra.mrb[0].mxu0 %v3375
      %v3454 = vpop.f32.mrb[0].mxu0
      %v3455 = vadd.f32 %v2985, %v3454
      %v3456 = vpop.f32.mrb[0].mxu0
      %v3457 = vadd.f32 %v2989, %v3456
      %v3458 = vpop.f32.mrb[0].mxu0
      %v3459 = vadd.f32 %v2985, %v3458
      %v3460 = vpop.f32.mrb[0].mxu0
      %v3461 = vadd.f32 %v2989, %v3460
      %3462 = vdwg.mxu0
      %3463 = vmatprep.subr.bf16.mxu0 %v3251
      %3464 = vmatpush1.bf16.msra.mxu0 %v3250
      %3465 = vmatprep.subr.bf16.mxu0 %v3267
      %3466 = vmatpush1.bf16.msra.mxu0 %v3266
      %3467 = vmatprep.subr.bf16.mxu0 %v3283
      %3468 = vmatpush1.bf16.msra.mxu0 %v3282
      %3469 = vmatprep.subr.bf16.mxu0 %v3299
      %3470 = vmatpush1.bf16.msra.mxu0 %v3298
      %3471 = vmatprep.subr.bf16.mxu0 0
      %3472 = vmatpush1.bf16.msra.mxu0 0
      %3473 = vmatprep.subr.bf16.mxu0 0
      %3474 = vmatpush1.bf16.msra.mxu0 0
      %3475 = vmatprep.subr.bf16.mxu0 0
      %3476 = vmatpush1.bf16.msra.mxu0 0
      %3477 = vmatprep.subr.bf16.mxu0 0
      %3478 = vmatpush1.bf16.msra.mxu0 0
      %3479 = vmatprep.subr.bf16.mxu0 0
      %3480 = vmatpush1.bf16.msra.mxu0 0
      %3481 = vmatprep.subr.bf16.mxu0 0
      %3482 = vmatpush1.bf16.msra.mxu0 0
      %3483 = vmatprep.subr.bf16.mxu0 0
      %3484 = vmatpush1.bf16.msra.mxu0 0
      %3485 = vmatprep.subr.bf16.mxu0 0
      %3486 = vmatpush1.bf16.msra.mxu0 0
      %3487 = vmatprep.subr.bf16.mxu0 0
      %3488 = vmatpush1.bf16.msra.mxu0 0
      %3489 = vmatprep.subr.bf16.mxu0 0
      %3490 = vmatpush1.bf16.msra.mxu0 0
      %3491 = vmatprep.subr.bf16.mxu0 0
      %3492 = vmatpush1.bf16.msra.mxu0 0
      %3493 = vmatprep.subr.bf16.mxu0 0
      %3494 = vmatpush1.bf16.msra.mxu0 0
      %3495 = vmatprep.mubr.bf16.mxu0 0
      %3496 = vmatmul.mubr.bf16.gmra.mrb[0].mxu0 %v3375
      %v3497 = vpop.f32.mrb[0].mxu0
      %v3498 = vadd.f32 %v2993, %v3497
      %v3499 = vpop.f32.mrb[0].mxu0
      %v3500 = vadd.f32 %v2997, %v3499
      %v3501 = vpop.f32.mrb[0].mxu0
      %v3502 = vadd.f32 %v2993, %v3501
      %v3503 = vpop.f32.mrb[0].mxu0
      %v3504 = vadd.f32 %v2997, %v3503
      %3505 = vdwg.mxu0
      %3506 = vmatprep.subr.bf16.mxu0 %v3253
      %3507 = vmatpush1.bf16.msra.mxu0 %v3252
      %3508 = vmatprep.subr.bf16.mxu0 %v3269
      %3509 = vmatpush1.bf16.msra.mxu0 %v3268
      %3510 = vmatprep.subr.bf16.mxu0 %v3285
      %3511 = vmatpush1.bf16.msra.mxu0 %v3284
      %3512 = vmatprep.subr.bf16.mxu0 %v3301
      %3513 = vmatpush1.bf16.msra.mxu0 %v3300
      %3514 = vmatprep.subr.bf16.mxu0 0
      %3515 = vmatpush1.bf16.msra.mxu0 0
      %3516 = vmatprep.subr.bf16.mxu0 0
      %3517 = vmatpush1.bf16.msra.mxu0 0
      %3518 = vmatprep.subr.bf16.mxu0 0
      %3519 = vmatpush1.bf16.msra.mxu0 0
      %3520 = vmatprep.subr.bf16.mxu0 0
      %3521 = vmatpush1.bf16.msra.mxu0 0
      %3522 = vmatprep.subr.bf16.mxu0 0
      %3523 = vmatpush1.bf16.msra.mxu0 0
      %3524 = vmatprep.subr.bf16.mxu0 0
      %3525 = vmatpush1.bf16.msra.mxu0 0
      %3526 = vmatprep.subr.bf16.mxu0 0
      %3527 = vmatpush1.bf16.msra.mxu0 0
      %3528 = vmatprep.subr.bf16.mxu0 0
      %3529 = vmatpush1.bf16.msra.mxu0 0
      %3530 = vmatprep.subr.bf16.mxu0 0
      %3531 = vmatpush1.bf16.msra.mxu0 0
      %3532 = vmatprep.subr.bf16.mxu0 0
      %3533 = vmatpush1.bf16.msra.mxu0 0
      %3534 = vmatprep.subr.bf16.mxu0 0
      %3535 = vmatpush1.bf16.msra.mxu0 0
      %3536 = vmatprep.subr.bf16.mxu0 0
      %3537 = vmatpush1.bf16.msra.mxu0 0
      %3538 = vmatprep.mubr.bf16.mxu0 0
      %3539 = vmatmul.mubr.bf16.gmra.mrb[0].mxu0 %v3375
      %v3540 = vpop.f32.mrb[0].mxu0
      %v3541 = vadd.f32 %v3001, %v3540
      %v3542 = vpop.f32.mrb[0].mxu0
      %v3543 = vadd.f32 %v3005, %v3542
      %v3544 = vpop.f32.mrb[0].mxu0
      %v3545 = vadd.f32 %v3001, %v3544
      %v3546 = vpop.f32.mrb[0].mxu0
      %v3547 = vadd.f32 %v3005, %v3546
      %3548 = vdwg.mxu0
      %3549 = vmatprep.subr.bf16.mxu0 %v3255
      %3550 = vmatpush1.bf16.msra.mxu0 %v3254
      %3551 = vmatprep.subr.bf16.mxu0 %v3271
      %3552 = vmatpush1.bf16.msra.mxu0 %v3270
      %3553 = vmatprep.subr.bf16.mxu0 %v3287
      %3554 = vmatpush1.bf16.msra.mxu0 %v3286
      %3555 = vmatprep.subr.bf16.mxu0 %v3303
      %3556 = vmatpush1.bf16.msra.mxu0 %v3302
      %3557 = vmatprep.subr.bf16.mxu0 0
      %3558 = vmatpush1.bf16.msra.mxu0 0
      %3559 = vmatprep.subr.bf16.mxu0 0
      %3560 = vmatpush1.bf16.msra.mxu0 0
      %3561 = vmatprep.subr.bf16.mxu0 0
      %3562 = vmatpush1.bf16.msra.mxu0 0
      %3563 = vmatprep.subr.bf16.mxu0 0
      %3564 = vmatpush1.bf16.msra.mxu0 0
      %3565 = vmatprep.subr.bf16.mxu0 0
      %3566 = vmatpush1.bf16.msra.mxu0 0
      %3567 = vmatprep.subr.bf16.mxu0 0
      %3568 = vmatpush1.bf16.msra.mxu0 0
      %3569 = vmatprep.subr.bf16.mxu0 0
      %3570 = vmatpush1.bf16.msra.mxu0 0
      %3571 = vmatprep.subr.bf16.mxu0 0
      %3572 = vmatpush1.bf16.msra.mxu0 0
      %3573 = vmatprep.subr.bf16.mxu0 0
      %3574 = vmatpush1.bf16.msra.mxu0 0
      %3575 = vmatprep.subr.bf16.mxu0 0
      %3576 = vmatpush1.bf16.msra.mxu0 0
      %3577 = vmatprep.subr.bf16.mxu0 0
      %3578 = vmatpush1.bf16.msra.mxu0 0
      %3579 = vmatprep.subr.bf16.mxu0 0
      %3580 = vmatpush1.bf16.msra.mxu0 0
      %3581 = vmatprep.mubr.bf16.mxu0 0
      %3582 = vmatmul.mubr.bf16.gmra.mrb[0].mxu0 %v3375
      %v3583 = vpop.f32.mrb[0].mxu0
      %v3584 = vadd.f32 %v3009, %v3583
      %v3585 = vpop.f32.mrb[0].mxu0
      %v3586 = vadd.f32 %v3013, %v3585
      %v3587 = vpop.f32.mrb[0].mxu0
      %v3588 = vadd.f32 %v3009, %v3587
      %v3589 = vpop.f32.mrb[0].mxu0
      %v3590 = vadd.f32 %v3013, %v3589
      %3591 = vdwg.mxu0
      %3592 = vmatprep.subr.bf16.mxu0 %v3257
      %3593 = vmatpush1.bf16.msra.mxu0 %v3256
      %3594 = vmatprep.subr.bf16.mxu0 %v3273
      %3595 = vmatpush1.bf16.msra.mxu0 %v3272
      %3596 = vmatprep.subr.bf16.mxu0 %v3289
      %3597 = vmatpush1.bf16.msra.mxu0 %v3288
      %3598 = vmatprep.subr.bf16.mxu0 %v3305
      %3599 = vmatpush1.bf16.msra.mxu0 %v3304
      %3600 = vmatprep.subr.bf16.mxu0 0
      %3601 = vmatpush1.bf16.msra.mxu0 0
      %3602 = vmatprep.subr.bf16.mxu0 0
      %3603 = vmatpush1.bf16.msra.mxu0 0
      %3604 = vmatprep.subr.bf16.mxu0 0
      %3605 = vmatpush1.bf16.msra.mxu0 0
      %3606 = vmatprep.subr.bf16.mxu0 0
      %3607 = vmatpush1.bf16.msra.mxu0 0
      %3608 = vmatprep.subr.bf16.mxu0 0
      %3609 = vmatpush1.bf16.msra.mxu0 0
      %3610 = vmatprep.subr.bf16.mxu0 0
      %3611 = vmatpush1.bf16.msra.mxu0 0
      %3612 = vmatprep.subr.bf16.mxu0 0
      %3613 = vmatpush1.bf16.msra.mxu0 0
      %3614 = vmatprep.subr.bf16.mxu0 0
      %3615 = vmatpush1.bf16.msra.mxu0 0
      %3616 = vmatprep.subr.bf16.mxu0 0
      %3617 = vmatpush1.bf16.msra.mxu0 0
      %3618 = vmatprep.subr.bf16.mxu0 0
      %3619 = vmatpush1.bf16.msra.mxu0 0
      %3620 = vmatprep.subr.bf16.mxu0 0
      %3621 = vmatpush1.bf16.msra.mxu0 0
      %3622 = vmatprep.subr.bf16.mxu0 0
      %3623 = vmatpush1.bf16.msra.mxu0 0
      %3624 = vmatprep.mubr.bf16.mxu0 0
      %3625 = vmatmul.mubr.bf16.gmra.mrb[0].mxu0 %v3375
      %v3626 = vpop.f32.mrb[0].mxu0
      %v3627 = vadd.f32 %v3017, %v3626
      %v3628 = vpop.f32.mrb[0].mxu0
      %v3629 = vadd.f32 %v3021, %v3628
      %v3630 = vpop.f32.mrb[0].mxu0
      %v3631 = vadd.f32 %v3017, %v3630
      %v3632 = vpop.f32.mrb[0].mxu0
      %v3633 = vadd.f32 %v3021, %v3632
      %3634 = vdwg.mxu0
      %3635 = vmatprep.subr.bf16.mxu0 %v3259
      %3636 = vmatpush1.bf16.msra.mxu0 %v3258
      %3637 = vmatprep.subr.bf16.mxu0 %v3275
      %3638 = vmatpush1.bf16.msra.mxu0 %v3274
      %3639 = vmatprep.subr.bf16.mxu0 %v3291
      %3640 = vmatpush1.bf16.msra.mxu0 %v3290
      %3641 = vmatprep.subr.bf16.mxu0 %v3307
      %3642 = vmatpush1.bf16.msra.mxu0 %v3306
      %3643 = vmatprep.subr.bf16.mxu0 0
      %3644 = vmatpush1.bf16.msra.mxu0 0
      %3645 = vmatprep.subr.bf16.mxu0 0
      %3646 = vmatpush1.bf16.msra.mxu0 0
      %3647 = vmatprep.subr.bf16.mxu0 0
      %3648 = vmatpush1.bf16.msra.mxu0 0
      %3649 = vmatprep.subr.bf16.mxu0 0
      %3650 = vmatpush1.bf16.msra.mxu0 0
      %3651 = vmatprep.subr.bf16.mxu0 0
      %3652 = vmatpush1.bf16.msra.mxu0 0
      %3653 = vmatprep.subr.bf16.mxu0 0
      %3654 = vmatpush1.bf16.msra.mxu0 0
      %3655 = vmatprep.subr.bf16.mxu0 0
      %3656 = vmatpush1.bf16.msra.mxu0 0
      %3657 = vmatprep.subr.bf16.mxu0 0
      %3658 = vmatpush1.bf16.msra.mxu0 0
      %3659 = vmatprep.subr.bf16.mxu0 0
      %3660 = vmatpush1.bf16.msra.mxu0 0
      %3661 = vmatprep.subr.bf16.mxu0 0
      %3662 = vmatpush1.bf16.msra.mxu0 0
      %3663 = vmatprep.subr.bf16.mxu0 0
      %3664 = vmatpush1.bf16.msra.mxu0 0
      %3665 = vmatprep.subr.bf16.mxu0 0
      %3666 = vmatpush1.bf16.msra.mxu0 0
      %3667 = vmatprep.mubr.bf16.mxu0 0
      %3668 = vmatmul.mubr.bf16.gmra.mrb[0].mxu0 %v3375
      %v3669 = vpop.f32.mrb[0].mxu0
      %v3670 = vadd.f32 %v3025, %v3669
      %v3671 = vpop.f32.mrb[0].mxu0
      %v3672 = vadd.f32 %v3029, %v3671
      %v3673 = vpop.f32.mrb[0].mxu0
      %v3674 = vadd.f32 %v3025, %v3673
      %v3675 = vpop.f32.mrb[0].mxu0
      %v3676 = vadd.f32 %v3029, %v3675
      %3677 = vdwg.mxu0
      %3678 = vmatprep.subr.bf16.mxu0 %v3261
      %3679 = vmatpush1.bf16.msra.mxu0 %v3260
      %3680 = vmatprep.subr.bf16.mxu0 %v3277
      %3681 = vmatpush1.bf16.msra.mxu0 %v3276
      %3682 = vmatprep.subr.bf16.mxu0 %v3293
      %3683 = vmatpush1.bf16.msra.mxu0 %v3292
      %3684 = vmatprep.subr.bf16.mxu0 %v3309
      %3685 = vmatpush1.bf16.msra.mxu0 %v3308
      %3686 = vmatprep.subr.bf16.mxu0 0
      %3687 = vmatpush1.bf16.msra.mxu0 0
      %3688 = vmatprep.subr.bf16.mxu0 0
      %3689 = vmatpush1.bf16.msra.mxu0 0
      %3690 = vmatprep.subr.bf16.mxu0 0
      %3691 = vmatpush1.bf16.msra.mxu0 0
      %3692 = vmatprep.subr.bf16.mxu0 0
      %3693 = vmatpush1.bf16.msra.mxu0 0
      %3694 = vmatprep.subr.bf16.mxu0 0
      %3695 = vmatpush1.bf16.msra.mxu0 0
      %3696 = vmatprep.subr.bf16.mxu0 0
      %3697 = vmatpush1.bf16.msra.mxu0 0
      %3698 = vmatprep.subr.bf16.mxu0 0
      %3699 = vmatpush1.bf16.msra.mxu0 0
      %3700 = vmatprep.subr.bf16.mxu0 0
      %3701 = vmatpush1.bf16.msra.mxu0 0
      %3702 = vmatprep.subr.bf16.mxu0 0
      %3703 = vmatpush1.bf16.msra.mxu0 0
      %3704 = vmatprep.subr.bf16.mxu0 0
      %3705 = vmatpush1.bf16.msra.mxu0 0
      %3706 = vmatprep.subr.bf16.mxu0 0
      %3707 = vmatpush1.bf16.msra.mxu0 0
      %3708 = vmatprep.subr.bf16.mxu0 0
      %3709 = vmatpush1.bf16.msra.mxu0 0
      %3710 = vmatprep.mubr.bf16.mxu0 0
      %3711 = vmatmul.mubr.bf16.gmra.mrb[0].mxu0 %v3375
      %v3712 = vpop.f32.mrb[0].mxu0
      %v3713 = vadd.f32 %v3033, %v3712
      %v3714 = vpop.f32.mrb[0].mxu0
      %v3715 = vadd.f32 %v3037, %v3714
      %v3716 = vpop.f32.mrb[0].mxu0
      %v3717 = vadd.f32 %v3033, %v3716
      %v3718 = vpop.f32.mrb[0].mxu0
      %v3719 = vadd.f32 %v3037, %v3718
      %3720 = vdwg.mxu0
      %v3721 = vmax.f32 %v3412, 0.0
      %v3722 = vmax.f32 %v3414, 0.0
      %v3723 = vmax.f32 %v3455, 0.0
      %v3724 = vmax.f32 %v3457, 0.0
      %v3725 = vmax.f32 %v3498, 0.0
      %v3726 = vmax.f32 %v3500, 0.0
      %v3727 = vmax.f32 %v3541, 0.0
      %v3728 = vmax.f32 %v3543, 0.0
      %v3729 = vmax.f32 %v3584, 0.0
      %v3730 = vmax.f32 %v3586, 0.0
      %v3731 = vmax.f32 %v3627, 0.0
      %v3732 = vmax.f32 %v3629, 0.0
      %v3733 = vmax.f32 %v3670, 0.0
      %v3734 = vmax.f32 %v3672, 0.0
      %v3735 = vmax.f32 %v3713, 0.0
      %v3736 = vmax.f32 %v3715, 0.0
      %v3737 = vmax.f32 %v3416, 0.0
      %v3738 = vmax.f32 %v3418, 0.0
      %v3739 = vmax.f32 %v3459, 0.0
      %v3740 = vmax.f32 %v3461, 0.0
      %v3741 = vmax.f32 %v3502, 0.0
      %v3742 = vmax.f32 %v3504, 0.0
      %v3743 = vmax.f32 %v3545, 0.0
      %v3744 = vmax.f32 %v3547, 0.0
      %v3745 = vmax.f32 %v3588, 0.0
      %v3746 = vmax.f32 %v3590, 0.0
      %v3747 = vmax.f32 %v3631, 0.0
      %v3748 = vmax.f32 %v3633, 0.0
      %v3749 = vmax.f32 %v3674, 0.0
      %v3750 = vmax.f32 %v3676, 0.0
      %v3751 = vmax.f32 %v3717, 0.0
      %v3752 = vmax.f32 %v3719, 0.0
      %v3753 = vpack.c.bf16 %v3737, %v3721
      %v3754 = vpack.c.bf16 %v3738, %v3722
      %v3755 = vpack.c.bf16 %v3739, %v3723
      %v3756 = vpack.c.bf16 %v3740, %v3724
      %v3757 = vpack.c.bf16 %v3741, %v3725
      %v3758 = vpack.c.bf16 %v3742, %v3726
      %v3759 = vpack.c.bf16 %v3743, %v3727
      %v3760 = vpack.c.bf16 %v3744, %v3728
      %v3761 = vpack.c.bf16 %v3745, %v3729
      %v3762 = vpack.c.bf16 %v3746, %v3730
      %v3763 = vpack.c.bf16 %v3747, %v3731
      %v3764 = vpack.c.bf16 %v3748, %v3732
      %v3765 = vpack.c.bf16 %v3749, %v3733
      %v3766 = vpack.c.bf16 %v3750, %v3734
      %v3767 = vpack.c.bf16 %v3751, %v3735
      %v3768 = vpack.c.bf16 %v3752, %v3736
      %v3769 = vld [vmem:[%s747] sm:$0xf]
      %v3770 = vld [vmem:[%s747 + $0x4] sm:$0xf]
      %v3771 = vld [vmem:[%s747 + $0x8] sm:$0xf]
      %v3772 = vld [vmem:[%s747 + $0xc] sm:$0xf]
      %v3773 = vld [vmem:[%s747 + $0x10] sm:$0xf]
      %v3774 = vld [vmem:[%s747 + $0x14] sm:$0xf]
      %v3775 = vld [vmem:[%s747 + $0x18] sm:$0xf]
      %v3776 = vld [vmem:[%s747 + $0x1c] sm:$0xf]
      %v3777 = vld [vmem:[%s747 + $0x20] sm:$0xf]
      %v3778 = vld [vmem:[%s747 + $0x24] sm:$0xf]
      %v3779 = vld [vmem:[%s747 + $0x28] sm:$0xf]
      %v3780 = vld [vmem:[%s747 + $0x2c] sm:$0xf]
      %v3781 = vld [vmem:[%s747 + $0x30] sm:$0xf]
      %v3782 = vld [vmem:[%s747 + $0x34] sm:$0xf]
      %v3783 = vld [vmem:[%s747 + $0x38] sm:$0xf]
      %v3784 = vld [vmem:[%s747 + $0x3c] sm:$0xf]
      %v3785 = vld [vmem:[%s747 + $0x40] sm:$0xf]
      %v3786 = vld [vmem:[%s747 + $0x44] sm:$0xf]
      %v3787 = vld [vmem:[%s747 + $0x48] sm:$0xf]
      %v3788 = vld [vmem:[%s747 + $0x4c] sm:$0xf]
      %v3789 = vld [vmem:[%s747 + $0x50] sm:$0xf]
      %v3790 = vld [vmem:[%s747 + $0x54] sm:$0xf]
      %v3791 = vld [vmem:[%s747 + $0x58] sm:$0xf]
      %v3792 = vld [vmem:[%s747 + $0x5c] sm:$0xf]
      %v3793 = vld [vmem:[%s747 + $0x60] sm:$0xf]
      %v3794 = vld [vmem:[%s747 + $0x64] sm:$0xf]
      %v3795 = vld [vmem:[%s747 + $0x68] sm:$0xf]
      %v3796 = vld [vmem:[%s747 + $0x6c] sm:$0xf]
      %v3797 = vld [vmem:[%s747 + $0x70] sm:$0xf]
      %v3798 = vld [vmem:[%s747 + $0x74] sm:$0xf]
      %v3799 = vld [vmem:[%s747 + $0x78] sm:$0xf]
      %v3800 = vld [vmem:[%s747 + $0x7c] sm:$0xf]
      %v3801 = vld [vmem:[%s747 + $0x80] sm:$0xf]
      %v3802 = vld [vmem:[%s747 + $0x84] sm:$0xf]
      %v3803 = vld [vmem:[%s747 + $0x88] sm:$0xf]
      %v3804 = vld [vmem:[%s747 + $0x8c] sm:$0xf]
      %v3805 = vld [vmem:[%s747 + $0x90] sm:$0xf]
      %v3806 = vld [vmem:[%s747 + $0x94] sm:$0xf]
      %v3807 = vld [vmem:[%s747 + $0x98] sm:$0xf]
      %v3808 = vld [vmem:[%s747 + $0x9c] sm:$0xf]
      %v3809 = vld [vmem:[%s747 + $0xa0] sm:$0xf]
      %v3810 = vld [vmem:[%s747 + $0xa4] sm:$0xf]
      %v3811 = vld [vmem:[%s747 + $0xa8] sm:$0xf]
      %v3812 = vld [vmem:[%s747 + $0xac] sm:$0xf]
      %v3813 = vld [vmem:[%s747 + $0xb0] sm:$0xf]
      %v3814 = vld [vmem:[%s747 + $0xb4] sm:$0xf]
      %v3815 = vld [vmem:[%s747 + $0xb8] sm:$0xf]
      %v3816 = vld [vmem:[%s747 + $0xbc] sm:$0xf]
      %v3817 = vld [vmem:[%s747 + $0xc0] sm:$0xf]
      %v3818 = vld [vmem:[%s747 + $0xc4] sm:$0xf]
      %v3819 = vld [vmem:[%s747 + $0xc8] sm:$0xf]
      %v3820 = vld [vmem:[%s747 + $0xcc] sm:$0xf]
      %v3821 = vld [vmem:[%s747 + $0xd0] sm:$0xf]
      %v3822 = vld [vmem:[%s747 + $0xd4] sm:$0xf]
      %v3823 = vld [vmem:[%s747 + $0xd8] sm:$0xf]
      %v3824 = vld [vmem:[%s747 + $0xdc] sm:$0xf]
      %v3825 = vld [vmem:[%s747 + $0xe0] sm:$0xf]
      %v3826 = vld [vmem:[%s747 + $0xe4] sm:$0xf]
      %v3827 = vld [vmem:[%s747 + $0xe8] sm:$0xf]
      %v3828 = vld [vmem:[%s747 + $0xec] sm:$0xf]
      %v3829 = vld [vmem:[%s747 + $0xf0] sm:$0xf]
      %v3830 = vld [vmem:[%s747 + $0xf4] sm:$0xf]
      %v3831 = vld [vmem:[%s747 + $0xf8] sm:$0xf]
      %v3832 = vld [vmem:[%s747 + $0xfc] sm:$0xf]
      %v3833 = vld [vmem:[%s747 + $0x100] sm:$0xf]
      %v3834 = vld [vmem:[%s747 + $0x104] sm:$0xf]
      %v3835 = vld [vmem:[%s747 + $0x108] sm:$0xf]
      %v3836 = vld [vmem:[%s747 + $0x10c] sm:$0xf]
      %v3837 = vld [vmem:[%s747 + $0x110] sm:$0xf]
      %v3838 = vld [vmem:[%s747 + $0x114] sm:$0xf]
      %v3839 = vld [vmem:[%s747 + $0x118] sm:$0xf]
      %v3840 = vld [vmem:[%s747 + $0x11c] sm:$0xf]
      %v3841 = vld [vmem:[%s747 + $0x120] sm:$0xf]
      %v3842 = vld [vmem:[%s747 + $0x124] sm:$0xf]
      %v3843 = vld [vmem:[%s747 + $0x128] sm:$0xf]
      %v3844 = vld [vmem:[%s747 + $0x12c] sm:$0xf]
      %v3845 = vld [vmem:[%s747 + $0x130] sm:$0xf]
      %v3846 = vld [vmem:[%s747 + $0x134] sm:$0xf]
      %v3847 = vld [vmem:[%s747 + $0x138] sm:$0xf]
      %v3848 = vld [vmem:[%s747 + $0x13c] sm:$0xf]
      %v3849 = vld [vmem:[%s747 + $0x140] sm:$0xf]
      %v3850 = vld [vmem:[%s747 + $0x144] sm:$0xf]
      %v3851 = vld [vmem:[%s747 + $0x148] sm:$0xf]
      %v3852 = vld [vmem:[%s747 + $0x14c] sm:$0xf]
      %v3853 = vld [vmem:[%s747 + $0x150] sm:$0xf]
      %v3854 = vld [vmem:[%s747 + $0x154] sm:$0xf]
      %v3855 = vld [vmem:[%s747 + $0x158] sm:$0xf]
      %v3856 = vld [vmem:[%s747 + $0x15c] sm:$0xf]
      %v3857 = vld [vmem:[%s747 + $0x160] sm:$0xf]
      %v3858 = vld [vmem:[%s747 + $0x164] sm:$0xf]
      %v3859 = vld [vmem:[%s747 + $0x168] sm:$0xf]
      %v3860 = vld [vmem:[%s747 + $0x16c] sm:$0xf]
      %v3861 = vld [vmem:[%s747 + $0x170] sm:$0xf]
      %v3862 = vld [vmem:[%s747 + $0x174] sm:$0xf]
      %v3863 = vld [vmem:[%s747 + $0x178] sm:$0xf]
      %v3864 = vld [vmem:[%s747 + $0x17c] sm:$0xf]
      %v3865 = vld [vmem:[%s747 + $0x180] sm:$0xf]
      %v3866 = vld [vmem:[%s747 + $0x184] sm:$0xf]
      %v3867 = vld [vmem:[%s747 + $0x188] sm:$0xf]
      %v3868 = vld [vmem:[%s747 + $0x18c] sm:$0xf]
      %v3869 = vld [vmem:[%s747 + $0x190] sm:$0xf]
      %v3870 = vld [vmem:[%s747 + $0x194] sm:$0xf]
      %v3871 = vld [vmem:[%s747 + $0x198] sm:$0xf]
      %v3872 = vld [vmem:[%s747 + $0x19c] sm:$0xf]
      %v3873 = vld [vmem:[%s747 + $0x1a0] sm:$0xf]
      %v3874 = vld [vmem:[%s747 + $0x1a4] sm:$0xf]
      %v3875 = vld [vmem:[%s747 + $0x1a8] sm:$0xf]
      %v3876 = vld [vmem:[%s747 + $0x1ac] sm:$0xf]
      %v3877 = vld [vmem:[%s747 + $0x1b0] sm:$0xf]
      %v3878 = vld [vmem:[%s747 + $0x1b4] sm:$0xf]
      %v3879 = vld [vmem:[%s747 + $0x1b8] sm:$0xf]
      %v3880 = vld [vmem:[%s747 + $0x1bc] sm:$0xf]
      %v3881 = vld [vmem:[%s747 + $0x1c0] sm:$0xf]
      %v3882 = vld [vmem:[%s747 + $0x1c4] sm:$0xf]
      %v3883 = vld [vmem:[%s747 + $0x1c8] sm:$0xf]
      %v3884 = vld [vmem:[%s747 + $0x1cc] sm:$0xf]
      %v3885 = vld [vmem:[%s747 + $0x1d0] sm:$0xf]
      %v3886 = vld [vmem:[%s747 + $0x1d4] sm:$0xf]
      %v3887 = vld [vmem:[%s747 + $0x1d8] sm:$0xf]
      %v3888 = vld [vmem:[%s747 + $0x1dc] sm:$0xf]
      %v3889 = vld [vmem:[%s747 + $0x1e0] sm:$0xf]
      %v3890 = vld [vmem:[%s747 + $0x1e4] sm:$0xf]
      %v3891 = vld [vmem:[%s747 + $0x1e8] sm:$0xf]
      %v3892 = vld [vmem:[%s747 + $0x1ec] sm:$0xf]
      %v3893 = vld [vmem:[%s747 + $0x1f0] sm:$0xf]
      %v3894 = vld [vmem:[%s747 + $0x1f4] sm:$0xf]
      %v3895 = vld [vmem:[%s747 + $0x1f8] sm:$0xf]
      %v3896 = vld [vmem:[%s747 + $0x1fc] sm:$0xf]
      %v3897 = vld [vmem:[%s747 + $0x200] sm:$0xf]
      %v3898 = vld [vmem:[%s747 + $0x204] sm:$0xf]
      %v3899 = vld [vmem:[%s747 + $0x208] sm:$0xf]
      %v3900 = vld [vmem:[%s747 + $0x20c] sm:$0xf]
      %v3901 = vld [vmem:[%s747 + $0x210] sm:$0xf]
      %v3902 = vld [vmem:[%s747 + $0x214] sm:$0xf]
      %v3903 = vld [vmem:[%s747 + $0x218] sm:$0xf]
      %v3904 = vld [vmem:[%s747 + $0x21c] sm:$0xf]
      %v3905 = vld [vmem:[%s747 + $0x220] sm:$0xf]
      %v3906 = vld [vmem:[%s747 + $0x224] sm:$0xf]
      %v3907 = vld [vmem:[%s747 + $0x228] sm:$0xf]
      %v3908 = vld [vmem:[%s747 + $0x22c] sm:$0xf]
      %v3909 = vld [vmem:[%s747 + $0x230] sm:$0xf]
      %v3910 = vld [vmem:[%s747 + $0x234] sm:$0xf]
      %v3911 = vld [vmem:[%s747 + $0x238] sm:$0xf]
      %v3912 = vld [vmem:[%s747 + $0x23c] sm:$0xf]
      %v3913 = vld [vmem:[%s747 + $0x240] sm:$0xf]
      %v3914 = vld [vmem:[%s747 + $0x244] sm:$0xf]
      %v3915 = vld [vmem:[%s747 + $0x248] sm:$0xf]
      %v3916 = vld [vmem:[%s747 + $0x24c] sm:$0xf]
      %v3917 = vld [vmem:[%s747 + $0x250] sm:$0xf]
      %v3918 = vld [vmem:[%s747 + $0x254] sm:$0xf]
      %v3919 = vld [vmem:[%s747 + $0x258] sm:$0xf]
      %v3920 = vld [vmem:[%s747 + $0x25c] sm:$0xf]
      %v3921 = vld [vmem:[%s747 + $0x260] sm:$0xf]
      %v3922 = vld [vmem:[%s747 + $0x264] sm:$0xf]
      %v3923 = vld [vmem:[%s747 + $0x268] sm:$0xf]
      %v3924 = vld [vmem:[%s747 + $0x26c] sm:$0xf]
      %v3925 = vld [vmem:[%s747 + $0x270] sm:$0xf]
      %v3926 = vld [vmem:[%s747 + $0x274] sm:$0xf]
      %v3927 = vld [vmem:[%s747 + $0x278] sm:$0xf]
      %v3928 = vld [vmem:[%s747 + $0x27c] sm:$0xf]
      %v3929 = vld [vmem:[%s747 + $0x280] sm:$0xf]
      %v3930 = vld [vmem:[%s747 + $0x284] sm:$0xf]
      %v3931 = vld [vmem:[%s747 + $0x288] sm:$0xf]
      %v3932 = vld [vmem:[%s747 + $0x28c] sm:$0xf]
      %v3933 = vld [vmem:[%s747 + $0x290] sm:$0xf]
      %v3934 = vld [vmem:[%s747 + $0x294] sm:$0xf]
      %v3935 = vld [vmem:[%s747 + $0x298] sm:$0xf]
      %v3936 = vld [vmem:[%s747 + $0x29c] sm:$0xf]
      %v3937 = vld [vmem:[%s747 + $0x2a0] sm:$0xf]
      %v3938 = vld [vmem:[%s747 + $0x2a4] sm:$0xf]
      %v3939 = vld [vmem:[%s747 + $0x2a8] sm:$0xf]
      %v3940 = vld [vmem:[%s747 + $0x2ac] sm:$0xf]
      %v3941 = vld [vmem:[%s747 + $0x2b0] sm:$0xf]
      %v3942 = vld [vmem:[%s747 + $0x2b4] sm:$0xf]
      %v3943 = vld [vmem:[%s747 + $0x2b8] sm:$0xf]
      %v3944 = vld [vmem:[%s747 + $0x2bc] sm:$0xf]
      %v3945 = vld [vmem:[%s747 + $0x2c0] sm:$0xf]
      %v3946 = vld [vmem:[%s747 + $0x2c4] sm:$0xf]
      %v3947 = vld [vmem:[%s747 + $0x2c8] sm:$0xf]
      %v3948 = vld [vmem:[%s747 + $0x2cc] sm:$0xf]
      %v3949 = vld [vmem:[%s747 + $0x2d0] sm:$0xf]
      %v3950 = vld [vmem:[%s747 + $0x2d4] sm:$0xf]
      %v3951 = vld [vmem:[%s747 + $0x2d8] sm:$0xf]
      %v3952 = vld [vmem:[%s747 + $0x2dc] sm:$0xf]
      %v3953 = vld [vmem:[%s747 + $0x2e0] sm:$0xf]
      %v3954 = vld [vmem:[%s747 + $0x2e4] sm:$0xf]
      %v3955 = vld [vmem:[%s747 + $0x2e8] sm:$0xf]
      %v3956 = vld [vmem:[%s747 + $0x2ec] sm:$0xf]
      %v3957 = vld [vmem:[%s747 + $0x2f0] sm:$0xf]
      %v3958 = vld [vmem:[%s747 + $0x2f4] sm:$0xf]
      %v3959 = vld [vmem:[%s747 + $0x2f8] sm:$0xf]
      %v3960 = vld [vmem:[%s747 + $0x2fc] sm:$0xf]
      %v3961 = vld [vmem:[%s747 + $0x300] sm:$0xf]
      %v3962 = vld [vmem:[%s747 + $0x304] sm:$0xf]
      %v3963 = vld [vmem:[%s747 + $0x308] sm:$0xf]
      %v3964 = vld [vmem:[%s747 + $0x30c] sm:$0xf]
      %v3965 = vld [vmem:[%s747 + $0x310] sm:$0xf]
      %v3966 = vld [vmem:[%s747 + $0x314] sm:$0xf]
      %v3967 = vld [vmem:[%s747 + $0x318] sm:$0xf]
      %v3968 = vld [vmem:[%s747 + $0x31c] sm:$0xf]
      %v3969 = vld [vmem:[%s747 + $0x320] sm:$0xf]
      %v3970 = vld [vmem:[%s747 + $0x324] sm:$0xf]
      %v3971 = vld [vmem:[%s747 + $0x328] sm:$0xf]
      %v3972 = vld [vmem:[%s747 + $0x32c] sm:$0xf]
      %v3973 = vld [vmem:[%s747 + $0x330] sm:$0xf]
      %v3974 = vld [vmem:[%s747 + $0x334] sm:$0xf]
      %v3975 = vld [vmem:[%s747 + $0x338] sm:$0xf]
      %v3976 = vld [vmem:[%s747 + $0x33c] sm:$0xf]
      %v3977 = vld [vmem:[%s747 + $0x340] sm:$0xf]
      %v3978 = vld [vmem:[%s747 + $0x344] sm:$0xf]
      %v3979 = vld [vmem:[%s747 + $0x348] sm:$0xf]
      %v3980 = vld [vmem:[%s747 + $0x34c] sm:$0xf]
      %v3981 = vld [vmem:[%s747 + $0x350] sm:$0xf]
      %v3982 = vld [vmem:[%s747 + $0x354] sm:$0xf]
      %v3983 = vld [vmem:[%s747 + $0x358] sm:$0xf]
      %v3984 = vld [vmem:[%s747 + $0x35c] sm:$0xf]
      %v3985 = vld [vmem:[%s747 + $0x360] sm:$0xf]
      %v3986 = vld [vmem:[%s747 + $0x364] sm:$0xf]
      %v3987 = vld [vmem:[%s747 + $0x368] sm:$0xf]
      %v3988 = vld [vmem:[%s747 + $0x36c] sm:$0xf]
      %v3989 = vld [vmem:[%s747 + $0x370] sm:$0xf]
      %v3990 = vld [vmem:[%s747 + $0x374] sm:$0xf]
      %v3991 = vld [vmem:[%s747 + $0x378] sm:$0xf]
      %v3992 = vld [vmem:[%s747 + $0x37c] sm:$0xf]
      %v3993 = vld [vmem:[%s747 + $0x380] sm:$0xf]
      %v3994 = vld [vmem:[%s747 + $0x384] sm:$0xf]
      %v3995 = vld [vmem:[%s747 + $0x388] sm:$0xf]
      %v3996 = vld [vmem:[%s747 + $0x38c] sm:$0xf]
      %v3997 = vld [vmem:[%s747 + $0x390] sm:$0xf]
      %v3998 = vld [vmem:[%s747 + $0x394] sm:$0xf]
      %v3999 = vld [vmem:[%s747 + $0x398] sm:$0xf]
      %v4000 = vld [vmem:[%s747 + $0x39c] sm:$0xf]
      %v4001 = vld [vmem:[%s747 + $0x3a0] sm:$0xf]
      %v4002 = vld [vmem:[%s747 + $0x3a4] sm:$0xf]
      %v4003 = vld [vmem:[%s747 + $0x3a8] sm:$0xf]
      %v4004 = vld [vmem:[%s747 + $0x3ac] sm:$0xf]
      %v4005 = vld [vmem:[%s747 + $0x3b0] sm:$0xf]
      %v4006 = vld [vmem:[%s747 + $0x3b4] sm:$0xf]
      %v4007 = vld [vmem:[%s747 + $0x3b8] sm:$0xf]
      %v4008 = vld [vmem:[%s747 + $0x3bc] sm:$0xf]
      %v4009 = vld [vmem:[%s747 + $0x3c0] sm:$0xf]
      %v4010 = vld [vmem:[%s747 + $0x3c4] sm:$0xf]
      %v4011 = vld [vmem:[%s747 + $0x3c8] sm:$0xf]
      %v4012 = vld [vmem:[%s747 + $0x3cc] sm:$0xf]
      %v4013 = vld [vmem:[%s747 + $0x3d0] sm:$0xf]
      %v4014 = vld [vmem:[%s747 + $0x3d4] sm:$0xf]
      %v4015 = vld [vmem:[%s747 + $0x3d8] sm:$0xf]
      %v4016 = vld [vmem:[%s747 + $0x3dc] sm:$0xf]
      %v4017 = vld [vmem:[%s747 + $0x3e0] sm:$0xf]
      %v4018 = vld [vmem:[%s747 + $0x3e4] sm:$0xf]
      %v4019 = vld [vmem:[%s747 + $0x3e8] sm:$0xf]
      %v4020 = vld [vmem:[%s747 + $0x3ec] sm:$0xf]
      %v4021 = vld [vmem:[%s747 + $0x3f0] sm:$0xf]
      %v4022 = vld [vmem:[%s747 + $0x3f4] sm:$0xf]
      %v4023 = vld [vmem:[%s747 + $0x3f8] sm:$0xf]
      %v4024 = vld [vmem:[%s747 + $0x3fc] sm:$0xf]
      %v4025 = vld [vmem:[%s750] sm:$0x1]
      %v4027 = vlaneseq
      %v4028 = vshrl.u32 %v4027, 7
      %v4029 = vsub.s32 0, %v4028
      %v4030 = vrot.slane %v4025, %v4029
      %v4288 = vunpack.c.l.b16 %v3769
      %v4289 = vunpack.c.l.b16 %v3770
      %v4290 = vunpack.c.l.b16 %v3771
      %v4291 = vunpack.c.l.b16 %v3772
      %v4292 = vunpack.c.l.b16 %v3773
      %v4293 = vunpack.c.l.b16 %v3774
      %v4294 = vunpack.c.l.b16 %v3775
      %v4295 = vunpack.c.l.b16 %v3776
      %v4296 = vunpack.c.l.b16 %v3777
      %v4297 = vunpack.c.l.b16 %v3778
      %v4298 = vunpack.c.l.b16 %v3779
      %v4299 = vunpack.c.l.b16 %v3780
      %v4300 = vunpack.c.l.b16 %v3781
      %v4301 = vunpack.c.l.b16 %v3782
      %v4302 = vunpack.c.l.b16 %v3783
      %v4303 = vunpack.c.l.b16 %v3784
      %v4304 = vunpack.c.l.b16 %v3785
      %v4305 = vunpack.c.l.b16 %v3786
      %v4306 = vunpack.c.l.b16 %v3787
      %v4307 = vunpack.c.l.b16 %v3788
      %v4308 = vunpack.c.l.b16 %v3789
      %v4309 = vunpack.c.l.b16 %v3790
      %v4310 = vunpack.c.l.b16 %v3791
      %v4311 = vunpack.c.l.b16 %v3792
      %v4312 = vunpack.c.l.b16 %v3793
      %v4313 = vunpack.c.l.b16 %v3794
      %v4314 = vunpack.c.l.b16 %v3795
      %v4315 = vunpack.c.l.b16 %v3796
      %v4316 = vunpack.c.l.b16 %v3797
      %v4317 = vunpack.c.l.b16 %v3798
      %v4318 = vunpack.c.l.b16 %v3799
      %v4319 = vunpack.c.l.b16 %v3800
      %v4320 = vunpack.c.l.b16 %v3801
      %v4321 = vunpack.c.l.b16 %v3802
      %v4322 = vunpack.c.l.b16 %v3803
      %v4323 = vunpack.c.l.b16 %v3804
      %v4324 = vunpack.c.l.b16 %v3805
      %v4325 = vunpack.c.l.b16 %v3806
      %v4326 = vunpack.c.l.b16 %v3807
      %v4327 = vunpack.c.l.b16 %v3808
      %v4328 = vunpack.c.l.b16 %v3809
      %v4329 = vunpack.c.l.b16 %v3810
      %v4330 = vunpack.c.l.b16 %v3811
      %v4331 = vunpack.c.l.b16 %v3812
      %v4332 = vunpack.c.l.b16 %v3813
      %v4333 = vunpack.c.l.b16 %v3814
      %v4334 = vunpack.c.l.b16 %v3815
      %v4335 = vunpack.c.l.b16 %v3816
      %v4336 = vunpack.c.l.b16 %v3817
      %v4337 = vunpack.c.l.b16 %v3818
      %v4338 = vunpack.c.l.b16 %v3819
      %v4339 = vunpack.c.l.b16 %v3820
      %v4340 = vunpack.c.l.b16 %v3821
      %v4341 = vunpack.c.l.b16 %v3822
      %v4342 = vunpack.c.l.b16 %v3823
      %v4343 = vunpack.c.l.b16 %v3824
      %v4344 = vunpack.c.l.b16 %v3825
      %v4345 = vunpack.c.l.b16 %v3826
      %v4346 = vunpack.c.l.b16 %v3827
      %v4347 = vunpack.c.l.b16 %v3828
      %v4348 = vunpack.c.l.b16 %v3829
      %v4349 = vunpack.c.l.b16 %v3830
      %v4350 = vunpack.c.l.b16 %v3831
      %v4351 = vunpack.c.l.b16 %v3832
      %v4352 = vunpack.c.l.b16 %v3833
      %v4353 = vunpack.c.l.b16 %v3834
      %v4354 = vunpack.c.l.b16 %v3835
      %v4355 = vunpack.c.l.b16 %v3836
      %v4356 = vunpack.c.l.b16 %v3837
      %v4357 = vunpack.c.l.b16 %v3838
      %v4358 = vunpack.c.l.b16 %v3839
      %v4359 = vunpack.c.l.b16 %v3840
      %v4360 = vunpack.c.l.b16 %v3841
      %v4361 = vunpack.c.l.b16 %v3842
      %v4362 = vunpack.c.l.b16 %v3843
      %v4363 = vunpack.c.l.b16 %v3844
      %v4364 = vunpack.c.l.b16 %v3845
      %v4365 = vunpack.c.l.b16 %v3846
      %v4366 = vunpack.c.l.b16 %v3847
      %v4367 = vunpack.c.l.b16 %v3848
      %v4368 = vunpack.c.l.b16 %v3849
      %v4369 = vunpack.c.l.b16 %v3850
      %v4370 = vunpack.c.l.b16 %v3851
      %v4371 = vunpack.c.l.b16 %v3852
      %v4372 = vunpack.c.l.b16 %v3853
      %v4373 = vunpack.c.l.b16 %v3854
      %v4374 = vunpack.c.l.b16 %v3855
      %v4375 = vunpack.c.l.b16 %v3856
      %v4376 = vunpack.c.l.b16 %v3857
      %v4377 = vunpack.c.l.b16 %v3858
      %v4378 = vunpack.c.l.b16 %v3859
      %v4379 = vunpack.c.l.b16 %v3860
      %v4380 = vunpack.c.l.b16 %v3861
      %v4381 = vunpack.c.l.b16 %v3862
      %v4382 = vunpack.c.l.b16 %v3863
      %v4383 = vunpack.c.l.b16 %v3864
      %v4384 = vunpack.c.l.b16 %v3865
      %v4385 = vunpack.c.l.b16 %v3866
      %v4386 = vunpack.c.l.b16 %v3867
      %v4387 = vunpack.c.l.b16 %v3868
      %v4388 = vunpack.c.l.b16 %v3869
      %v4389 = vunpack.c.l.b16 %v3870
      %v4390 = vunpack.c.l.b16 %v3871
      %v4391 = vunpack.c.l.b16 %v3872
      %v4392 = vunpack.c.l.b16 %v3873
      %v4393 = vunpack.c.l.b16 %v3874
      %v4394 = vunpack.c.l.b16 %v3875
      %v4395 = vunpack.c.l.b16 %v3876
      %v4396 = vunpack.c.l.b16 %v3877
      %v4397 = vunpack.c.l.b16 %v3878
      %v4398 = vunpack.c.l.b16 %v3879
      %v4399 = vunpack.c.l.b16 %v3880
      %v4400 = vunpack.c.l.b16 %v3881
      %v4401 = vunpack.c.l.b16 %v3882
      %v4402 = vunpack.c.l.b16 %v3883
      %v4403 = vunpack.c.l.b16 %v3884
      %v4404 = vunpack.c.l.b16 %v3885
      %v4405 = vunpack.c.l.b16 %v3886
      %v4406 = vunpack.c.l.b16 %v3887
      %v4407 = vunpack.c.l.b16 %v3888
      %v4408 = vunpack.c.l.b16 %v3889
      %v4409 = vunpack.c.l.b16 %v3890
      %v4410 = vunpack.c.l.b16 %v3891
      %v4411 = vunpack.c.l.b16 %v3892
      %v4412 = vunpack.c.l.b16 %v3893
      %v4413 = vunpack.c.l.b16 %v3894
      %v4414 = vunpack.c.l.b16 %v3895
      %v4415 = vunpack.c.l.b16 %v3896
      %v4416 = vunpack.c.l.b16 %v3897
      %v4417 = vunpack.c.l.b16 %v3898
      %v4418 = vunpack.c.l.b16 %v3899
      %v4419 = vunpack.c.l.b16 %v3900
      %v4420 = vunpack.c.l.b16 %v3901
      %v4421 = vunpack.c.l.b16 %v3902
      %v4422 = vunpack.c.l.b16 %v3903
      %v4423 = vunpack.c.l.b16 %v3904
      %v4424 = vunpack.c.l.b16 %v3905
      %v4425 = vunpack.c.l.b16 %v3906
      %v4426 = vunpack.c.l.b16 %v3907
      %v4427 = vunpack.c.l.b16 %v3908
      %v4428 = vunpack.c.l.b16 %v3909
      %v4429 = vunpack.c.l.b16 %v3910
      %v4430 = vunpack.c.l.b16 %v3911
      %v4431 = vunpack.c.l.b16 %v3912
      %v4432 = vunpack.c.l.b16 %v3913
      %v4433 = vunpack.c.l.b16 %v3914
      %v4434 = vunpack.c.l.b16 %v3915
      %v4435 = vunpack.c.l.b16 %v3916
      %v4436 = vunpack.c.l.b16 %v3917
      %v4437 = vunpack.c.l.b16 %v3918
      %v4438 = vunpack.c.l.b16 %v3919
      %v4439 = vunpack.c.l.b16 %v3920
      %v4440 = vunpack.c.l.b16 %v3921
      %v4441 = vunpack.c.l.b16 %v3922
      %v4442 = vunpack.c.l.b16 %v3923
      %v4443 = vunpack.c.l.b16 %v3924
      %v4444 = vunpack.c.l.b16 %v3925
      %v4445 = vunpack.c.l.b16 %v3926
      %v4446 = vunpack.c.l.b16 %v3927
      %v4447 = vunpack.c.l.b16 %v3928
      %v4448 = vunpack.c.l.b16 %v3929
      %v4449 = vunpack.c.l.b16 %v3930
      %v4450 = vunpack.c.l.b16 %v3931
      %v4451 = vunpack.c.l.b16 %v3932
      %v4452 = vunpack.c.l.b16 %v3933
      %v4453 = vunpack.c.l.b16 %v3934
      %v4454 = vunpack.c.l.b16 %v3935
      %v4455 = vunpack.c.l.b16 %v3936
      %v4456 = vunpack.c.l.b16 %v3937
      %v4457 = vunpack.c.l.b16 %v3938
      %v4458 = vunpack.c.l.b16 %v3939
      %v4459 = vunpack.c.l.b16 %v3940
      %v4460 = vunpack.c.l.b16 %v3941
      %v4461 = vunpack.c.l.b16 %v3942
      %v4462 = vunpack.c.l.b16 %v3943
      %v4463 = vunpack.c.l.b16 %v3944
      %v4464 = vunpack.c.l.b16 %v3945
      %v4465 = vunpack.c.l.b16 %v3946
      %v4466 = vunpack.c.l.b16 %v3947
      %v4467 = vunpack.c.l.b16 %v3948
      %v4468 = vunpack.c.l.b16 %v3949
      %v4469 = vunpack.c.l.b16 %v3950
      %v4470 = vunpack.c.l.b16 %v3951
      %v4471 = vunpack.c.l.b16 %v3952
      %v4472 = vunpack.c.l.b16 %v3953
      %v4473 = vunpack.c.l.b16 %v3954
      %v4474 = vunpack.c.l.b16 %v3955
      %v4475 = vunpack.c.l.b16 %v3956
      %v4476 = vunpack.c.l.b16 %v3957
      %v4477 = vunpack.c.l.b16 %v3958
      %v4478 = vunpack.c.l.b16 %v3959
      %v4479 = vunpack.c.l.b16 %v3960
      %v4480 = vunpack.c.l.b16 %v3961
      %v4481 = vunpack.c.l.b16 %v3962
      %v4482 = vunpack.c.l.b16 %v3963
      %v4483 = vunpack.c.l.b16 %v3964
      %v4484 = vunpack.c.l.b16 %v3965
      %v4485 = vunpack.c.l.b16 %v3966
      %v4486 = vunpack.c.l.b16 %v3967
      %v4487 = vunpack.c.l.b16 %v3968
      %v4488 = vunpack.c.l.b16 %v3969
      %v4489 = vunpack.c.l.b16 %v3970
      %v4490 = vunpack.c.l.b16 %v3971
      %v4491 = vunpack.c.l.b16 %v3972
      %v4492 = vunpack.c.l.b16 %v3973
      %v4493 = vunpack.c.l.b16 %v3974
      %v4494 = vunpack.c.l.b16 %v3975
      %v4495 = vunpack.c.l.b16 %v3976
      %v4496 = vunpack.c.l.b16 %v3977
      %v4497 = vunpack.c.l.b16 %v3978
      %v4498 = vunpack.c.l.b16 %v3979
      %v4499 = vunpack.c.l.b16 %v3980
      %v4500 = vunpack.c.l.b16 %v3981
      %v4501 = vunpack.c.l.b16 %v3982
      %v4502 = vunpack.c.l.b16 %v3983
      %v4503 = vunpack.c.l.b16 %v3984
      %v4504 = vunpack.c.l.b16 %v3985
      %v4505 = vunpack.c.l.b16 %v3986
      %v4506 = vunpack.c.l.b16 %v3987
      %v4507 = vunpack.c.l.b16 %v3988
      %v4508 = vunpack.c.l.b16 %v3989
      %v4509 = vunpack.c.l.b16 %v3990
      %v4510 = vunpack.c.l.b16 %v3991
      %v4511 = vunpack.c.l.b16 %v3992
      %v4512 = vunpack.c.l.b16 %v3993
      %v4513 = vunpack.c.l.b16 %v3994
      %v4514 = vunpack.c.l.b16 %v3995
      %v4515 = vunpack.c.l.b16 %v3996
      %v4516 = vunpack.c.l.b16 %v3997
      %v4517 = vunpack.c.l.b16 %v3998
      %v4518 = vunpack.c.l.b16 %v3999
      %v4519 = vunpack.c.l.b16 %v4000
      %v4520 = vunpack.c.l.b16 %v4001
      %v4521 = vunpack.c.l.b16 %v4002
      %v4522 = vunpack.c.l.b16 %v4003
      %v4523 = vunpack.c.l.b16 %v4004
      %v4524 = vunpack.c.l.b16 %v4005
      %v4525 = vunpack.c.l.b16 %v4006
      %v4526 = vunpack.c.l.b16 %v4007
      %v4527 = vunpack.c.l.b16 %v4008
      %v4528 = vunpack.c.l.b16 %v4009
      %v4529 = vunpack.c.l.b16 %v4010
      %v4530 = vunpack.c.l.b16 %v4011
      %v4531 = vunpack.c.l.b16 %v4012
      %v4532 = vunpack.c.l.b16 %v4013
      %v4533 = vunpack.c.l.b16 %v4014
      %v4534 = vunpack.c.l.b16 %v4015
      %v4535 = vunpack.c.l.b16 %v4016
      %v4536 = vunpack.c.l.b16 %v4017
      %v4537 = vunpack.c.l.b16 %v4018
      %v4538 = vunpack.c.l.b16 %v4019
      %v4539 = vunpack.c.l.b16 %v4020
      %v4540 = vunpack.c.l.b16 %v4021
      %v4541 = vunpack.c.l.b16 %v4022
      %v4542 = vunpack.c.l.b16 %v4023
      %v4543 = vunpack.c.l.b16 %v4024
      %v4544 = vpack.c.b16 %v4289, %v4288
      %v4545 = vpack.c.b16 %v4291, %v4290
      %v4546 = vpack.c.b16 %v4293, %v4292
      %v4547 = vpack.c.b16 %v4295, %v4294
      %v4548 = vpack.c.b16 %v4297, %v4296
      %v4549 = vpack.c.b16 %v4299, %v4298
      %v4550 = vpack.c.b16 %v4301, %v4300
      %v4551 = vpack.c.b16 %v4303, %v4302
      %v4552 = vpack.c.b16 %v4305, %v4304
      %v4553 = vpack.c.b16 %v4307, %v4306
      %v4554 = vpack.c.b16 %v4309, %v4308
      %v4555 = vpack.c.b16 %v4311, %v4310
      %v4556 = vpack.c.b16 %v4313, %v4312
      %v4557 = vpack.c.b16 %v4315, %v4314
      %v4558 = vpack.c.b16 %v4317, %v4316
      %v4559 = vpack.c.b16 %v4319, %v4318
      %v4560 = vpack.c.b16 %v4321, %v4320
      %v4561 = vpack.c.b16 %v4323, %v4322
      %v4562 = vpack.c.b16 %v4325, %v4324
      %v4563 = vpack.c.b16 %v4327, %v4326
      %v4564 = vpack.c.b16 %v4329, %v4328
      %v4565 = vpack.c.b16 %v4331, %v4330
      %v4566 = vpack.c.b16 %v4333, %v4332
      %v4567 = vpack.c.b16 %v4335, %v4334
      %v4568 = vpack.c.b16 %v4337, %v4336
      %v4569 = vpack.c.b16 %v4339, %v4338
      %v4570 = vpack.c.b16 %v4341, %v4340
      %v4571 = vpack.c.b16 %v4343, %v4342
      %v4572 = vpack.c.b16 %v4345, %v4344
      %v4573 = vpack.c.b16 %v4347, %v4346
      %v4574 = vpack.c.b16 %v4349, %v4348
      %v4575 = vpack.c.b16 %v4351, %v4350
      %v4576 = vpack.c.b16 %v4353, %v4352
      %v4577 = vpack.c.b16 %v4355, %v4354
      %v4578 = vpack.c.b16 %v4357, %v4356
      %v4579 = vpack.c.b16 %v4359, %v4358
      %v4580 = vpack.c.b16 %v4361, %v4360
      %v4581 = vpack.c.b16 %v4363, %v4362
      %v4582 = vpack.c.b16 %v4365, %v4364
      %v4583 = vpack.c.b16 %v4367, %v4366
      %v4584 = vpack.c.b16 %v4369, %v4368
      %v4585 = vpack.c.b16 %v4371, %v4370
      %v4586 = vpack.c.b16 %v4373, %v4372
      %v4587 = vpack.c.b16 %v4375, %v4374
      %v4588 = vpack.c.b16 %v4377, %v4376
      %v4589 = vpack.c.b16 %v4379, %v4378
      %v4590 = vpack.c.b16 %v4381, %v4380
      %v4591 = vpack.c.b16 %v4383, %v4382
      %v4592 = vpack.c.b16 %v4385, %v4384
      %v4593 = vpack.c.b16 %v4387, %v4386
      %v4594 = vpack.c.b16 %v4389, %v4388
      %v4595 = vpack.c.b16 %v4391, %v4390
      %v4596 = vpack.c.b16 %v4393, %v4392
      %v4597 = vpack.c.b16 %v4395, %v4394
      %v4598 = vpack.c.b16 %v4397, %v4396
      %v4599 = vpack.c.b16 %v4399, %v4398
      %v4600 = vpack.c.b16 %v4401, %v4400
      %v4601 = vpack.c.b16 %v4403, %v4402
      %v4602 = vpack.c.b16 %v4405, %v4404
      %v4603 = vpack.c.b16 %v4407, %v4406
      %v4604 = vpack.c.b16 %v4409, %v4408
      %v4605 = vpack.c.b16 %v4411, %v4410
      %v4606 = vpack.c.b16 %v4413, %v4412
      %v4607 = vpack.c.b16 %v4415, %v4414
      %v4608 = vpack.c.b16 %v4417, %v4416
      %v4609 = vpack.c.b16 %v4419, %v4418
      %v4610 = vpack.c.b16 %v4421, %v4420
      %v4611 = vpack.c.b16 %v4423, %v4422
      %v4612 = vpack.c.b16 %v4425, %v4424
      %v4613 = vpack.c.b16 %v4427, %v4426
      %v4614 = vpack.c.b16 %v4429, %v4428
      %v4615 = vpack.c.b16 %v4431, %v4430
      %v4616 = vpack.c.b16 %v4433, %v4432
      %v4617 = vpack.c.b16 %v4435, %v4434
      %v4618 = vpack.c.b16 %v4437, %v4436
      %v4619 = vpack.c.b16 %v4439, %v4438
      %v4620 = vpack.c.b16 %v4441, %v4440
      %v4621 = vpack.c.b16 %v4443, %v4442
      %v4622 = vpack.c.b16 %v4445, %v4444
      %v4623 = vpack.c.b16 %v4447, %v4446
      %v4624 = vpack.c.b16 %v4449, %v4448
      %v4625 = vpack.c.b16 %v4451, %v4450
      %v4626 = vpack.c.b16 %v4453, %v4452
      %v4627 = vpack.c.b16 %v4455, %v4454
      %v4628 = vpack.c.b16 %v4457, %v4456
      %v4629 = vpack.c.b16 %v4459, %v4458
      %v4630 = vpack.c.b16 %v4461, %v4460
      %v4631 = vpack.c.b16 %v4463, %v4462
      %v4632 = vpack.c.b16 %v4465, %v4464
      %v4633 = vpack.c.b16 %v4467, %v4466
      %v4634 = vpack.c.b16 %v4469, %v4468
      %v4635 = vpack.c.b16 %v4471, %v4470
      %v4636 = vpack.c.b16 %v4473, %v4472
      %v4637 = vpack.c.b16 %v4475, %v4474
      %v4638 = vpack.c.b16 %v4477, %v4476
      %v4639 = vpack.c.b16 %v4479, %v4478
      %v4640 = vpack.c.b16 %v4481, %v4480
      %v4641 = vpack.c.b16 %v4483, %v4482
      %v4642 = vpack.c.b16 %v4485, %v4484
      %v4643 = vpack.c.b16 %v4487, %v4486
      %v4644 = vpack.c.b16 %v4489, %v4488
      %v4645 = vpack.c.b16 %v4491, %v4490
      %v4646 = vpack.c.b16 %v4493, %v4492
      %v4647 = vpack.c.b16 %v4495, %v4494
      %v4648 = vpack.c.b16 %v4497, %v4496
      %v4649 = vpack.c.b16 %v4499, %v4498
      %v4650 = vpack.c.b16 %v4501, %v4500
      %v4651 = vpack.c.b16 %v4503, %v4502
      %v4652 = vpack.c.b16 %v4505, %v4504
      %v4653 = vpack.c.b16 %v4507, %v4506
      %v4654 = vpack.c.b16 %v4509, %v4508
      %v4655 = vpack.c.b16 %v4511, %v4510
      %v4656 = vpack.c.b16 %v4513, %v4512
      %v4657 = vpack.c.b16 %v4515, %v4514
      %v4658 = vpack.c.b16 %v4517, %v4516
      %v4659 = vpack.c.b16 %v4519, %v4518
      %v4660 = vpack.c.b16 %v4521, %v4520
      %v4661 = vpack.c.b16 %v4523, %v4522
      %v4662 = vpack.c.b16 %v4525, %v4524
      %v4663 = vpack.c.b16 %v4527, %v4526
      %v4664 = vpack.c.b16 %v4529, %v4528
      %v4665 = vpack.c.b16 %v4531, %v4530
      %v4666 = vpack.c.b16 %v4533, %v4532
      %v4667 = vpack.c.b16 %v4535, %v4534
      %v4668 = vpack.c.b16 %v4537, %v4536
      %v4669 = vpack.c.b16 %v4539, %v4538
      %v4670 = vpack.c.b16 %v4541, %v4540
      %v4671 = vpack.c.b16 %v4543, %v4542
      %4800 = vmatprep.subr.bf16.mxu0 0
      %4801 = vmatpush1.bf16.msra.mxu0 %v4544
      %4802 = vmatprep.subr.bf16.mxu0 0
      %4803 = vmatpush1.bf16.msra.mxu0 %v4545
      %4804 = vmatprep.subr.bf16.mxu0 0
      %4805 = vmatpush1.bf16.msra.mxu0 %v4546
      %4806 = vmatprep.subr.bf16.mxu0 0
      %4807 = vmatpush1.bf16.msra.mxu0 %v4547
      %4808 = vmatprep.subr.bf16.mxu0 0
      %4809 = vmatpush1.bf16.msra.mxu0 %v4548
      %4810 = vmatprep.subr.bf16.mxu0 0
      %4811 = vmatpush1.bf16.msra.mxu0 %v4549
      %4812 = vmatprep.subr.bf16.mxu0 0
      %4813 = vmatpush1.bf16.msra.mxu0 %v4550
      %4814 = vmatprep.subr.bf16.mxu0 0
      %4815 = vmatpush1.bf16.msra.mxu0 %v4551
      %4816 = vmatprep.subr.bf16.mxu0 0
      %4817 = vmatpush1.bf16.msra.mxu0 %v4552
      %4818 = vmatprep.subr.bf16.mxu0 0
      %4819 = vmatpush1.bf16.msra.mxu0 %v4553
      %4820 = vmatprep.subr.bf16.mxu0 0
      %4821 = vmatpush1.bf16.msra.mxu0 %v4554
      %4822 = vmatprep.subr.bf16.mxu0 0
      %4823 = vmatpush1.bf16.msra.mxu0 %v4555
      %4824 = vmatprep.subr.bf16.mxu0 0
      %4825 = vmatpush1.bf16.msra.mxu0 %v4556
      %4826 = vmatprep.subr.bf16.mxu0 0
      %4827 = vmatpush1.bf16.msra.mxu0 %v4557
      %4828 = vmatprep.subr.bf16.mxu0 0
      %4829 = vmatpush1.bf16.msra.mxu0 %v4558
      %4830 = vmatprep.subr.bf16.mxu0 0
      %4831 = vmatpush1.bf16.msra.mxu0 %v4559
      %4832 = vmatprep.mubr.bf16.mxu0 %v3754
      %4833 = vmatmul.mubr.bf16.gmra.mrb[0].mxu0 %v3753
      %v4834 = vpop.f32.mrb[0].mxu0
      %v4835 = vadd.f32 %v4030, %v4834
      %v4836 = vpop.f32.mrb[0].mxu0
      %v4837 = vpop.f32.mrb[0].mxu0
      %v4838 = vadd.f32 %v4030, %v4837
      %v4839 = vpop.f32.mrb[0].mxu0
      %4840 = vdwg.mxu0
      %4841 = vmatprep.subr.bf16.mxu0 0
      %4842 = vmatpush1.bf16.msra.mxu0 %v4560
      %4843 = vmatprep.subr.bf16.mxu0 0
      %4844 = vmatpush1.bf16.msra.mxu0 %v4561
      %4845 = vmatprep.subr.bf16.mxu0 0
      %4846 = vmatpush1.bf16.msra.mxu0 %v4562
      %4847 = vmatprep.subr.bf16.mxu0 0
      %4848 = vmatpush1.bf16.msra.mxu0 %v4563
      %4849 = vmatprep.subr.bf16.mxu0 0
      %4850 = vmatpush1.bf16.msra.mxu0 %v4564
      %4851 = vmatprep.subr.bf16.mxu0 0
      %4852 = vmatpush1.bf16.msra.mxu0 %v4565
      %4853 = vmatprep.subr.bf16.mxu0 0
      %4854 = vmatpush1.bf16.msra.mxu0 %v4566
      %4855 = vmatprep.subr.bf16.mxu0 0
      %4856 = vmatpush1.bf16.msra.mxu0 %v4567
      %4857 = vmatprep.subr.bf16.mxu0 0
      %4858 = vmatpush1.bf16.msra.mxu0 %v4568
      %4859 = vmatprep.subr.bf16.mxu0 0
      %4860 = vmatpush1.bf16.msra.mxu0 %v4569
      %4861 = vmatprep.subr.bf16.mxu0 0
      %4862 = vmatpush1.bf16.msra.mxu0 %v4570
      %4863 = vmatprep.subr.bf16.mxu0 0
      %4864 = vmatpush1.bf16.msra.mxu0 %v4571
      %4865 = vmatprep.subr.bf16.mxu0 0
      %4866 = vmatpush1.bf16.msra.mxu0 %v4572
      %4867 = vmatprep.subr.bf16.mxu0 0
      %4868 = vmatpush1.bf16.msra.mxu0 %v4573
      %4869 = vmatprep.subr.bf16.mxu0 0
      %4870 = vmatpush1.bf16.msra.mxu0 %v4574
      %4871 = vmatprep.subr.bf16.mxu0 0
      %4872 = vmatpush1.bf16.msra.mxu0 %v4575
      %4873 = vmatprep.mubr.bf16.mxu0 %v3756
      %4874 = vmatmul.mubr.bf16.gmra.mrb[0].mxu0 %v3755
      %v4875 = vpop.f32.mrb[0].mxu0
      %v4876 = vadd.f32 %v4835, %v4875
      %v4877 = vpop.f32.mrb[0].mxu0
      %v4878 = vpop.f32.mrb[0].mxu0
      %v4879 = vadd.f32 %v4838, %v4878
      %v4880 = vpop.f32.mrb[0].mxu0
      %4881 = vdwg.mxu0
      %4882 = vmatprep.subr.bf16.mxu0 0
      %4883 = vmatpush1.bf16.msra.mxu0 %v4576
      %4884 = vmatprep.subr.bf16.mxu0 0
      %4885 = vmatpush1.bf16.msra.mxu0 %v4577
      %4886 = vmatprep.subr.bf16.mxu0 0
      %4887 = vmatpush1.bf16.msra.mxu0 %v4578
      %4888 = vmatprep.subr.bf16.mxu0 0
      %4889 = vmatpush1.bf16.msra.mxu0 %v4579
      %4890 = vmatprep.subr.bf16.mxu0 0
      %4891 = vmatpush1.bf16.msra.mxu0 %v4580
      %4892 = vmatprep.subr.bf16.mxu0 0
      %4893 = vmatpush1.bf16.msra.mxu0 %v4581
      %4894 = vmatprep.subr.bf16.mxu0 0
      %4895 = vmatpush1.bf16.msra.mxu0 %v4582
      %4896 = vmatprep.subr.bf16.mxu0 0
      %4897 = vmatpush1.bf16.msra.mxu0 %v4583
      %4898 = vmatprep.subr.bf16.mxu0 0
      %4899 = vmatpush1.bf16.msra.mxu0 %v4584
      %4900 = vmatprep.subr.bf16.mxu0 0
      %4901 = vmatpush1.bf16.msra.mxu0 %v4585
      %4902 = vmatprep.subr.bf16.mxu0 0
      %4903 = vmatpush1.bf16.msra.mxu0 %v4586
      %4904 = vmatprep.subr.bf16.mxu0 0
      %4905 = vmatpush1.bf16.msra.mxu0 %v4587
      %4906 = vmatprep.subr.bf16.mxu0 0
      %4907 = vmatpush1.bf16.msra.mxu0 %v4588
      %4908 = vmatprep.subr.bf16.mxu0 0
      %4909 = vmatpush1.bf16.msra.mxu0 %v4589
      %4910 = vmatprep.subr.bf16.mxu0 0
      %4911 = vmatpush1.bf16.msra.mxu0 %v4590
      %4912 = vmatprep.subr.bf16.mxu0 0
      %4913 = vmatpush1.bf16.msra.mxu0 %v4591
      %4914 = vmatprep.mubr.bf16.mxu0 %v3758
      %4915 = vmatmul.mubr.bf16.gmra.mrb[0].mxu0 %v3757
      %v4916 = vpop.f32.mrb[0].mxu0
      %v4917 = vadd.f32 %v4876, %v4916
      %v4918 = vpop.f32.mrb[0].mxu0
      %v4919 = vpop.f32.mrb[0].mxu0
      %v4920 = vadd.f32 %v4879, %v4919
      %v4921 = vpop.f32.mrb[0].mxu0
      %4922 = vdwg.mxu0
      %4923 = vmatprep.subr.bf16.mxu0 0
      %4924 = vmatpush1.bf16.msra.mxu0 %v4592
      %4925 = vmatprep.subr.bf16.mxu0 0
      %4926 = vmatpush1.bf16.msra.mxu0 %v4593
      %4927 = vmatprep.subr.bf16.mxu0 0
      %4928 = vmatpush1.bf16.msra.mxu0 %v4594
      %4929 = vmatprep.subr.bf16.mxu0 0
      %4930 = vmatpush1.bf16.msra.mxu0 %v4595
      %4931 = vmatprep.subr.bf16.mxu0 0
      %4932 = vmatpush1.bf16.msra.mxu0 %v4596
      %4933 = vmatprep.subr.bf16.mxu0 0
      %4934 = vmatpush1.bf16.msra.mxu0 %v4597
      %4935 = vmatprep.subr.bf16.mxu0 0
      %4936 = vmatpush1.bf16.msra.mxu0 %v4598
      %4937 = vmatprep.subr.bf16.mxu0 0
      %4938 = vmatpush1.bf16.msra.mxu0 %v4599
      %4939 = vmatprep.subr.bf16.mxu0 0
      %4940 = vmatpush1.bf16.msra.mxu0 %v4600
      %4941 = vmatprep.subr.bf16.mxu0 0
      %4942 = vmatpush1.bf16.msra.mxu0 %v4601
      %4943 = vmatprep.subr.bf16.mxu0 0
      %4944 = vmatpush1.bf16.msra.mxu0 %v4602
      %4945 = vmatprep.subr.bf16.mxu0 0
      %4946 = vmatpush1.bf16.msra.mxu0 %v4603
      %4947 = vmatprep.subr.bf16.mxu0 0
      %4948 = vmatpush1.bf16.msra.mxu0 %v4604
      %4949 = vmatprep.subr.bf16.mxu0 0
      %4950 = vmatpush1.bf16.msra.mxu0 %v4605
      %4951 = vmatprep.subr.bf16.mxu0 0
      %4952 = vmatpush1.bf16.msra.mxu0 %v4606
      %4953 = vmatprep.subr.bf16.mxu0 0
      %4954 = vmatpush1.bf16.msra.mxu0 %v4607
      %4955 = vmatprep.mubr.bf16.mxu0 %v3760
      %4956 = vmatmul.mubr.bf16.gmra.mrb[0].mxu0 %v3759
      %v4957 = vpop.f32.mrb[0].mxu0
      %v4958 = vadd.f32 %v4917, %v4957
      %v4959 = vpop.f32.mrb[0].mxu0
      %v4960 = vpop.f32.mrb[0].mxu0
      %v4961 = vadd.f32 %v4920, %v4960
      %v4962 = vpop.f32.mrb[0].mxu0
      %4963 = vdwg.mxu0
      %4964 = vmatprep.subr.bf16.mxu0 0
      %4965 = vmatpush1.bf16.msra.mxu0 %v4608
      %4966 = vmatprep.subr.bf16.mxu0 0
      %4967 = vmatpush1.bf16.msra.mxu0 %v4609
      %4968 = vmatprep.subr.bf16.mxu0 0
      %4969 = vmatpush1.bf16.msra.mxu0 %v4610
      %4970 = vmatprep.subr.bf16.mxu0 0
      %4971 = vmatpush1.bf16.msra.mxu0 %v4611
      %4972 = vmatprep.subr.bf16.mxu0 0
      %4973 = vmatpush1.bf16.msra.mxu0 %v4612
      %4974 = vmatprep.subr.bf16.mxu0 0
      %4975 = vmatpush1.bf16.msra.mxu0 %v4613
      %4976 = vmatprep.subr.bf16.mxu0 0
      %4977 = vmatpush1.bf16.msra.mxu0 %v4614
      %4978 = vmatprep.subr.bf16.mxu0 0
      %4979 = vmatpush1.bf16.msra.mxu0 %v4615
      %4980 = vmatprep.subr.bf16.mxu0 0
      %4981 = vmatpush1.bf16.msra.mxu0 %v4616
      %4982 = vmatprep.subr.bf16.mxu0 0
      %4983 = vmatpush1.bf16.msra.mxu0 %v4617
      %4984 = vmatprep.subr.bf16.mxu0 0
      %4985 = vmatpush1.bf16.msra.mxu0 %v4618
      %4986 = vmatprep.subr.bf16.mxu0 0
      %4987 = vmatpush1.bf16.msra.mxu0 %v4619
      %4988 = vmatprep.subr.bf16.mxu0 0
      %4989 = vmatpush1.bf16.msra.mxu0 %v4620
      %4990 = vmatprep.subr.bf16.mxu0 0
      %4991 = vmatpush1.bf16.msra.mxu0 %v4621
      %4992 = vmatprep.subr.bf16.mxu0 0
      %4993 = vmatpush1.bf16.msra.mxu0 %v4622
      %4994 = vmatprep.subr.bf16.mxu0 0
      %4995 = vmatpush1.bf16.msra.mxu0 %v4623
      %4996 = vmatprep.mubr.bf16.mxu0 %v3762
      %4997 = vmatmul.mubr.bf16.gmra.mrb[0].mxu0 %v3761
      %v4998 = vpop.f32.mrb[0].mxu0
      %v4999 = vadd.f32 %v4958, %v4998
      %v5000 = vpop.f32.mrb[0].mxu0
      %v5001 = vpop.f32.mrb[0].mxu0
      %v5002 = vadd.f32 %v4961, %v5001
      %v5003 = vpop.f32.mrb[0].mxu0
      %5004 = vdwg.mxu0
      %5005 = vmatprep.subr.bf16.mxu0 0
      %5006 = vmatpush1.bf16.msra.mxu0 %v4624
      %5007 = vmatprep.subr.bf16.mxu0 0
      %5008 = vmatpush1.bf16.msra.mxu0 %v4625
      %5009 = vmatprep.subr.bf16.mxu0 0
      %5010 = vmatpush1.bf16.msra.mxu0 %v4626
      %5011 = vmatprep.subr.bf16.mxu0 0
      %5012 = vmatpush1.bf16.msra.mxu0 %v4627
      %5013 = vmatprep.subr.bf16.mxu0 0
      %5014 = vmatpush1.bf16.msra.mxu0 %v4628
      %5015 = vmatprep.subr.bf16.mxu0 0
      %5016 = vmatpush1.bf16.msra.mxu0 %v4629
      %5017 = vmatprep.subr.bf16.mxu0 0
      %5018 = vmatpush1.bf16.msra.mxu0 %v4630
      %5019 = vmatprep.subr.bf16.mxu0 0
      %5020 = vmatpush1.bf16.msra.mxu0 %v4631
      %5021 = vmatprep.subr.bf16.mxu0 0
      %5022 = vmatpush1.bf16.msra.mxu0 %v4632
      %5023 = vmatprep.subr.bf16.mxu0 0
      %5024 = vmatpush1.bf16.msra.mxu0 %v4633
      %5025 = vmatprep.subr.bf16.mxu0 0
      %5026 = vmatpush1.bf16.msra.mxu0 %v4634
      %5027 = vmatprep.subr.bf16.mxu0 0
      %5028 = vmatpush1.bf16.msra.mxu0 %v4635
      %5029 = vmatprep.subr.bf16.mxu0 0
      %5030 = vmatpush1.bf16.msra.mxu0 %v4636
      %5031 = vmatprep.subr.bf16.mxu0 0
      %5032 = vmatpush1.bf16.msra.mxu0 %v4637
      %5033 = vmatprep.subr.bf16.mxu0 0
      %5034 = vmatpush1.bf16.msra.mxu0 %v4638
      %5035 = vmatprep.subr.bf16.mxu0 0
      %5036 = vmatpush1.bf16.msra.mxu0 %v4639
      %5037 = vmatprep.mubr.bf16.mxu0 %v3764
      %5038 = vmatmul.mubr.bf16.gmra.mrb[0].mxu0 %v3763
      %v5039 = vpop.f32.mrb[0].mxu0
      %v5040 = vadd.f32 %v4999, %v5039
      %v5041 = vpop.f32.mrb[0].mxu0
      %v5042 = vpop.f32.mrb[0].mxu0
      %v5043 = vadd.f32 %v5002, %v5042
      %v5044 = vpop.f32.mrb[0].mxu0
      %5045 = vdwg.mxu0
      %5046 = vmatprep.subr.bf16.mxu0 0
      %5047 = vmatpush1.bf16.msra.mxu0 %v4640
      %5048 = vmatprep.subr.bf16.mxu0 0
      %5049 = vmatpush1.bf16.msra.mxu0 %v4641
      %5050 = vmatprep.subr.bf16.mxu0 0
      %5051 = vmatpush1.bf16.msra.mxu0 %v4642
      %5052 = vmatprep.subr.bf16.mxu0 0
      %5053 = vmatpush1.bf16.msra.mxu0 %v4643
      %5054 = vmatprep.subr.bf16.mxu0 0
      %5055 = vmatpush1.bf16.msra.mxu0 %v4644
      %5056 = vmatprep.subr.bf16.mxu0 0
      %5057 = vmatpush1.bf16.msra.mxu0 %v4645
      %5058 = vmatprep.subr.bf16.mxu0 0
      %5059 = vmatpush1.bf16.msra.mxu0 %v4646
      %5060 = vmatprep.subr.bf16.mxu0 0
      %5061 = vmatpush1.bf16.msra.mxu0 %v4647
      %5062 = vmatprep.subr.bf16.mxu0 0
      %5063 = vmatpush1.bf16.msra.mxu0 %v4648
      %5064 = vmatprep.subr.bf16.mxu0 0
      %5065 = vmatpush1.bf16.msra.mxu0 %v4649
      %5066 = vmatprep.subr.bf16.mxu0 0
      %5067 = vmatpush1.bf16.msra.mxu0 %v4650
      %5068 = vmatprep.subr.bf16.mxu0 0
      %5069 = vmatpush1.bf16.msra.mxu0 %v4651
      %5070 = vmatprep.subr.bf16.mxu0 0
      %5071 = vmatpush1.bf16.msra.mxu0 %v4652
      %5072 = vmatprep.subr.bf16.mxu0 0
      %5073 = vmatpush1.bf16.msra.mxu0 %v4653
      %5074 = vmatprep.subr.bf16.mxu0 0
      %5075 = vmatpush1.bf16.msra.mxu0 %v4654
      %5076 = vmatprep.subr.bf16.mxu0 0
      %5077 = vmatpush1.bf16.msra.mxu0 %v4655
      %5078 = vmatprep.mubr.bf16.mxu0 %v3766
      %5079 = vmatmul.mubr.bf16.gmra.mrb[0].mxu0 %v3765
      %v5080 = vpop.f32.mrb[0].mxu0
      %v5081 = vadd.f32 %v5040, %v5080
      %v5082 = vpop.f32.mrb[0].mxu0
      %v5083 = vpop.f32.mrb[0].mxu0
      %v5084 = vadd.f32 %v5043, %v5083
      %v5085 = vpop.f32.mrb[0].mxu0
      %5086 = vdwg.mxu0
      %5087 = vmatprep.subr.bf16.mxu0 0
      %5088 = vmatpush1.bf16.msra.mxu0 %v4656
      %5089 = vmatprep.subr.bf16.mxu0 0
      %5090 = vmatpush1.bf16.msra.mxu0 %v4657
      %5091 = vmatprep.subr.bf16.mxu0 0
      %5092 = vmatpush1.bf16.msra.mxu0 %v4658
      %5093 = vmatprep.subr.bf16.mxu0 0
      %5094 = vmatpush1.bf16.msra.mxu0 %v4659
      %5095 = vmatprep.subr.bf16.mxu0 0
      %5096 = vmatpush1.bf16.msra.mxu0 %v4660
      %5097 = vmatprep.subr.bf16.mxu0 0
      %5098 = vmatpush1.bf16.msra.mxu0 %v4661
      %5099 = vmatprep.subr.bf16.mxu0 0
      %5100 = vmatpush1.bf16.msra.mxu0 %v4662
      %5101 = vmatprep.subr.bf16.mxu0 0
      %5102 = vmatpush1.bf16.msra.mxu0 %v4663
      %5103 = vmatprep.subr.bf16.mxu0 0
      %5104 = vmatpush1.bf16.msra.mxu0 %v4664
      %5105 = vmatprep.subr.bf16.mxu0 0
      %5106 = vmatpush1.bf16.msra.mxu0 %v4665
      %5107 = vmatprep.subr.bf16.mxu0 0
      %5108 = vmatpush1.bf16.msra.mxu0 %v4666
      %5109 = vmatprep.subr.bf16.mxu0 0
      %5110 = vmatpush1.bf16.msra.mxu0 %v4667
      %5111 = vmatprep.subr.bf16.mxu0 0
      %5112 = vmatpush1.bf16.msra.mxu0 %v4668
      %5113 = vmatprep.subr.bf16.mxu0 0
      %5114 = vmatpush1.bf16.msra.mxu0 %v4669
      %5115 = vmatprep.subr.bf16.mxu0 0
      %5116 = vmatpush1.bf16.msra.mxu0 %v4670
      %5117 = vmatprep.subr.bf16.mxu0 0
      %5118 = vmatpush1.bf16.msra.mxu0 %v4671
      %5119 = vmatprep.mubr.bf16.mxu0 %v3768
      %5120 = vmatmul.mubr.bf16.gmra.mrb[0].mxu0 %v3767
      %v5121 = vpop.f32.mrb[0].mxu0
      %v5122 = vadd.f32 %v5081, %v5121
      %v5123 = vpop.f32.mrb[0].mxu0
      %v5124 = vpop.f32.mrb[0].mxu0
      %v5125 = vadd.f32 %v5084, %v5124
      %v5126 = vpop.f32.mrb[0].mxu0
      %5127 = vdwg.mxu0
      %v5128 = vadd.f32 %v2903, %v5122
      %v5129 = vadd.f32 %v2904, %v5125
      %v5130 = vld [vmem:[%s753] sm:$0x1]
      %v5131 = vld [vmem:[%s756] sm:$0x1]
      %v5132 = vsel %vm948, %v5128, 0.0
      %5133 = vadd.xlane.f32.xlu0 %v5132
      %v5134 = vpop.xlane.xlu0 %5133
      %v5135 = vsel %vm948, %v5129, 0.0
      %5136 = vadd.xlane.f32.xlu0 %v5135
      %v5137 = vpop.xlane.xlu0 %5136
      %v5138 = vmul.f32 %v5134, %v2868
      %v5139 = vmul.f32 %v5137, %v2868
      %v5140 = vsub.f32 %v5128, %v5138
      %v5141 = vsub.f32 %v5129, %v5139
      %v5142 = vmul.f32 %v5140, %v5140
      %v5143 = vmul.f32 %v5141, %v5141
      %v5144 = vsel %vm948, %v5142, 0.0
      %5145 = vadd.xlane.f32.xlu0 %v5144
      %v5146 = vpop.xlane.xlu0 %5145
      %v5147 = vsel %vm948, %v5143, 0.0
      %5148 = vadd.xlane.f32.xlu0 %v5147
      %v5149 = vpop.xlane.xlu0 %5148
      %v5150 = vmul.f32 %v5146, %v2868
      %v5151 = vmul.f32 %v5149, %v2868
      %v5152 = vadd.f32 %v5150, 1e-05
      %v5153 = vadd.f32 %v5151, 1e-05
      %v5154 = vrsqrt.pop %v5152
      %v5155 = vrsqrt.pop %v5153
      %v5156 = vmul.f32 %v5140, %v5154
      %v5157 = vmul.f32 %v5141, %v5155
      %v5159 = vlaneseq
      %v5160 = vshrl.u32 %v5159, 7
      %v5161 = vsub.s32 0, %v5160
      %v5162 = vrot.slane %v5130, %v5161
      %v5164 = vmul.f32 %v5156, %v5162
      %v5165 = vmul.f32 %v5157, %v5162
      %v5167 = vlaneseq
      %v5168 = vshrl.u32 %v5167, 7
      %v5169 = vsub.s32 0, %v5168
      %v5170 = vrot.slane %v5131, %v5169
      %v5172 = vadd.f32 %v5164, %v5170
      %v5173 = vadd.f32 %v5165, %v5170
      %5174 = vst.msk [vmem:[#allocation2] sm:$0xff] %vm948, %v5172
      %5175 = vst.msk [vmem:[#allocation2 + $0x8] sm:$0xff] %vm948, %v5173
      %p5176 = scmp.eq.s32.totalorder %s35, 1
      // Predicated region
      $region93: #{tpu_custom_call.1} parent=87 // pred_check
        %p5177 = pneg %p5176
      $region94: #{tpu_custom_call.1} parent=87 // pred_check_branch
        %5179 = sbr.rel (%p5177) target = $region96
      $region95: #{tpu_custom_call.1} parent=87 // pred_region
        %v5180 = vld [vmem:[%s15] sm:$0x1]
        %v5182 = vlaneseq
        %v5183 = vshrl.u32 %v5182, 7
        %v5184 = vsub.s32 0, %v5183
        %v5185 = vrot.slane %v5180, %v5184
        %v5187 = vmul.f32 %v5172, %v5185
        %v5188 = vmul.f32 %v5173, %v5185
        %v5191 = vrot.slane %v5188, 7
        %vm5194 = vcmask 523271
        %v5195 = vsel %vm5194, %v5187, 0.0
        %5196 = vadd.xlane.f32.xlu0 %v5195
        %v5197 = vpop.xlane.xlu0 %5196
        %vm5198 = vcmask 516096
        %v5199 = vsel %vm5198, %v5191, 0.0
        %5200 = vadd.xlane.f32.xlu0 %v5199
        %v5201 = vpop.xlane.xlu0 %5200
        %v5202 = vld [vmem:[#allocation3] sm:$0x1]
        %v5204 = vlaneseq
        %v5205 = vshrl.u32 %v5204, 7
        %v5206 = vsub.s32 0, %v5205
        %v5207 = vrot.slane %v5202, %v5206
        %v5209 = vadd.f32 %v5197, %v5207
        %v5210 = vadd.f32 %v5201, %v5207
        %vm5211 = vcmask 7175
        %5212 = vst.msk [vmem:[%s760 - $0x7] sm:$0x80] %vm5211, %v5209
        %vm5213 = vcmask 0
        %5214 = vst.msk [vmem:[%s760 + $0x1] sm:$0x1] %vm5213, %v5210
      $region96: #{tpu_custom_call.1} parent=87 // pred_fallthru
        _
      %p5215 = scmp.lt.s32.totalorder %s34, 0
      %s5216 = scalar_select %p5215, %s34, 0
      %s5217 = smul.addr %s5216, 2
      %s5218 = scalar_lea.vmem %s17, %s5217
      // Predicated region
      $region97: #{tpu_custom_call.1} parent=87 // pred_check
        %p5219 = pneg %p482
      $region98: #{tpu_custom_call.1} parent=87 // pred_check_branch
        %5221 = sbr.rel (%p5219) target = $region100
      $region99: #{tpu_custom_call.1} parent=87 // pred_region
        _
      $region100: #{tpu_custom_call.1} parent=87 // pred_fallthru
        _
      // Predicated region
      $region101: #{tpu_custom_call.1} parent=87 // pred_check
        %p5222 = pneg %p482
      $region102: #{tpu_custom_call.1} parent=87 // pred_check_branch
        %5224 = sbr.rel (%p5222) target = $region104
      $region103: #{tpu_custom_call.1} parent=87 // pred_region
        %p5225 = scmp.lt.s32.totalorder %s34, 0
        %s5226 = scalar_select %p5225, %s34, 0
        %s5227 = smul.addr %s5226, 2
        %s5228 = scalar_lea.vmem %s17, %s5227
      $region104: #{tpu_custom_call.1} parent=87 // pred_fallthru
        _
    $region88: #{tpu_custom_call.1} parent=5 // pred_fallthru
      _
    %p5229 = scmp.le.s32.totalorder 2, %s25
    // Predicated region
    $region105: #{tpu_custom_call.1} parent=5 // pred_check
      %p5230 = pneg %p5229
    $region106: #{tpu_custom_call.1} parent=5 // pred_check_branch
      %5232 = sbr.rel (%p5230) target = $region108
    $region107: #{tpu_custom_call.1} parent=5 // pred_region
      %s5233 = ssub.s32 %s25, 2
    $region108: #{tpu_custom_call.1} parent=5 // pred_fallthru
      _
  $region6: #{tpu_custom_call.1} parent=0 // loop_footer
    %s29 = sadd.s32 1, %s25
  $region7: #{tpu_custom_call.1} parent=0 // loop_footer_branch
    %24 = sbr.rel target = $region3
  $region8: #{tpu_custom_call.1} parent=0 // loop_exit
    _

</llo_original>
